<compile_context>
chip_gen: v6e
topology: v6e:2x2x1
jax: 0.10.0
libtpu: 0.0.40
codegen_flags: <defaults>
</compile_context>

<pallas_src>
import jax
import jax.numpy as jnp
from jax.experimental import pallas as pl
from jax.experimental.pallas import tpu as pltpu


# ---------------------------------------------------------------------------
# Model hyperparameters (match the PyTorch module defaults)
# ---------------------------------------------------------------------------
INPUT_SIZE = 28
HIDDEN_SIZE = 512
OUTPUT_SIZE = 9
OUTPUT_PAD = 128                                             # lane-dense output
EMBEDDING_DIM = 8
NUM_CARD_RANKS = 13
NUM_CARD_POSITIONS = 14
NON_CARD_FEATURES = 14
EMBEDDED_SIZE = NUM_CARD_POSITIONS * EMBEDDING_DIM           # 112
TOTAL_FEATURES = EMBEDDED_SIZE + NON_CARD_FEATURES           # 126
IN_PAD = 128                                                 # lane-aligned K
LN_EPS = 1e-5
LEAKY_SLOPE = 0.1                                            # nn.LeakyReLU(0.1)
NUM_SUBBLOCKS = 2                                            # MXU/VPU interleave


def _round_up(x, m):
    return (x + m - 1) // m * m


# ---------------------------------------------------------------------------
# Pallas kernel: fused 4x Linear + 3x LayerNorm + 3x LeakyReLU
# ---------------------------------------------------------------------------
def deep_cfr_mlp_kernel(
    x_ref,                              # (TB, 128)  bf16   batch tile
    w1_ref, w2_ref, w3_ref, w4_ref,     # bf16 weights (K-padded / out-padded)
    b_ref,                              # (3, 512)   f32    biases of layers 1..3
    g_ref,                              # (3, 512)   f32    LN gammas
    be_ref,                             # (3, 512)   f32    LN betas
    b4_ref,                             # (1, 128)   f32    padded output bias
    o_ref,                              # (TB, 128)  f32
):
    tb = x_ref.shape[0]
    c = tb // NUM_SUBBLOCKS
    inv_h = 1.0 / HIDDEN_SIZE

    # Whole-array VMEM-resident params (loaded once, reused by both sub-blocks).
    w1 = w1_ref[...]
    w2 = w2_ref[...]
    w3 = w3_ref[...]
    w4 = w4_ref[...]
    b = b_ref[...]
    b4 = b4_ref[...]
    g_bf = g_ref[...].astype(jnp.bfloat16)
    be_bf = be_ref[...].astype(jnp.bfloat16)

    def ln_lrelu(h, li):
        # LN stats in f32 (one pass: sum & sum-of-squares), clamp variance >= 0.
        mu = jnp.sum(h, axis=-1, keepdims=True) * inv_h
        ex2 = jnp.sum(h * h, axis=-1, keepdims=True) * inv_h
        var = jnp.maximum(ex2 - mu * mu, 0.0)
        inv = jax.lax.rsqrt(var + LN_EPS)                    # EUP slot
        # Normalize -> bf16, then affine + LeakyReLU in bf16 (halves VALU work
        # on v6e/v7x and directly yields the bf16 operand for the next matmul).
        hn = ((h - mu) * inv).astype(jnp.bfloat16)
        hn = hn * g_bf[li:li + 1, :] + be_bf[li:li + 1, :]
        return jnp.maximum(hn, LEAKY_SLOPE * hn)             # 0 < slope < 1

    def hidden_layer(a_bf16, w, li):
        h = jnp.dot(a_bf16, w, preferred_element_type=jnp.float32)   # MXU
        return ln_lrelu(h + b[li:li + 1, :], li)

    # Two independent sub-block dependency chains, interleaved layer-by-layer:
    # while chunk 0 is in LayerNorm/LeakyReLU, chunk 1's matmul can issue.
    acts = [x_ref[pl.ds(i * c, c), :] for i in range(NUM_SUBBLOCKS)]
    for li, w in enumerate((w1, w2, w3)):
        acts = [hidden_layer(a, w, li) for a in acts]

    # Layer 4: lane-dense 128-wide output (real logits in cols 0..8).
    for i in range(NUM_SUBBLOCKS):
        o_ref[pl.ds(i * c, c), :] = (
            jnp.dot(acts[i], w4, preferred_element_type=jnp.float32) + b4
        )


# ---------------------------------------------------------------------------
# Parameter construction (mimics kaiming_normal_ + constant 0.01 bias)
# ---------------------------------------------------------------------------
def init_params(key):
    keys = jax.random.split(key, 5)
    gain = (2.0 / (1.0 + LEAKY_SLOPE ** 2)) ** 0.5

    def linear(k, fan_in, fan_out):
        std = gain / (fan_in ** 0.5)
        # stored [in, out] so the kernel does x @ W (PyTorch stores [out, in])
        w = jax.random.normal(k, (fan_in, fan_out), jnp.float32) * std
        b = jnp.full((fan_out,), 0.01, jnp.float32)
        return w, b

    emb = jax.random.normal(keys[0], (NUM_CARD_RANKS + 1, EMBEDDING_DIM), jnp.float32)

    w1, b1 = linear(keys[1], TOTAL_FEATURES, HIDDEN_SIZE)
    w2, b2 = linear(keys[2], HIDDEN_SIZE, HIDDEN_SIZE)
    w3, b3 = linear(keys[3], HIDDEN_SIZE, HIDDEN_SIZE)
    w4, b4 = linear(keys[4], HIDDEN_SIZE, OUTPUT_SIZE)

    # K-pad w1 (126 -> 128 rows, zeros), lane-pad w4/b4 (9 -> 128 cols, zeros).
    w1p = jnp.zeros((IN_PAD, HIDDEN_SIZE), jnp.float32).at[:TOTAL_FEATURES].set(w1)
    w4p = jnp.zeros((HIDDEN_SIZE, OUTPUT_PAD), jnp.float32).at[:, :OUTPUT_SIZE].set(w4)
    b4p = jnp.zeros((1, OUTPUT_PAD), jnp.float32).at[0, :OUTPUT_SIZE].set(b4)

    ones = jnp.ones((HIDDEN_SIZE,), jnp.float32)
    zeros = jnp.zeros((HIDDEN_SIZE,), jnp.float32)

    return {
        "emb": emb,
        # bf16 weights: native MXU operand dtype, ~1.3 MiB total resident
        "w1": w1p.astype(jnp.bfloat16),
        "w2": w2.astype(jnp.bfloat16),
        "w3": w3.astype(jnp.bfloat16),
        "w4": w4p.astype(jnp.bfloat16),
        # stacked f32 bias / LayerNorm params (fewer tiny kernel inputs)
        "b": jnp.stack([b1, b2, b3], axis=0),        # (3, 512)
        "g": jnp.stack([ones, ones, ones], axis=0),  # (3, 512)
        "be": jnp.stack([zeros, zeros, zeros], axis=0),
        "b4": b4p,                                   # (1, 128)
    }


# ---------------------------------------------------------------------------
# Forward wrapper
# ---------------------------------------------------------------------------
def deep_cfr_forward(params, x, block_b=1024):
    """x: [B, 28] float32. First 14 cols = card indices, last 14 = features."""
    B = x.shape[0]

    # Glue (plain JAX): embedding gather + flatten + concat, in bf16 so the
    # padded [B,128] intermediate is written/read once at half the bytes.
    card_indices = x[:, :NUM_CARD_POSITIONS].astype(jnp.int32)
    non_card = x[:, NUM_CARD_POSITIONS:].astype(jnp.bfloat16)
    embedded = jnp.take(params["emb"], card_indices, axis=0)        # [B, 14, 8]
    embedded = embedded.reshape(B, EMBEDDED_SIZE).astype(jnp.bfloat16)
    combined = jnp.concatenate([embedded, non_card], axis=1)        # [B, 126] bf16

    # Batch tile: multiple of 16 (bf16 sublane packing). Ensure >=2 grid tiles
    # when the batch allows it so v7x can shard tiles across both TensorCores.
    TB = min(block_b, _round_up(B, 16))
    if _round_up(B, TB) // TB < 2 and TB > 16:
        TB = _round_up(TB // 2, 16)
    Bp = _round_up(B, TB)

    # Lane-pad features 126 -> 128 and pad the batch (zeros are harmless:
    # zero rows LN-normalize to finite values, padded w4/b4 columns are zero).
    combined = jnp.pad(combined, ((0, Bp - B), (0, IN_PAD - TOTAL_FEATURES)))

    # Untiled, whole-array VMEM-resident refs for the parameters.
    vmem_spec = pl.BlockSpec(memory_space=pltpu.MemorySpace.VMEM)

    out = pl.pallas_call(
        deep_cfr_mlp_kernel,
        out_shape=jax.ShapeDtypeStruct((Bp, OUTPUT_PAD), jnp.float32),
        grid=(Bp // TB,),
        in_specs=[
            pl.BlockSpec((TB, IN_PAD), lambda i: (i, 0)),
            vmem_spec,  # w1
            vmem_spec,  # w2
            vmem_spec,  # w3
            vmem_spec,  # w4
            vmem_spec,  # b (3,512)
            vmem_spec,  # gamma (3,512)
            vmem_spec,  # beta (3,512)
            vmem_spec,  # b4 (1,128)
        ],
        out_specs=pl.BlockSpec((TB, OUTPUT_PAD), lambda i: (i, 0)),
        compiler_params=pltpu.CompilerParams(
            dimension_semantics=("parallel",),
            vmem_limit_bytes=32 * 1024 * 1024,
        ),
    )(
        combined,
        params["w1"], params["w2"], params["w3"], params["w4"],
        params["b"], params["g"], params["be"], params["b4"],
    )

    return out[:B, :OUTPUT_SIZE]


# ---------------------------------------------------------------------------
# Pure-JAX reference (mirrors the kernel's bf16-matmul / f32-stat precision)
# ---------------------------------------------------------------------------
def reference_forward(params, x):
    B = x.shape[0]
    idx = x[:, :NUM_CARD_POSITIONS].astype(jnp.int32)
    non_card = x[:, NUM_CARD_POSITIONS:].astype(jnp.bfloat16)
    embedded = jnp.take(params["emb"], idx, axis=0).reshape(B, EMBEDDED_SIZE)
    combined = jnp.concatenate([embedded.astype(jnp.bfloat16), non_card], axis=1)
    combined = jnp.pad(combined, ((0, 0), (0, IN_PAD - TOTAL_FEATURES)))

    def layer(a_bf16, w, b, g, be):
        h = jnp.dot(a_bf16, w, preferred_element_type=jnp.float32) + b
        mu = jnp.mean(h, axis=-1, keepdims=True)
        var = jnp.maximum(jnp.mean(h * h, axis=-1, keepdims=True) - mu * mu, 0.0)
        hn = ((h - mu) * jax.lax.rsqrt(var + LN_EPS)).astype(jnp.bfloat16)
        hn = hn * g.astype(jnp.bfloat16) + be.astype(jnp.bfloat16)
        return jnp.maximum(hn, LEAKY_SLOPE * hn)

    h = combined
    for li, w in enumerate((params["w1"], params["w2"], params["w3"])):
        h = layer(h, w, params["b"][li], params["g"][li], params["be"][li])
    out = jnp.dot(h, params["w4"], preferred_element_type=jnp.float32) + params["b4"]
    return out[:, :OUTPUT_SIZE]


if __name__ == "__main__":
    key = jax.random.PRNGKey(0)
    pkey, ikey, fkey = jax.random.split(key, 3)

    params = init_params(pkey)

    # Small deterministic input: batch=2, 28 features (14 card indices + 14 floats).
    B = 2
    cards = jax.random.randint(ikey, (B, NUM_CARD_POSITIONS), 0, NUM_CARD_RANKS + 1)
    feats = jax.random.normal(fkey, (B, NON_CARD_FEATURES), jnp.float32)
    x = jnp.concatenate([cards.astype(jnp.float32), feats], axis=1)  # [2, 28]

    out = jax.block_until_ready(deep_cfr_forward(params, x))
    ref = reference_forward(params, x)

    assert out.shape == (B, OUTPUT_SIZE)
    assert bool(jnp.all(jnp.isfinite(out))), "non-finite output"
    assert jnp.allclose(out, ref, atol=2e-2, rtol=2e-2), "mismatch vs reference"

    print("KERNEL_OK")
</pallas_src>

<mosaic_0001>
module attributes {stable_mosaic.version = 11 : i64} {
  func.func @deep_cfr_mlp_kernel(%arg0: i32, %arg1: memref<16x128xbf16, #tpu.memory_space<vmem>>, %arg2: memref<128x512xbf16, #tpu.memory_space<vmem>>, %arg3: memref<512x512xbf16, #tpu.memory_space<vmem>>, %arg4: memref<512x512xbf16, #tpu.memory_space<vmem>>, %arg5: memref<512x128xbf16, #tpu.memory_space<vmem>>, %arg6: memref<3x512xf32, #tpu.memory_space<vmem>>, %arg7: memref<3x512xf32, #tpu.memory_space<vmem>>, %arg8: memref<3x512xf32, #tpu.memory_space<vmem>>, %arg9: memref<1x128xf32, #tpu.memory_space<vmem>>, %arg10: memref<16x128xf32, #tpu.memory_space<vmem>>) attributes {dimension_semantics = [#tpu.dimension_semantics<parallel>], iteration_bounds = array<i64: 1>, scalar_prefetch = 0 : i64, scratch_operands = 0 : i64, tpu.core_type = #tpu.core_type<tc>, window_params = [{transform_indices = @transform_0, window_bounds = array<i64: 16, 128>}, {pipeline_mode = #tpu.pipeline_mode<synchronous>, transform_indices = @transform_1, window_bounds = array<i64: 128, 512>}, {pipeline_mode = #tpu.pipeline_mode<synchronous>, transform_indices = @transform_2, window_bounds = array<i64: 512, 512>}, {pipeline_mode = #tpu.pipeline_mode<synchronous>, transform_indices = @transform_3, window_bounds = array<i64: 512, 512>}, {pipeline_mode = #tpu.pipeline_mode<synchronous>, transform_indices = @transform_4, window_bounds = array<i64: 512, 128>}, {pipeline_mode = #tpu.pipeline_mode<synchronous>, transform_indices = @transform_5, window_bounds = array<i64: 3, 512>}, {pipeline_mode = #tpu.pipeline_mode<synchronous>, transform_indices = @transform_6, window_bounds = array<i64: 3, 512>}, {pipeline_mode = #tpu.pipeline_mode<synchronous>, transform_indices = @transform_7, window_bounds = array<i64: 3, 512>}, {pipeline_mode = #tpu.pipeline_mode<synchronous>, transform_indices = @transform_8, window_bounds = array<i64: 1, 128>}, {transform_indices = @transform_9, window_bounds = array<i64: 16, 128>}]} {
    %c0 = arith.constant 0 : index
    %c0_0 = arith.constant 0 : index
    %0 = vector.load %arg2[%c0, %c0_0] : memref<128x512xbf16, #tpu.memory_space<vmem>>, vector<128x512xbf16>
    %c0_1 = arith.constant 0 : index
    %c0_2 = arith.constant 0 : index
    %1 = vector.load %arg3[%c0_1, %c0_2] : memref<512x512xbf16, #tpu.memory_space<vmem>>, vector<512x512xbf16>
    %c0_3 = arith.constant 0 : index
    %c0_4 = arith.constant 0 : index
    %2 = vector.load %arg4[%c0_3, %c0_4] : memref<512x512xbf16, #tpu.memory_space<vmem>>, vector<512x512xbf16>
    %c0_5 = arith.constant 0 : index
    %c0_6 = arith.constant 0 : index
    %3 = vector.load %arg5[%c0_5, %c0_6] : memref<512x128xbf16, #tpu.memory_space<vmem>>, vector<512x128xbf16>
    %c0_7 = arith.constant 0 : index
    %c0_8 = arith.constant 0 : index
    %4 = vector.load %arg6[%c0_7, %c0_8] : memref<3x512xf32, #tpu.memory_space<vmem>>, vector<3x512xf32>
    %c0_9 = arith.constant 0 : index
    %c0_10 = arith.constant 0 : index
    %5 = vector.load %arg9[%c0_9, %c0_10] : memref<1x128xf32, #tpu.memory_space<vmem>>, vector<1x128xf32>
    %c0_11 = arith.constant 0 : index
    %c0_12 = arith.constant 0 : index
    %6 = vector.load %arg7[%c0_11, %c0_12] : memref<3x512xf32, #tpu.memory_space<vmem>>, vector<3x512xf32>
    %7 = arith.truncf %6 : vector<3x512xf32> to vector<3x512xbf16>
    %c0_13 = arith.constant 0 : index
    %c0_14 = arith.constant 0 : index
    %8 = vector.load %arg8[%c0_13, %c0_14] : memref<3x512xf32, #tpu.memory_space<vmem>>, vector<3x512xf32>
    %9 = arith.truncf %8 : vector<3x512xf32> to vector<3x512xbf16>
    %c0_15 = arith.constant 0 : index
    %c0_16 = arith.constant 0 : index
    %10 = vector.load %arg1[%c0_15, %c0_16] : memref<16x128xbf16, #tpu.memory_space<vmem>>, vector<8x128xbf16>
    %c8 = arith.constant 8 : index
    %c0_17 = arith.constant 0 : index
    %11 = vector.load %arg1[%c8, %c0_17] : memref<16x128xbf16, #tpu.memory_space<vmem>>, vector<8x128xbf16>
    %cst = arith.constant dense<0.000000e+00> : vector<8x512xf32>
    %12 = tpu.matmul %10, %0, %cst {dimension_numbers = #tpu.dot_dimension_numbers<[1], [0], [0], [1], [0, 0, 1, 1], [], []>} : vector<8x128xbf16>, vector<128x512xbf16>, vector<8x512xf32> -> vector<8x512xf32>
    %13 = vector.extract_strided_slice %4 {offsets = [0, 0], sizes = [1, 512], strides = [1, 1]} : vector<3x512xf32> to vector<1x512xf32>
    %14 = vector.broadcast %13 : vector<1x512xf32> to vector<8x512xf32>
    %15 = arith.addf %12, %14 : vector<8x512xf32>
    %cst_18 = arith.constant dense<0.000000e+00> : vector<8xf32>
    %16 = vector.multi_reduction <add>, %15, %cst_18 [1] : vector<8x512xf32> to vector<8xf32>
    %17 = vector.shape_cast %16 : vector<8xf32> to vector<8x1xf32>
    %cst_19 = arith.constant 0.001953125 : f32
    %18 = vector.broadcast %cst_19 : f32 to vector<8x1xf32>
    %19 = arith.mulf %17, %18 : vector<8x1xf32>
    %20 = arith.mulf %15, %15 : vector<8x512xf32>
    %cst_20 = arith.constant dense<0.000000e+00> : vector<8xf32>
    %21 = vector.multi_reduction <add>, %20, %cst_20 [1] : vector<8x512xf32> to vector<8xf32>
    %22 = vector.shape_cast %21 : vector<8xf32> to vector<8x1xf32>
    %cst_21 = arith.constant 0.001953125 : f32
    %23 = vector.broadcast %cst_21 : f32 to vector<8x1xf32>
    %24 = arith.mulf %22, %23 : vector<8x1xf32>
    %25 = arith.mulf %19, %19 : vector<8x1xf32>
    %26 = arith.subf %24, %25 : vector<8x1xf32>
    %cst_22 = arith.constant 0.000000e+00 : f32
    %27 = vector.broadcast %cst_22 : f32 to vector<8x1xf32>
    %28 = arith.maximumf %26, %27 : vector<8x1xf32>
    %cst_23 = arith.constant 9.99999974E-6 : f32
    %29 = vector.broadcast %cst_23 : f32 to vector<8x1xf32>
    %30 = arith.addf %28, %29 : vector<8x1xf32>
    %31 = math.rsqrt %30 : vector<8x1xf32>
    %32 = vector.broadcast %19 : vector<8x1xf32> to vector<8x512xf32>
    %33 = arith.subf %15, %32 : vector<8x512xf32>
    %34 = vector.broadcast %31 : vector<8x1xf32> to vector<8x512xf32>
    %35 = arith.mulf %33, %34 : vector<8x512xf32>
    %36 = arith.truncf %35 : vector<8x512xf32> to vector<8x512xbf16>
    %37 = vector.extract_strided_slice %7 {offsets = [0, 0], sizes = [1, 512], strides = [1, 1]} : vector<3x512xbf16> to vector<1x512xbf16>
    %38 = vector.broadcast %37 : vector<1x512xbf16> to vector<8x512xbf16>
    %39 = arith.mulf %36, %38 : vector<8x512xbf16>
    %40 = vector.extract_strided_slice %9 {offsets = [0, 0], sizes = [1, 512], strides = [1, 1]} : vector<3x512xbf16> to vector<1x512xbf16>
    %41 = vector.broadcast %40 : vector<1x512xbf16> to vector<8x512xbf16>
    %42 = arith.addf %39, %41 : vector<8x512xbf16>
    %cst_24 = arith.constant 1.000980e-01 : bf16
    %43 = vector.broadcast %cst_24 : bf16 to vector<8x512xbf16>
    %44 = arith.mulf %43, %42 : vector<8x512xbf16>
    %45 = arith.maximumf %42, %44 : vector<8x512xbf16>
    %cst_25 = arith.constant dense<0.000000e+00> : vector<8x512xf32>
    %46 = tpu.matmul %11, %0, %cst_25 {dimension_numbers = #tpu.dot_dimension_numbers<[1], [0], [0], [1], [0, 0, 1, 1], [], []>} : vector<8x128xbf16>, vector<128x512xbf16>, vector<8x512xf32> -> vector<8x512xf32>
    %47 = vector.extract_strided_slice %4 {offsets = [0, 0], sizes = [1, 512], strides = [1, 1]} : vector<3x512xf32> to vector<1x512xf32>
    %48 = vector.broadcast %47 : vector<1x512xf32> to vector<8x512xf32>
    %49 = arith.addf %46, %48 : vector<8x512xf32>
    %cst_26 = arith.constant dense<0.000000e+00> : vector<8xf32>
    %50 = vector.multi_reduction <add>, %49, %cst_26 [1] : vector<8x512xf32> to vector<8xf32>
    %51 = vector.shape_cast %50 : vector<8xf32> to vector<8x1xf32>
    %cst_27 = arith.constant 0.001953125 : f32
    %52 = vector.broadcast %cst_27 : f32 to vector<8x1xf32>
    %53 = arith.mulf %51, %52 : vector<8x1xf32>
    %54 = arith.mulf %49, %49 : vector<8x512xf32>
    %cst_28 = arith.constant dense<0.000000e+00> : vector<8xf32>
    %55 = vector.multi_reduction <add>, %54, %cst_28 [1] : vector<8x512xf32> to vector<8xf32>
    %56 = vector.shape_cast %55 : vector<8xf32> to vector<8x1xf32>
    %cst_29 = arith.constant 0.001953125 : f32
    %57 = vector.broadcast %cst_29 : f32 to vector<8x1xf32>
    %58 = arith.mulf %56, %57 : vector<8x1xf32>
    %59 = arith.mulf %53, %53 : vector<8x1xf32>
    %60 = arith.subf %58, %59 : vector<8x1xf32>
    %cst_30 = arith.constant 0.000000e+00 : f32
    %61 = vector.broadcast %cst_30 : f32 to vector<8x1xf32>
    %62 = arith.maximumf %60, %61 : vector<8x1xf32>
    %cst_31 = arith.constant 9.99999974E-6 : f32
    %63 = vector.broadcast %cst_31 : f32 to vector<8x1xf32>
    %64 = arith.addf %62, %63 : vector<8x1xf32>
    %65 = math.rsqrt %64 : vector<8x1xf32>
    %66 = vector.broadcast %53 : vector<8x1xf32> to vector<8x512xf32>
    %67 = arith.subf %49, %66 : vector<8x512xf32>
    %68 = vector.broadcast %65 : vector<8x1xf32> to vector<8x512xf32>
    %69 = arith.mulf %67, %68 : vector<8x512xf32>
    %70 = arith.truncf %69 : vector<8x512xf32> to vector<8x512xbf16>
    %71 = vector.extract_strided_slice %7 {offsets = [0, 0], sizes = [1, 512], strides = [1, 1]} : vector<3x512xbf16> to vector<1x512xbf16>
    %72 = vector.broadcast %71 : vector<1x512xbf16> to vector<8x512xbf16>
    %73 = arith.mulf %70, %72 : vector<8x512xbf16>
    %74 = vector.extract_strided_slice %9 {offsets = [0, 0], sizes = [1, 512], strides = [1, 1]} : vector<3x512xbf16> to vector<1x512xbf16>
    %75 = vector.broadcast %74 : vector<1x512xbf16> to vector<8x512xbf16>
    %76 = arith.addf %73, %75 : vector<8x512xbf16>
    %cst_32 = arith.constant 1.000980e-01 : bf16
    %77 = vector.broadcast %cst_32 : bf16 to vector<8x512xbf16>
    %78 = arith.mulf %77, %76 : vector<8x512xbf16>
    %79 = arith.maximumf %76, %78 : vector<8x512xbf16>
    %cst_33 = arith.constant dense<0.000000e+00> : vector<8x512xf32>
    %80 = tpu.matmul %45, %1, %cst_33 {dimension_numbers = #tpu.dot_dimension_numbers<[1], [0], [0], [1], [0, 0, 1, 1], [], []>} : vector<8x512xbf16>, vector<512x512xbf16>, vector<8x512xf32> -> vector<8x512xf32>
    %81 = vector.extract_strided_slice %4 {offsets = [1, 0], sizes = [1, 512], strides = [1, 1]} : vector<3x512xf32> to vector<1x512xf32>
    %82 = vector.broadcast %81 : vector<1x512xf32> to vector<8x512xf32>
    %83 = arith.addf %80, %82 : vector<8x512xf32>
    %cst_34 = arith.constant dense<0.000000e+00> : vector<8xf32>
    %84 = vector.multi_reduction <add>, %83, %cst_34 [1] : vector<8x512xf32> to vector<8xf32>
    %85 = vector.shape_cast %84 : vector<8xf32> to vector<8x1xf32>
    %cst_35 = arith.constant 0.001953125 : f32
    %86 = vector.broadcast %cst_35 : f32 to vector<8x1xf32>
    %87 = arith.mulf %85, %86 : vector<8x1xf32>
    %88 = arith.mulf %83, %83 : vector<8x512xf32>
    %cst_36 = arith.constant dense<0.000000e+00> : vector<8xf32>
    %89 = vector.multi_reduction <add>, %88, %cst_36 [1] : vector<8x512xf32> to vector<8xf32>
    %90 = vector.shape_cast %89 : vector<8xf32> to vector<8x1xf32>
    %cst_37 = arith.constant 0.001953125 : f32
    %91 = vector.broadcast %cst_37 : f32 to vector<8x1xf32>
    %92 = arith.mulf %90, %91 : vector<8x1xf32>
    %93 = arith.mulf %87, %87 : vector<8x1xf32>
    %94 = arith.subf %92, %93 : vector<8x1xf32>
    %cst_38 = arith.constant 0.000000e+00 : f32
    %95 = vector.broadcast %cst_38 : f32 to vector<8x1xf32>
    %96 = arith.maximumf %94, %95 : vector<8x1xf32>
    %cst_39 = arith.constant 9.99999974E-6 : f32
    %97 = vector.broadcast %cst_39 : f32 to vector<8x1xf32>
    %98 = arith.addf %96, %97 : vector<8x1xf32>
    %99 = math.rsqrt %98 : vector<8x1xf32>
    %100 = vector.broadcast %87 : vector<8x1xf32> to vector<8x512xf32>
    %101 = arith.subf %83, %100 : vector<8x512xf32>
    %102 = vector.broadcast %99 : vector<8x1xf32> to vector<8x512xf32>
    %103 = arith.mulf %101, %102 : vector<8x512xf32>
    %104 = arith.truncf %103 : vector<8x512xf32> to vector<8x512xbf16>
    %105 = vector.extract_strided_slice %7 {offsets = [1, 0], sizes = [1, 512], strides = [1, 1]} : vector<3x512xbf16> to vector<1x512xbf16>
    %106 = vector.broadcast %105 : vector<1x512xbf16> to vector<8x512xbf16>
    %107 = arith.mulf %104, %106 : vector<8x512xbf16>
    %108 = vector.extract_strided_slice %9 {offsets = [1, 0], sizes = [1, 512], strides = [1, 1]} : vector<3x512xbf16> to vector<1x512xbf16>
    %109 = vector.broadcast %108 : vector<1x512xbf16> to vector<8x512xbf16>
    %110 = arith.addf %107, %109 : vector<8x512xbf16>
    %cst_40 = arith.constant 1.000980e-01 : bf16
    %111 = vector.broadcast %cst_40 : bf16 to vector<8x512xbf16>
    %112 = arith.mulf %111, %110 : vector<8x512xbf16>
    %113 = arith.maximumf %110, %112 : vector<8x512xbf16>
    %cst_41 = arith.constant dense<0.000000e+00> : vector<8x512xf32>
    %114 = tpu.matmul %79, %1, %cst_41 {dimension_numbers = #tpu.dot_dimension_numbers<[1], [0], [0], [1], [0, 0, 1, 1], [], []>} : vector<8x512xbf16>, vector<512x512xbf16>, vector<8x512xf32> -> vector<8x512xf32>
    %115 = vector.extract_strided_slice %4 {offsets = [1, 0], sizes = [1, 512], strides = [1, 1]} : vector<3x512xf32> to vector<1x512xf32>
    %116 = vector.broadcast %115 : vector<1x512xf32> to vector<8x512xf32>
    %117 = arith.addf %114, %116 : vector<8x512xf32>
    %cst_42 = arith.constant dense<0.000000e+00> : vector<8xf32>
    %118 = vector.multi_reduction <add>, %117, %cst_42 [1] : vector<8x512xf32> to vector<8xf32>
    %119 = vector.shape_cast %118 : vector<8xf32> to vector<8x1xf32>
    %cst_43 = arith.constant 0.001953125 : f32
    %120 = vector.broadcast %cst_43 : f32 to vector<8x1xf32>
    %121 = arith.mulf %119, %120 : vector<8x1xf32>
    %122 = arith.mulf %117, %117 : vector<8x512xf32>
    %cst_44 = arith.constant dense<0.000000e+00> : vector<8xf32>
    %123 = vector.multi_reduction <add>, %122, %cst_44 [1] : vector<8x512xf32> to vector<8xf32>
    %124 = vector.shape_cast %123 : vector<8xf32> to vector<8x1xf32>
    %cst_45 = arith.constant 0.001953125 : f32
    %125 = vector.broadcast %cst_45 : f32 to vector<8x1xf32>
    %126 = arith.mulf %124, %125 : vector<8x1xf32>
    %127 = arith.mulf %121, %121 : vector<8x1xf32>
    %128 = arith.subf %126, %127 : vector<8x1xf32>
    %cst_46 = arith.constant 0.000000e+00 : f32
    %129 = vector.broadcast %cst_46 : f32 to vector<8x1xf32>
    %130 = arith.maximumf %128, %129 : vector<8x1xf32>
    %cst_47 = arith.constant 9.99999974E-6 : f32
    %131 = vector.broadcast %cst_47 : f32 to vector<8x1xf32>
    %132 = arith.addf %130, %131 : vector<8x1xf32>
    %133 = math.rsqrt %132 : vector<8x1xf32>
    %134 = vector.broadcast %121 : vector<8x1xf32> to vector<8x512xf32>
    %135 = arith.subf %117, %134 : vector<8x512xf32>
    %136 = vector.broadcast %133 : vector<8x1xf32> to vector<8x512xf32>
    %137 = arith.mulf %135, %136 : vector<8x512xf32>
    %138 = arith.truncf %137 : vector<8x512xf32> to vector<8x512xbf16>
    %139 = vector.extract_strided_slice %7 {offsets = [1, 0], sizes = [1, 512], strides = [1, 1]} : vector<3x512xbf16> to vector<1x512xbf16>
    %140 = vector.broadcast %139 : vector<1x512xbf16> to vector<8x512xbf16>
    %141 = arith.mulf %138, %140 : vector<8x512xbf16>
    %142 = vector.extract_strided_slice %9 {offsets = [1, 0], sizes = [1, 512], strides = [1, 1]} : vector<3x512xbf16> to vector<1x512xbf16>
    %143 = vector.broadcast %142 : vector<1x512xbf16> to vector<8x512xbf16>
    %144 = arith.addf %141, %143 : vector<8x512xbf16>
    %cst_48 = arith.constant 1.000980e-01 : bf16
    %145 = vector.broadcast %cst_48 : bf16 to vector<8x512xbf16>
    %146 = arith.mulf %145, %144 : vector<8x512xbf16>
    %147 = arith.maximumf %144, %146 : vector<8x512xbf16>
    %cst_49 = arith.constant dense<0.000000e+00> : vector<8x512xf32>
    %148 = tpu.matmul %113, %2, %cst_49 {dimension_numbers = #tpu.dot_dimension_numbers<[1], [0], [0], [1], [0, 0, 1, 1], [], []>} : vector<8x512xbf16>, vector<512x512xbf16>, vector<8x512xf32> -> vector<8x512xf32>
    %149 = vector.extract_strided_slice %4 {offsets = [2, 0], sizes = [1, 512], strides = [1, 1]} : vector<3x512xf32> to vector<1x512xf32>
    %150 = vector.broadcast %149 : vector<1x512xf32> to vector<8x512xf32>
    %151 = arith.addf %148, %150 : vector<8x512xf32>
    %cst_50 = arith.constant dense<0.000000e+00> : vector<8xf32>
    %152 = vector.multi_reduction <add>, %151, %cst_50 [1] : vector<8x512xf32> to vector<8xf32>
    %153 = vector.shape_cast %152 : vector<8xf32> to vector<8x1xf32>
    %cst_51 = arith.constant 0.001953125 : f32
    %154 = vector.broadcast %cst_51 : f32 to vector<8x1xf32>
    %155 = arith.mulf %153, %154 : vector<8x1xf32>
    %156 = arith.mulf %151, %151 : vector<8x512xf32>
    %cst_52 = arith.constant dense<0.000000e+00> : vector<8xf32>
    %157 = vector.multi_reduction <add>, %156, %cst_52 [1] : vector<8x512xf32> to vector<8xf32>
    %158 = vector.shape_cast %157 : vector<8xf32> to vector<8x1xf32>
    %cst_53 = arith.constant 0.001953125 : f32
    %159 = vector.broadcast %cst_53 : f32 to vector<8x1xf32>
    %160 = arith.mulf %158, %159 : vector<8x1xf32>
    %161 = arith.mulf %155, %155 : vector<8x1xf32>
    %162 = arith.subf %160, %161 : vector<8x1xf32>
    %cst_54 = arith.constant 0.000000e+00 : f32
    %163 = vector.broadcast %cst_54 : f32 to vector<8x1xf32>
    %164 = arith.maximumf %162, %163 : vector<8x1xf32>
    %cst_55 = arith.constant 9.99999974E-6 : f32
    %165 = vector.broadcast %cst_55 : f32 to vector<8x1xf32>
    %166 = arith.addf %164, %165 : vector<8x1xf32>
    %167 = math.rsqrt %166 : vector<8x1xf32>
    %168 = vector.broadcast %155 : vector<8x1xf32> to vector<8x512xf32>
    %169 = arith.subf %151, %168 : vector<8x512xf32>
    %170 = vector.broadcast %167 : vector<8x1xf32> to vector<8x512xf32>
    %171 = arith.mulf %169, %170 : vector<8x512xf32>
    %172 = arith.truncf %171 : vector<8x512xf32> to vector<8x512xbf16>
    %173 = vector.extract_strided_slice %7 {offsets = [2, 0], sizes = [1, 512], strides = [1, 1]} : vector<3x512xbf16> to vector<1x512xbf16>
    %174 = vector.broadcast %173 : vector<1x512xbf16> to vector<8x512xbf16>
    %175 = arith.mulf %172, %174 : vector<8x512xbf16>
    %176 = vector.extract_strided_slice %9 {offsets = [2, 0], sizes = [1, 512], strides = [1, 1]} : vector<3x512xbf16> to vector<1x512xbf16>
    %177 = vector.broadcast %176 : vector<1x512xbf16> to vector<8x512xbf16>
    %178 = arith.addf %175, %177 : vector<8x512xbf16>
    %cst_56 = arith.constant 1.000980e-01 : bf16
    %179 = vector.broadcast %cst_56 : bf16 to vector<8x512xbf16>
    %180 = arith.mulf %179, %178 : vector<8x512xbf16>
    %181 = arith.maximumf %178, %180 : vector<8x512xbf16>
    %cst_57 = arith.constant dense<0.000000e+00> : vector<8x512xf32>
    %182 = tpu.matmul %147, %2, %cst_57 {dimension_numbers = #tpu.dot_dimension_numbers<[1], [0], [0], [1], [0, 0, 1, 1], [], []>} : vector<8x512xbf16>, vector<512x512xbf16>, vector<8x512xf32> -> vector<8x512xf32>
    %183 = vector.extract_strided_slice %4 {offsets = [2, 0], sizes = [1, 512], strides = [1, 1]} : vector<3x512xf32> to vector<1x512xf32>
    %184 = vector.broadcast %183 : vector<1x512xf32> to vector<8x512xf32>
    %185 = arith.addf %182, %184 : vector<8x512xf32>
    %cst_58 = arith.constant dense<0.000000e+00> : vector<8xf32>
    %186 = vector.multi_reduction <add>, %185, %cst_58 [1] : vector<8x512xf32> to vector<8xf32>
    %187 = vector.shape_cast %186 : vector<8xf32> to vector<8x1xf32>
    %cst_59 = arith.constant 0.001953125 : f32
    %188 = vector.broadcast %cst_59 : f32 to vector<8x1xf32>
    %189 = arith.mulf %187, %188 : vector<8x1xf32>
    %190 = arith.mulf %185, %185 : vector<8x512xf32>
    %cst_60 = arith.constant dense<0.000000e+00> : vector<8xf32>
    %191 = vector.multi_reduction <add>, %190, %cst_60 [1] : vector<8x512xf32> to vector<8xf32>
    %192 = vector.shape_cast %191 : vector<8xf32> to vector<8x1xf32>
    %cst_61 = arith.constant 0.001953125 : f32
    %193 = vector.broadcast %cst_61 : f32 to vector<8x1xf32>
    %194 = arith.mulf %192, %193 : vector<8x1xf32>
    %195 = arith.mulf %189, %189 : vector<8x1xf32>
    %196 = arith.subf %194, %195 : vector<8x1xf32>
    %cst_62 = arith.constant 0.000000e+00 : f32
    %197 = vector.broadcast %cst_62 : f32 to vector<8x1xf32>
    %198 = arith.maximumf %196, %197 : vector<8x1xf32>
    %cst_63 = arith.constant 9.99999974E-6 : f32
    %199 = vector.broadcast %cst_63 : f32 to vector<8x1xf32>
    %200 = arith.addf %198, %199 : vector<8x1xf32>
    %201 = math.rsqrt %200 : vector<8x1xf32>
    %202 = vector.broadcast %189 : vector<8x1xf32> to vector<8x512xf32>
    %203 = arith.subf %185, %202 : vector<8x512xf32>
    %204 = vector.broadcast %201 : vector<8x1xf32> to vector<8x512xf32>
    %205 = arith.mulf %203, %204 : vector<8x512xf32>
    %206 = arith.truncf %205 : vector<8x512xf32> to vector<8x512xbf16>
    %207 = vector.extract_strided_slice %7 {offsets = [2, 0], sizes = [1, 512], strides = [1, 1]} : vector<3x512xbf16> to vector<1x512xbf16>
    %208 = vector.broadcast %207 : vector<1x512xbf16> to vector<8x512xbf16>
    %209 = arith.mulf %206, %208 : vector<8x512xbf16>
    %210 = vector.extract_strided_slice %9 {offsets = [2, 0], sizes = [1, 512], strides = [1, 1]} : vector<3x512xbf16> to vector<1x512xbf16>
    %211 = vector.broadcast %210 : vector<1x512xbf16> to vector<8x512xbf16>
    %212 = arith.addf %209, %211 : vector<8x512xbf16>
    %cst_64 = arith.constant 1.000980e-01 : bf16
    %213 = vector.broadcast %cst_64 : bf16 to vector<8x512xbf16>
    %214 = arith.mulf %213, %212 : vector<8x512xbf16>
    %215 = arith.maximumf %212, %214 : vector<8x512xbf16>
    %cst_65 = arith.constant dense<0.000000e+00> : vector<8x128xf32>
    %216 = tpu.matmul %181, %3, %cst_65 {dimension_numbers = #tpu.dot_dimension_numbers<[1], [0], [0], [1], [0, 0, 1, 1], [], []>} : vector<8x512xbf16>, vector<512x128xbf16>, vector<8x128xf32> -> vector<8x128xf32>
    %217 = vector.broadcast %5 : vector<1x128xf32> to vector<8x128xf32>
    %218 = arith.addf %216, %217 : vector<8x128xf32>
    %c0_66 = arith.constant 0 : index
    %c0_67 = arith.constant 0 : index
    %219 = vector.load %arg10[%c0_66, %c0_67] : memref<16x128xf32, #tpu.memory_space<vmem>>, vector<8x128xf32>
    tpu.vector_store %arg10[%c0_66, %c0_67], %218 {strides = array<i32>} : memref<16x128xf32, #tpu.memory_space<vmem>>, vector<8x128xf32>,
    %cst_68 = arith.constant dense<0.000000e+00> : vector<8x128xf32>
    %220 = tpu.matmul %215, %3, %cst_68 {dimension_numbers = #tpu.dot_dimension_numbers<[1], [0], [0], [1], [0, 0, 1, 1], [], []>} : vector<8x512xbf16>, vector<512x128xbf16>, vector<8x128xf32> -> vector<8x128xf32>
    %221 = vector.broadcast %5 : vector<1x128xf32> to vector<8x128xf32>
    %222 = arith.addf %220, %221 : vector<8x128xf32>
    %c8_69 = arith.constant 8 : index
    %c0_70 = arith.constant 0 : index
    %223 = vector.load %arg10[%c8_69, %c0_70] : memref<16x128xf32, #tpu.memory_space<vmem>>, vector<8x128xf32>
    tpu.vector_store %arg10[%c8_69, %c0_70], %222 {strides = array<i32>} : memref<16x128xf32, #tpu.memory_space<vmem>>, vector<8x128xf32>,
    return
  }
  func.func @transform_0(%arg0: i32) -> (i32, i32) {
    %c0_i32 = arith.constant 0 : i32
    %c0_i32_0 = arith.constant 0 : i32
    return %arg0, %c0_i32 : i32, i32
  }
  func.func @transform_1(%arg0: i32) -> (i32, i32) {
    %c0_i32 = arith.constant 0 : i32
    %c0_i32_0 = arith.constant 0 : i32
    %c0_i32_1 = arith.constant 0 : i32
    return %c0_i32, %c0_i32_0 : i32, i32
  }
  func.func @transform_2(%arg0: i32) -> (i32, i32) {
    %c0_i32 = arith.constant 0 : i32
    %c0_i32_0 = arith.constant 0 : i32
    %c0_i32_1 = arith.constant 0 : i32
    return %c0_i32, %c0_i32_0 : i32, i32
  }
  func.func @transform_3(%arg0: i32) -> (i32, i32) {
    %c0_i32 = arith.constant 0 : i32
    %c0_i32_0 = arith.constant 0 : i32
    %c0_i32_1 = arith.constant 0 : i32
    return %c0_i32, %c0_i32_0 : i32, i32
  }
  func.func @transform_4(%arg0: i32) -> (i32, i32) {
    %c0_i32 = arith.constant 0 : i32
    %c0_i32_0 = arith.constant 0 : i32
    %c0_i32_1 = arith.constant 0 : i32
    return %c0_i32, %c0_i32_0 : i32, i32
  }
  func.func @transform_5(%arg0: i32) -> (i32, i32) {
    %c0_i32 = arith.constant 0 : i32
    %c0_i32_0 = arith.constant 0 : i32
    %c0_i32_1 = arith.constant 0 : i32
    return %c0_i32, %c0_i32_0 : i32, i32
  }
  func.func @transform_6(%arg0: i32) -> (i32, i32) {
    %c0_i32 = arith.constant 0 : i32
    %c0_i32_0 = arith.constant 0 : i32
    %c0_i32_1 = arith.constant 0 : i32
    return %c0_i32, %c0_i32_0 : i32, i32
  }
  func.func @transform_7(%arg0: i32) -> (i32, i32) {
    %c0_i32 = arith.constant 0 : i32
    %c0_i32_0 = arith.constant 0 : i32
    %c0_i32_1 = arith.constant 0 : i32
    return %c0_i32, %c0_i32_0 : i32, i32
  }
  func.func @transform_8(%arg0: i32) -> (i32, i32) {
    %c0_i32 = arith.constant 0 : i32
    %c0_i32_0 = arith.constant 0 : i32
    %c0_i32_1 = arith.constant 0 : i32
    return %c0_i32, %c0_i32_0 : i32, i32
  }
  func.func @transform_9(%arg0: i32) -> (i32, i32) {
    %c0_i32 = arith.constant 0 : i32
    %c0_i32_0 = arith.constant 0 : i32
    return %arg0, %c0_i32 : i32, i32
  }
}

</mosaic_0001>

<llo_original>
// kernel: tpu_custom_call.1
$region0: #{tpu_custom_call.1}
  #allocation0 [shape = 'u32[]', space=smem, size = 0x4, offset = 0x4, fixed_abs, tag = 'smem constant byte address 0x4 - core index']
  #allocation1 [shape = 'u32[144,128]{1,0:T(1,128)}', space=vmem, size = 0x12000, scoped, tag = 'internal scratch']
  %s0 = inlined_call_operand.hbm [shape: bf16[16,128], index: 0, kind: input, shape index: {}]
  %s1 = inlined_call_operand.hbm [shape: bf16[128,512], index: 1, kind: input, shape index: {}]
  %s2 = inlined_call_operand.hbm [shape: bf16[512,512], index: 2, kind: input, shape index: {}]
  %s3 = inlined_call_operand.hbm [shape: bf16[512,512], index: 3, kind: input, shape index: {}]
  %s4 = inlined_call_operand.hbm [shape: bf16[512,128], index: 4, kind: input, shape index: {}]
  %s5 = inlined_call_operand.hbm [shape: f32[3,512], index: 5, kind: input, shape index: {}]
  %s6 = inlined_call_operand.hbm [shape: f32[3,512], index: 6, kind: input, shape index: {}]
  %s7 = inlined_call_operand.hbm [shape: f32[3,512], index: 7, kind: input, shape index: {}]
  %s8 = inlined_call_operand.vmem [shape: f32[1,128], index: 8, kind: input, shape index: {}]
  %s9 = inlined_call_operand.hbm [shape: f32[16,128], index: 9, kind: output, shape index: {}]
  %s10 = sld [smem:[#allocation0]]
  $region78: #{tpu_custom_call.1} parent=0
    _
  %s12 = ssub.s32 1, %s10
  %s13 = scalar_select 0, %s12, %s10
  $region1: #{tpu_custom_call.1} parent=0
    #allocation2 [shape = 'u8[4096]{0}', space=vmem, size = 0x1000, scoped, tag = 'input window, operand 0, single buffered']
    #allocation3 [shape = 's32[1]{0}', space=sflag, size = 0x4, scoped, tag = 'scoped memory for tpu_custom_call.1']
    #allocation4 [shape = 's32[1]{0}', space=sflag, size = 0x4, scoped, tag = 'scoped memory for tpu_custom_call.1']
    #allocation5 [shape = 'u8[131072]{0}', space=vmem, size = 0x20000, scoped, tag = 'input window, operand 1, single buffered']
    #allocation6 [shape = 's32[1]{0}', space=sflag, size = 0x4, scoped, tag = 'scoped memory for tpu_custom_call.1']
    #allocation7 [shape = 'u8[524288]{0}', space=vmem, size = 0x80000, scoped, tag = 'input window, operand 2, single buffered']
    #allocation8 [shape = 'u8[524288]{0}', space=vmem, size = 0x80000, scoped, tag = 'input window, operand 3, single buffered']
    #allocation9 [shape = 's32[1]{0}', space=sflag, size = 0x4, scoped, tag = 'scoped memory for tpu_custom_call.1']
    #allocation10 [shape = 'u8[131072]{0}', space=vmem, size = 0x20000, scoped, tag = 'input window, operand 4, single buffered']
    #allocation11 [shape = 'u8[8192]{0}', space=vmem, size = 0x2000, scoped, tag = 'input window, operand 5, single buffered']
    #allocation12 [shape = 's32[1]{0}', space=sflag, size = 0x4, scoped, tag = 'scoped memory for tpu_custom_call.1']
    #allocation13 [shape = 'u8[8192]{0}', space=vmem, size = 0x2000, scoped, tag = 'input window, operand 6, single buffered']
    #allocation14 [shape = 'u8[8192]{0}', space=vmem, size = 0x2000, scoped, tag = 'input window, operand 7, single buffered']
    #allocation15 [shape = 's32[1]{0}', space=sflag, size = 0x4, scoped, tag = 'scoped memory for tpu_custom_call.1']
    #allocation16 [shape = 'u8[8192]{0}', space=vmem, size = 0x2000, scoped, tag = 'output window, operand 0, single buffered']
    %14 = vsyncpa [#allocation3], 0
    %15 = vsyncpa [#allocation6], 0
    %16 = vsyncpa [#allocation9], 0
    %17 = vsyncpa [#allocation12], 0
    %18 = vsyncpa [#allocation15], 0
    %19 = vsyncpa [#allocation4], 0
    // Predicated region
    $region2: #{tpu_custom_call.1} parent=1 // pred_check
      _
    $region3: #{tpu_custom_call.1} parent=1 // pred_check_branch
      %21 = sbr.rel (0) target = $region5
    $region4: #{tpu_custom_call.1} parent=1 // pred_region
      %s23 = ssub.s32 128, 128
      %24 = vsyncadd [#allocation3], %s23
      %s25 = sshll.u32 [#allocation2], 4
      %s26 = int_to_ptr.vmem [resolvable:$true] %s25
      %31 = dma.hbm_to_vmem [thread:$0]  %s0, 128, %s26, [#allocation3], 64, 64, 4
    $region5: #{tpu_custom_call.1} parent=1 // pred_fallthru
      _
    // Predicated region
    $region6: #{tpu_custom_call.1} parent=1 // pred_check
      _
    $region7: #{tpu_custom_call.1} parent=1 // pred_check_branch
      %33 = sbr.rel (0) target = $region9
    $region8: #{tpu_custom_call.1} parent=1 // pred_region
      %s35 = ssub.s32 4096, 4096
      %36 = vsyncadd [#allocation6], %s35
      %s37 = sshll.u32 [#allocation5], 4
      %s38 = int_to_ptr.vmem [resolvable:$true] %s37
      %43 = dma.hbm_to_vmem [thread:$0]  %s1, 4096, %s38, [#allocation6], 256, 256, 16
    $region9: #{tpu_custom_call.1} parent=1 // pred_fallthru
      _
    // Predicated region
    $region10: #{tpu_custom_call.1} parent=1 // pred_check
      _
    $region11: #{tpu_custom_call.1} parent=1 // pred_check_branch
      %45 = sbr.rel (0) target = $region13
    $region12: #{tpu_custom_call.1} parent=1 // pred_region
      %s47 = ssub.s32 16384, 16384
      %48 = vsyncadd [#allocation6], %s47
      %s49 = sshll.u32 [#allocation7], 4
      %s50 = int_to_ptr.vmem [resolvable:$true] %s49
      %55 = dma.hbm_to_vmem [thread:$0]  %s2, 16384, %s50, [#allocation6], 256, 256, 16
    $region13: #{tpu_custom_call.1} parent=1 // pred_fallthru
      _
    // Predicated region
    $region14: #{tpu_custom_call.1} parent=1 // pred_check
      _
    $region15: #{tpu_custom_call.1} parent=1 // pred_check_branch
      %57 = sbr.rel (0) target = $region17
    $region16: #{tpu_custom_call.1} parent=1 // pred_region
      %s59 = ssub.s32 16384, 16384
      %60 = vsyncadd [#allocation9], %s59
      %s61 = sshll.u32 [#allocation8], 4
      %s62 = int_to_ptr.vmem [resolvable:$true] %s61
      %67 = dma.hbm_to_vmem [thread:$0]  %s3, 16384, %s62, [#allocation9], 256, 256, 16
    $region17: #{tpu_custom_call.1} parent=1 // pred_fallthru
      _
    // Predicated region
    $region18: #{tpu_custom_call.1} parent=1 // pred_check
      _
    $region19: #{tpu_custom_call.1} parent=1 // pred_check_branch
      %69 = sbr.rel (0) target = $region21
    $region20: #{tpu_custom_call.1} parent=1 // pred_region
      %s71 = ssub.s32 4096, 4096
      %72 = vsyncadd [#allocation9], %s71
      %s73 = sshll.u32 [#allocation10], 4
      %s74 = int_to_ptr.vmem [resolvable:$true] %s73
      %79 = dma.hbm_to_vmem [thread:$0]  %s4, 4096, %s74, [#allocation9], 64, 64, 4
    $region21: #{tpu_custom_call.1} parent=1 // pred_fallthru
      _
    // Predicated region
    $region22: #{tpu_custom_call.1} parent=1 // pred_check
      _
    $region23: #{tpu_custom_call.1} parent=1 // pred_check_branch
      %81 = sbr.rel (0) target = $region25
    $region24: #{tpu_custom_call.1} parent=1 // pred_region
      %s83 = ssub.s32 256, 256
      %84 = vsyncadd [#allocation12], %s83
      %s86 = sshll.u32 [#allocation11], 4
      %s87 = int_to_ptr.vmem [resolvable:$true] %s86
      %89 = dma.hbm_to_vmem [thread:$0]  %s5, 256, %s87, [#allocation12]
    $region25: #{tpu_custom_call.1} parent=1 // pred_fallthru
      _
    // Predicated region
    $region26: #{tpu_custom_call.1} parent=1 // pred_check
      _
    $region27: #{tpu_custom_call.1} parent=1 // pred_check_branch
      %91 = sbr.rel (0) target = $region29
    $region28: #{tpu_custom_call.1} parent=1 // pred_region
      %s93 = ssub.s32 256, 256
      %94 = vsyncadd [#allocation12], %s93
      %s96 = sshll.u32 [#allocation13], 4
      %s97 = int_to_ptr.vmem [resolvable:$true] %s96
      %99 = dma.hbm_to_vmem [thread:$0]  %s6, 256, %s97, [#allocation12]
    $region29: #{tpu_custom_call.1} parent=1 // pred_fallthru
      _
    // Predicated region
    $region30: #{tpu_custom_call.1} parent=1 // pred_check
      _
    $region31: #{tpu_custom_call.1} parent=1 // pred_check_branch
      %101 = sbr.rel (0) target = $region33
    $region32: #{tpu_custom_call.1} parent=1 // pred_region
      %s103 = ssub.s32 256, 256
      %104 = vsyncadd [#allocation15], %s103
      %s106 = sshll.u32 [#allocation14], 4
      %s107 = int_to_ptr.vmem [resolvable:$true] %s106
      %109 = dma.hbm_to_vmem [thread:$0]  %s7, 256, %s107, [#allocation15]
    $region33: #{tpu_custom_call.1} parent=1 // pred_fallthru
      _
    // Predicated region
    $region34: #{tpu_custom_call.1} parent=1 // pred_check
      _
    $region35: #{tpu_custom_call.1} parent=1 // pred_check_branch
      %111 = sbr.rel (0) target = $region37
    $region36: #{tpu_custom_call.1} parent=1 // pred_region
      _
    $region37: #{tpu_custom_call.1} parent=1 // pred_fallthru
      _
    // Predicated region
    $region38: #{tpu_custom_call.1} parent=1 // pred_check
      _
    $region39: #{tpu_custom_call.1} parent=1 // pred_check_branch
      %113 = sbr.rel (0) target = $region41
    $region40: #{tpu_custom_call.1} parent=1 // pred_region
      %114 = dma.done [#allocation3], 128
    $region41: #{tpu_custom_call.1} parent=1 // pred_fallthru
      _
    // Predicated region
    $region42: #{tpu_custom_call.1} parent=1 // pred_check
      _
    $region43: #{tpu_custom_call.1} parent=1 // pred_check_branch
      %116 = sbr.rel (0) target = $region45
    $region44: #{tpu_custom_call.1} parent=1 // pred_region
      %117 = dma.done [#allocation6], 4096
    $region45: #{tpu_custom_call.1} parent=1 // pred_fallthru
      _
    // Predicated region
    $region46: #{tpu_custom_call.1} parent=1 // pred_check
      _
    $region47: #{tpu_custom_call.1} parent=1 // pred_check_branch
      %119 = sbr.rel (0) target = $region49
    $region48: #{tpu_custom_call.1} parent=1 // pred_region
      %120 = dma.done [#allocation6], 16384
    $region49: #{tpu_custom_call.1} parent=1 // pred_fallthru
      _
    // Predicated region
    $region50: #{tpu_custom_call.1} parent=1 // pred_check
      _
    $region51: #{tpu_custom_call.1} parent=1 // pred_check_branch
      %122 = sbr.rel (0) target = $region53
    $region52: #{tpu_custom_call.1} parent=1 // pred_region
      %123 = dma.done [#allocation9], 16384
    $region53: #{tpu_custom_call.1} parent=1 // pred_fallthru
      _
    // Predicated region
    $region54: #{tpu_custom_call.1} parent=1 // pred_check
      _
    $region55: #{tpu_custom_call.1} parent=1 // pred_check_branch
      %125 = sbr.rel (0) target = $region57
    $region56: #{tpu_custom_call.1} parent=1 // pred_region
      %126 = dma.done [#allocation9], 4096
    $region57: #{tpu_custom_call.1} parent=1 // pred_fallthru
      _
    // Predicated region
    $region58: #{tpu_custom_call.1} parent=1 // pred_check
      _
    $region59: #{tpu_custom_call.1} parent=1 // pred_check_branch
      %128 = sbr.rel (0) target = $region61
    $region60: #{tpu_custom_call.1} parent=1 // pred_region
      %129 = dma.done [#allocation12], 256
    $region61: #{tpu_custom_call.1} parent=1 // pred_fallthru
      _
    // Predicated region
    $region62: #{tpu_custom_call.1} parent=1 // pred_check
      _
    $region63: #{tpu_custom_call.1} parent=1 // pred_check_branch
      %131 = sbr.rel (0) target = $region65
    $region64: #{tpu_custom_call.1} parent=1 // pred_region
      %132 = dma.done [#allocation12], 256
    $region65: #{tpu_custom_call.1} parent=1 // pred_fallthru
      _
    // Predicated region
    $region66: #{tpu_custom_call.1} parent=1 // pred_check
      _
    $region67: #{tpu_custom_call.1} parent=1 // pred_check_branch
      %134 = sbr.rel (0) target = $region69
    $region68: #{tpu_custom_call.1} parent=1 // pred_region
      %135 = dma.done [#allocation15], 256
    $region69: #{tpu_custom_call.1} parent=1 // pred_fallthru
      _
    %v138 = vld [vmem:[#allocation5] sm:$0xff]
    %v139 = vld [vmem:[#allocation5 + $0x8] sm:$0xff]
    %v140 = vld [vmem:[#allocation5 + $0x10] sm:$0xff]
    %v141 = vld [vmem:[#allocation5 + $0x18] sm:$0xff]
    %v142 = vld [vmem:[#allocation5 + $0x20] sm:$0xff]
    %v143 = vld [vmem:[#allocation5 + $0x28] sm:$0xff]
    %v144 = vld [vmem:[#allocation5 + $0x30] sm:$0xff]
    %v145 = vld [vmem:[#allocation5 + $0x38] sm:$0xff]
    %v146 = vld [vmem:[#allocation5 + $0x40] sm:$0xff]
    %v147 = vld [vmem:[#allocation5 + $0x48] sm:$0xff]
    %v148 = vld [vmem:[#allocation5 + $0x50] sm:$0xff]
    %v149 = vld [vmem:[#allocation5 + $0x58] sm:$0xff]
    %v150 = vld [vmem:[#allocation5 + $0x60] sm:$0xff]
    %v151 = vld [vmem:[#allocation5 + $0x68] sm:$0xff]
    %v152 = vld [vmem:[#allocation5 + $0x70] sm:$0xff]
    %v153 = vld [vmem:[#allocation5 + $0x78] sm:$0xff]
    %v154 = vld [vmem:[#allocation5 + $0x80] sm:$0xff]
    %v155 = vld [vmem:[#allocation5 + $0x88] sm:$0xff]
    %v156 = vld [vmem:[#allocation5 + $0x90] sm:$0xff]
    %v157 = vld [vmem:[#allocation5 + $0x98] sm:$0xff]
    %v158 = vld [vmem:[#allocation5 + $0xa0] sm:$0xff]
    %v159 = vld [vmem:[#allocation5 + $0xa8] sm:$0xff]
    %v160 = vld [vmem:[#allocation5 + $0xb0] sm:$0xff]
    %v161 = vld [vmem:[#allocation5 + $0xb8] sm:$0xff]
    %v162 = vld [vmem:[#allocation5 + $0xc0] sm:$0xff]
    %v163 = vld [vmem:[#allocation5 + $0xc8] sm:$0xff]
    %v164 = vld [vmem:[#allocation5 + $0xd0] sm:$0xff]
    %v165 = vld [vmem:[#allocation5 + $0xd8] sm:$0xff]
    %v166 = vld [vmem:[#allocation5 + $0xe0] sm:$0xff]
    %v167 = vld [vmem:[#allocation5 + $0xe8] sm:$0xff]
    %v168 = vld [vmem:[#allocation5 + $0xf0] sm:$0xff]
    %v169 = vld [vmem:[#allocation5 + $0xf8] sm:$0xff]
    %v170 = vld [vmem:[#allocation7] sm:$0xff]
    %v171 = vld [vmem:[#allocation7 + $0x8] sm:$0xff]
    %v172 = vld [vmem:[#allocation7 + $0x10] sm:$0xff]
    %v173 = vld [vmem:[#allocation7 + $0x18] sm:$0xff]
    %v174 = vld [vmem:[#allocation7 + $0x20] sm:$0xff]
    %v175 = vld [vmem:[#allocation7 + $0x28] sm:$0xff]
    %v176 = vld [vmem:[#allocation7 + $0x30] sm:$0xff]
    %v177 = vld [vmem:[#allocation7 + $0x38] sm:$0xff]
    %v178 = vld [vmem:[#allocation7 + $0x40] sm:$0xff]
    %v179 = vld [vmem:[#allocation7 + $0x48] sm:$0xff]
    %v180 = vld [vmem:[#allocation7 + $0x50] sm:$0xff]
    %v181 = vld [vmem:[#allocation7 + $0x58] sm:$0xff]
    %v182 = vld [vmem:[#allocation7 + $0x60] sm:$0xff]
    %v183 = vld [vmem:[#allocation7 + $0x68] sm:$0xff]
    %v184 = vld [vmem:[#allocation7 + $0x70] sm:$0xff]
    %v185 = vld [vmem:[#allocation7 + $0x78] sm:$0xff]
    %v186 = vld [vmem:[#allocation7 + $0x80] sm:$0xff]
    %v187 = vld [vmem:[#allocation7 + $0x88] sm:$0xff]
    %v188 = vld [vmem:[#allocation7 + $0x90] sm:$0xff]
    %v189 = vld [vmem:[#allocation7 + $0x98] sm:$0xff]
    %v190 = vld [vmem:[#allocation7 + $0xa0] sm:$0xff]
    %v191 = vld [vmem:[#allocation7 + $0xa8] sm:$0xff]
    %v192 = vld [vmem:[#allocation7 + $0xb0] sm:$0xff]
    %v193 = vld [vmem:[#allocation7 + $0xb8] sm:$0xff]
    %v194 = vld [vmem:[#allocation7 + $0xc0] sm:$0xff]
    %v195 = vld [vmem:[#allocation7 + $0xc8] sm:$0xff]
    %v196 = vld [vmem:[#allocation7 + $0xd0] sm:$0xff]
    %v197 = vld [vmem:[#allocation7 + $0xd8] sm:$0xff]
    %v198 = vld [vmem:[#allocation7 + $0xe0] sm:$0xff]
    %v199 = vld [vmem:[#allocation7 + $0xe8] sm:$0xff]
    %v200 = vld [vmem:[#allocation7 + $0xf0] sm:$0xff]
    %v201 = vld [vmem:[#allocation7 + $0xf8] sm:$0xff]
    %v202 = vld [vmem:[#allocation7 + $0x100] sm:$0xff]
    %v203 = vld [vmem:[#allocation7 + $0x108] sm:$0xff]
    %v204 = vld [vmem:[#allocation7 + $0x110] sm:$0xff]
    %v205 = vld [vmem:[#allocation7 + $0x118] sm:$0xff]
    %v206 = vld [vmem:[#allocation7 + $0x120] sm:$0xff]
    %v207 = vld [vmem:[#allocation7 + $0x128] sm:$0xff]
    %v208 = vld [vmem:[#allocation7 + $0x130] sm:$0xff]
    %v209 = vld [vmem:[#allocation7 + $0x138] sm:$0xff]
    %v210 = vld [vmem:[#allocation7 + $0x140] sm:$0xff]
    %v211 = vld [vmem:[#allocation7 + $0x148] sm:$0xff]
    %v212 = vld [vmem:[#allocation7 + $0x150] sm:$0xff]
    %v213 = vld [vmem:[#allocation7 + $0x158] sm:$0xff]
    %v214 = vld [vmem:[#allocation7 + $0x160] sm:$0xff]
    %v215 = vld [vmem:[#allocation7 + $0x168] sm:$0xff]
    %v216 = vld [vmem:[#allocation7 + $0x170] sm:$0xff]
    %v217 = vld [vmem:[#allocation7 + $0x178] sm:$0xff]
    %v218 = vld [vmem:[#allocation7 + $0x180] sm:$0xff]
    %v219 = vld [vmem:[#allocation7 + $0x188] sm:$0xff]
    %v220 = vld [vmem:[#allocation7 + $0x190] sm:$0xff]
    %v221 = vld [vmem:[#allocation7 + $0x198] sm:$0xff]
    %v222 = vld [vmem:[#allocation7 + $0x1a0] sm:$0xff]
    %v223 = vld [vmem:[#allocation7 + $0x1a8] sm:$0xff]
    %v224 = vld [vmem:[#allocation7 + $0x1b0] sm:$0xff]
    %v225 = vld [vmem:[#allocation7 + $0x1b8] sm:$0xff]
    %v226 = vld [vmem:[#allocation7 + $0x1c0] sm:$0xff]
    %v227 = vld [vmem:[#allocation7 + $0x1c8] sm:$0xff]
    %v228 = vld [vmem:[#allocation7 + $0x1d0] sm:$0xff]
    %v229 = vld [vmem:[#allocation7 + $0x1d8] sm:$0xff]
    %v230 = vld [vmem:[#allocation7 + $0x1e0] sm:$0xff]
    %v231 = vld [vmem:[#allocation7 + $0x1e8] sm:$0xff]
    %v232 = vld [vmem:[#allocation7 + $0x1f0] sm:$0xff]
    %v233 = vld [vmem:[#allocation7 + $0x1f8] sm:$0xff]
    %v234 = vld [vmem:[#allocation7 + $0x200] sm:$0xff]
    %v235 = vld [vmem:[#allocation7 + $0x208] sm:$0xff]
    %v236 = vld [vmem:[#allocation7 + $0x210] sm:$0xff]
    %v237 = vld [vmem:[#allocation7 + $0x218] sm:$0xff]
    %v238 = vld [vmem:[#allocation7 + $0x220] sm:$0xff]
    %v239 = vld [vmem:[#allocation7 + $0x228] sm:$0xff]
    %v240 = vld [vmem:[#allocation7 + $0x230] sm:$0xff]
    %v241 = vld [vmem:[#allocation7 + $0x238] sm:$0xff]
    %v242 = vld [vmem:[#allocation7 + $0x240] sm:$0xff]
    %v243 = vld [vmem:[#allocation7 + $0x248] sm:$0xff]
    %v244 = vld [vmem:[#allocation7 + $0x250] sm:$0xff]
    %v245 = vld [vmem:[#allocation7 + $0x258] sm:$0xff]
    %v246 = vld [vmem:[#allocation7 + $0x260] sm:$0xff]
    %v247 = vld [vmem:[#allocation7 + $0x268] sm:$0xff]
    %v248 = vld [vmem:[#allocation7 + $0x270] sm:$0xff]
    %v249 = vld [vmem:[#allocation7 + $0x278] sm:$0xff]
    %v250 = vld [vmem:[#allocation7 + $0x280] sm:$0xff]
    %v251 = vld [vmem:[#allocation7 + $0x288] sm:$0xff]
    %v252 = vld [vmem:[#allocation7 + $0x290] sm:$0xff]
    %v253 = vld [vmem:[#allocation7 + $0x298] sm:$0xff]
    %v254 = vld [vmem:[#allocation7 + $0x2a0] sm:$0xff]
    %v255 = vld [vmem:[#allocation7 + $0x2a8] sm:$0xff]
    %v256 = vld [vmem:[#allocation7 + $0x2b0] sm:$0xff]
    %v257 = vld [vmem:[#allocation7 + $0x2b8] sm:$0xff]
    %v258 = vld [vmem:[#allocation7 + $0x2c0] sm:$0xff]
    %v259 = vld [vmem:[#allocation7 + $0x2c8] sm:$0xff]
    %v260 = vld [vmem:[#allocation7 + $0x2d0] sm:$0xff]
    %v261 = vld [vmem:[#allocation7 + $0x2d8] sm:$0xff]
    %v262 = vld [vmem:[#allocation7 + $0x2e0] sm:$0xff]
    %v263 = vld [vmem:[#allocation7 + $0x2e8] sm:$0xff]
    %v264 = vld [vmem:[#allocation7 + $0x2f0] sm:$0xff]
    %v265 = vld [vmem:[#allocation7 + $0x2f8] sm:$0xff]
    %v266 = vld [vmem:[#allocation7 + $0x300] sm:$0xff]
    %v267 = vld [vmem:[#allocation7 + $0x308] sm:$0xff]
    %v268 = vld [vmem:[#allocation7 + $0x310] sm:$0xff]
    %v269 = vld [vmem:[#allocation7 + $0x318] sm:$0xff]
    %v270 = vld [vmem:[#allocation7 + $0x320] sm:$0xff]
    %v271 = vld [vmem:[#allocation7 + $0x328] sm:$0xff]
    %v272 = vld [vmem:[#allocation7 + $0x330] sm:$0xff]
    %v273 = vld [vmem:[#allocation7 + $0x338] sm:$0xff]
    %v274 = vld [vmem:[#allocation7 + $0x340] sm:$0xff]
    %v275 = vld [vmem:[#allocation7 + $0x348] sm:$0xff]
    %v276 = vld [vmem:[#allocation7 + $0x350] sm:$0xff]
    %v277 = vld [vmem:[#allocation7 + $0x358] sm:$0xff]
    %v278 = vld [vmem:[#allocation7 + $0x360] sm:$0xff]
    %v279 = vld [vmem:[#allocation7 + $0x368] sm:$0xff]
    %v280 = vld [vmem:[#allocation7 + $0x370] sm:$0xff]
    %v281 = vld [vmem:[#allocation7 + $0x378] sm:$0xff]
    %v282 = vld [vmem:[#allocation7 + $0x380] sm:$0xff]
    %v283 = vld [vmem:[#allocation7 + $0x388] sm:$0xff]
    %v284 = vld [vmem:[#allocation7 + $0x390] sm:$0xff]
    %v285 = vld [vmem:[#allocation7 + $0x398] sm:$0xff]
    %v286 = vld [vmem:[#allocation7 + $0x3a0] sm:$0xff]
    %v287 = vld [vmem:[#allocation7 + $0x3a8] sm:$0xff]
    %v288 = vld [vmem:[#allocation7 + $0x3b0] sm:$0xff]
    %v289 = vld [vmem:[#allocation7 + $0x3b8] sm:$0xff]
    %v290 = vld [vmem:[#allocation7 + $0x3c0] sm:$0xff]
    %v291 = vld [vmem:[#allocation7 + $0x3c8] sm:$0xff]
    %v292 = vld [vmem:[#allocation7 + $0x3d0] sm:$0xff]
    %v293 = vld [vmem:[#allocation7 + $0x3d8] sm:$0xff]
    %v294 = vld [vmem:[#allocation7 + $0x3e0] sm:$0xff]
    %v295 = vld [vmem:[#allocation7 + $0x3e8] sm:$0xff]
    %v296 = vld [vmem:[#allocation7 + $0x3f0] sm:$0xff]
    %v297 = vld [vmem:[#allocation7 + $0x3f8] sm:$0xff]
    %v298 = vld [vmem:[#allocation8] sm:$0xff]
    %v299 = vld [vmem:[#allocation8 + $0x8] sm:$0xff]
    %v300 = vld [vmem:[#allocation8 + $0x10] sm:$0xff]
    %v301 = vld [vmem:[#allocation8 + $0x18] sm:$0xff]
    %v302 = vld [vmem:[#allocation8 + $0x20] sm:$0xff]
    %v303 = vld [vmem:[#allocation8 + $0x28] sm:$0xff]
    %v304 = vld [vmem:[#allocation8 + $0x30] sm:$0xff]
    %v305 = vld [vmem:[#allocation8 + $0x38] sm:$0xff]
    %v306 = vld [vmem:[#allocation8 + $0x40] sm:$0xff]
    %v307 = vld [vmem:[#allocation8 + $0x48] sm:$0xff]
    %v308 = vld [vmem:[#allocation8 + $0x50] sm:$0xff]
    %v309 = vld [vmem:[#allocation8 + $0x58] sm:$0xff]
    %v310 = vld [vmem:[#allocation8 + $0x60] sm:$0xff]
    %v311 = vld [vmem:[#allocation8 + $0x68] sm:$0xff]
    %v312 = vld [vmem:[#allocation8 + $0x70] sm:$0xff]
    %v313 = vld [vmem:[#allocation8 + $0x78] sm:$0xff]
    %v314 = vld [vmem:[#allocation8 + $0x80] sm:$0xff]
    %v315 = vld [vmem:[#allocation8 + $0x88] sm:$0xff]
    %v316 = vld [vmem:[#allocation8 + $0x90] sm:$0xff]
    %v317 = vld [vmem:[#allocation8 + $0x98] sm:$0xff]
    %v318 = vld [vmem:[#allocation8 + $0xa0] sm:$0xff]
    %v319 = vld [vmem:[#allocation8 + $0xa8] sm:$0xff]
    %v320 = vld [vmem:[#allocation8 + $0xb0] sm:$0xff]
    %v321 = vld [vmem:[#allocation8 + $0xb8] sm:$0xff]
    %v322 = vld [vmem:[#allocation8 + $0xc0] sm:$0xff]
    %v323 = vld [vmem:[#allocation8 + $0xc8] sm:$0xff]
    %v324 = vld [vmem:[#allocation8 + $0xd0] sm:$0xff]
    %v325 = vld [vmem:[#allocation8 + $0xd8] sm:$0xff]
    %v326 = vld [vmem:[#allocation8 + $0xe0] sm:$0xff]
    %v327 = vld [vmem:[#allocation8 + $0xe8] sm:$0xff]
    %v328 = vld [vmem:[#allocation8 + $0xf0] sm:$0xff]
    %v329 = vld [vmem:[#allocation8 + $0xf8] sm:$0xff]
    %v330 = vld [vmem:[#allocation8 + $0x100] sm:$0xff]
    %v331 = vld [vmem:[#allocation8 + $0x108] sm:$0xff]
    %v332 = vld [vmem:[#allocation8 + $0x110] sm:$0xff]
    %v333 = vld [vmem:[#allocation8 + $0x118] sm:$0xff]
    %v334 = vld [vmem:[#allocation8 + $0x120] sm:$0xff]
    %v335 = vld [vmem:[#allocation8 + $0x128] sm:$0xff]
    %v336 = vld [vmem:[#allocation8 + $0x130] sm:$0xff]
    %v337 = vld [vmem:[#allocation8 + $0x138] sm:$0xff]
    %v338 = vld [vmem:[#allocation8 + $0x140] sm:$0xff]
    %v339 = vld [vmem:[#allocation8 + $0x148] sm:$0xff]
    %v340 = vld [vmem:[#allocation8 + $0x150] sm:$0xff]
    %v341 = vld [vmem:[#allocation8 + $0x158] sm:$0xff]
    %v342 = vld [vmem:[#allocation8 + $0x160] sm:$0xff]
    %v343 = vld [vmem:[#allocation8 + $0x168] sm:$0xff]
    %v344 = vld [vmem:[#allocation8 + $0x170] sm:$0xff]
    %v345 = vld [vmem:[#allocation8 + $0x178] sm:$0xff]
    %v346 = vld [vmem:[#allocation8 + $0x180] sm:$0xff]
    %v347 = vld [vmem:[#allocation8 + $0x188] sm:$0xff]
    %v348 = vld [vmem:[#allocation8 + $0x190] sm:$0xff]
    %v349 = vld [vmem:[#allocation8 + $0x198] sm:$0xff]
    %v350 = vld [vmem:[#allocation8 + $0x1a0] sm:$0xff]
    %v351 = vld [vmem:[#allocation8 + $0x1a8] sm:$0xff]
    %v352 = vld [vmem:[#allocation8 + $0x1b0] sm:$0xff]
    %v353 = vld [vmem:[#allocation8 + $0x1b8] sm:$0xff]
    %v354 = vld [vmem:[#allocation8 + $0x1c0] sm:$0xff]
    %v355 = vld [vmem:[#allocation8 + $0x1c8] sm:$0xff]
    %v356 = vld [vmem:[#allocation8 + $0x1d0] sm:$0xff]
    %v357 = vld [vmem:[#allocation8 + $0x1d8] sm:$0xff]
    %v358 = vld [vmem:[#allocation8 + $0x1e0] sm:$0xff]
    %v359 = vld [vmem:[#allocation8 + $0x1e8] sm:$0xff]
    %v360 = vld [vmem:[#allocation8 + $0x1f0] sm:$0xff]
    %v361 = vld [vmem:[#allocation8 + $0x1f8] sm:$0xff]
    %v362 = vld [vmem:[#allocation8 + $0x200] sm:$0xff]
    %v363 = vld [vmem:[#allocation8 + $0x208] sm:$0xff]
    %v364 = vld [vmem:[#allocation8 + $0x210] sm:$0xff]
    %v365 = vld [vmem:[#allocation8 + $0x218] sm:$0xff]
    %v366 = vld [vmem:[#allocation8 + $0x220] sm:$0xff]
    %v367 = vld [vmem:[#allocation8 + $0x228] sm:$0xff]
    %v368 = vld [vmem:[#allocation8 + $0x230] sm:$0xff]
    %v369 = vld [vmem:[#allocation8 + $0x238] sm:$0xff]
    %v370 = vld [vmem:[#allocation8 + $0x240] sm:$0xff]
    %v371 = vld [vmem:[#allocation8 + $0x248] sm:$0xff]
    %v372 = vld [vmem:[#allocation8 + $0x250] sm:$0xff]
    %v373 = vld [vmem:[#allocation8 + $0x258] sm:$0xff]
    %v374 = vld [vmem:[#allocation8 + $0x260] sm:$0xff]
    %v375 = vld [vmem:[#allocation8 + $0x268] sm:$0xff]
    %v376 = vld [vmem:[#allocation8 + $0x270] sm:$0xff]
    %v377 = vld [vmem:[#allocation8 + $0x278] sm:$0xff]
    %v378 = vld [vmem:[#allocation8 + $0x280] sm:$0xff]
    %v379 = vld [vmem:[#allocation8 + $0x288] sm:$0xff]
    %v380 = vld [vmem:[#allocation8 + $0x290] sm:$0xff]
    %v381 = vld [vmem:[#allocation8 + $0x298] sm:$0xff]
    %v382 = vld [vmem:[#allocation8 + $0x2a0] sm:$0xff]
    %v383 = vld [vmem:[#allocation8 + $0x2a8] sm:$0xff]
    %v384 = vld [vmem:[#allocation8 + $0x2b0] sm:$0xff]
    %v385 = vld [vmem:[#allocation8 + $0x2b8] sm:$0xff]
    %v386 = vld [vmem:[#allocation8 + $0x2c0] sm:$0xff]
    %v387 = vld [vmem:[#allocation8 + $0x2c8] sm:$0xff]
    %v388 = vld [vmem:[#allocation8 + $0x2d0] sm:$0xff]
    %v389 = vld [vmem:[#allocation8 + $0x2d8] sm:$0xff]
    %v390 = vld [vmem:[#allocation8 + $0x2e0] sm:$0xff]
    %v391 = vld [vmem:[#allocation8 + $0x2e8] sm:$0xff]
    %v392 = vld [vmem:[#allocation8 + $0x2f0] sm:$0xff]
    %v393 = vld [vmem:[#allocation8 + $0x2f8] sm:$0xff]
    %v394 = vld [vmem:[#allocation8 + $0x300] sm:$0xff]
    %v395 = vld [vmem:[#allocation8 + $0x308] sm:$0xff]
    %v396 = vld [vmem:[#allocation8 + $0x310] sm:$0xff]
    %v397 = vld [vmem:[#allocation8 + $0x318] sm:$0xff]
    %v398 = vld [vmem:[#allocation8 + $0x320] sm:$0xff]
    %v399 = vld [vmem:[#allocation8 + $0x328] sm:$0xff]
    %v400 = vld [vmem:[#allocation8 + $0x330] sm:$0xff]
    %v401 = vld [vmem:[#allocation8 + $0x338] sm:$0xff]
    %v402 = vld [vmem:[#allocation8 + $0x340] sm:$0xff]
    %v403 = vld [vmem:[#allocation8 + $0x348] sm:$0xff]
    %v404 = vld [vmem:[#allocation8 + $0x350] sm:$0xff]
    %v405 = vld [vmem:[#allocation8 + $0x358] sm:$0xff]
    %v406 = vld [vmem:[#allocation8 + $0x360] sm:$0xff]
    %v407 = vld [vmem:[#allocation8 + $0x368] sm:$0xff]
    %v408 = vld [vmem:[#allocation8 + $0x370] sm:$0xff]
    %v409 = vld [vmem:[#allocation8 + $0x378] sm:$0xff]
    %v410 = vld [vmem:[#allocation8 + $0x380] sm:$0xff]
    %v411 = vld [vmem:[#allocation8 + $0x388] sm:$0xff]
    %v412 = vld [vmem:[#allocation8 + $0x390] sm:$0xff]
    %v413 = vld [vmem:[#allocation8 + $0x398] sm:$0xff]
    %v414 = vld [vmem:[#allocation8 + $0x3a0] sm:$0xff]
    %v415 = vld [vmem:[#allocation8 + $0x3a8] sm:$0xff]
    %v416 = vld [vmem:[#allocation8 + $0x3b0] sm:$0xff]
    %v417 = vld [vmem:[#allocation8 + $0x3b8] sm:$0xff]
    %v418 = vld [vmem:[#allocation8 + $0x3c0] sm:$0xff]
    %v419 = vld [vmem:[#allocation8 + $0x3c8] sm:$0xff]
    %v420 = vld [vmem:[#allocation8 + $0x3d0] sm:$0xff]
    %v421 = vld [vmem:[#allocation8 + $0x3d8] sm:$0xff]
    %v422 = vld [vmem:[#allocation8 + $0x3e0] sm:$0xff]
    %v423 = vld [vmem:[#allocation8 + $0x3e8] sm:$0xff]
    %v424 = vld [vmem:[#allocation8 + $0x3f0] sm:$0xff]
    %v425 = vld [vmem:[#allocation8 + $0x3f8] sm:$0xff]
    %v426 = vld [vmem:[#allocation10] sm:$0xf]
    %v427 = vld [vmem:[#allocation10 + $0x4] sm:$0xf]
    %v428 = vld [vmem:[#allocation10 + $0x8] sm:$0xf]
    %v429 = vld [vmem:[#allocation10 + $0xc] sm:$0xf]
    %v430 = vld [vmem:[#allocation10 + $0x10] sm:$0xf]
    %v431 = vld [vmem:[#allocation10 + $0x14] sm:$0xf]
    %v432 = vld [vmem:[#allocation10 + $0x18] sm:$0xf]
    %v433 = vld [vmem:[#allocation10 + $0x1c] sm:$0xf]
    %v434 = vld [vmem:[#allocation10 + $0x20] sm:$0xf]
    %v435 = vld [vmem:[#allocation10 + $0x24] sm:$0xf]
    %v436 = vld [vmem:[#allocation10 + $0x28] sm:$0xf]
    %v437 = vld [vmem:[#allocation10 + $0x2c] sm:$0xf]
    %v438 = vld [vmem:[#allocation10 + $0x30] sm:$0xf]
    %v439 = vld [vmem:[#allocation10 + $0x34] sm:$0xf]
    %v440 = vld [vmem:[#allocation10 + $0x38] sm:$0xf]
    %v441 = vld [vmem:[#allocation10 + $0x3c] sm:$0xf]
    %v442 = vld [vmem:[#allocation10 + $0x40] sm:$0xf]
    %v443 = vld [vmem:[#allocation10 + $0x44] sm:$0xf]
    %v444 = vld [vmem:[#allocation10 + $0x48] sm:$0xf]
    %v445 = vld [vmem:[#allocation10 + $0x4c] sm:$0xf]
    %v446 = vld [vmem:[#allocation10 + $0x50] sm:$0xf]
    %v447 = vld [vmem:[#allocation10 + $0x54] sm:$0xf]
    %v448 = vld [vmem:[#allocation10 + $0x58] sm:$0xf]
    %v449 = vld [vmem:[#allocation10 + $0x5c] sm:$0xf]
    %v450 = vld [vmem:[#allocation10 + $0x60] sm:$0xf]
    %v451 = vld [vmem:[#allocation10 + $0x64] sm:$0xf]
    %v452 = vld [vmem:[#allocation10 + $0x68] sm:$0xf]
    %v453 = vld [vmem:[#allocation10 + $0x6c] sm:$0xf]
    %v454 = vld [vmem:[#allocation10 + $0x70] sm:$0xf]
    %v455 = vld [vmem:[#allocation10 + $0x74] sm:$0xf]
    %v456 = vld [vmem:[#allocation10 + $0x78] sm:$0xf]
    %v457 = vld [vmem:[#allocation10 + $0x7c] sm:$0xf]
    %v458 = vld [vmem:[#allocation10 + $0x80] sm:$0xf]
    %v459 = vld [vmem:[#allocation10 + $0x84] sm:$0xf]
    %v460 = vld [vmem:[#allocation10 + $0x88] sm:$0xf]
    %v461 = vld [vmem:[#allocation10 + $0x8c] sm:$0xf]
    %v462 = vld [vmem:[#allocation10 + $0x90] sm:$0xf]
    %v463 = vld [vmem:[#allocation10 + $0x94] sm:$0xf]
    %v464 = vld [vmem:[#allocation10 + $0x98] sm:$0xf]
    %v465 = vld [vmem:[#allocation10 + $0x9c] sm:$0xf]
    %v466 = vld [vmem:[#allocation10 + $0xa0] sm:$0xf]
    %v467 = vld [vmem:[#allocation10 + $0xa4] sm:$0xf]
    %v468 = vld [vmem:[#allocation10 + $0xa8] sm:$0xf]
    %v469 = vld [vmem:[#allocation10 + $0xac] sm:$0xf]
    %v470 = vld [vmem:[#allocation10 + $0xb0] sm:$0xf]
    %v471 = vld [vmem:[#allocation10 + $0xb4] sm:$0xf]
    %v472 = vld [vmem:[#allocation10 + $0xb8] sm:$0xf]
    %v473 = vld [vmem:[#allocation10 + $0xbc] sm:$0xf]
    %v474 = vld [vmem:[#allocation10 + $0xc0] sm:$0xf]
    %v475 = vld [vmem:[#allocation10 + $0xc4] sm:$0xf]
    %v476 = vld [vmem:[#allocation10 + $0xc8] sm:$0xf]
    %v477 = vld [vmem:[#allocation10 + $0xcc] sm:$0xf]
    %v478 = vld [vmem:[#allocation10 + $0xd0] sm:$0xf]
    %v479 = vld [vmem:[#allocation10 + $0xd4] sm:$0xf]
    %v480 = vld [vmem:[#allocation10 + $0xd8] sm:$0xf]
    %v481 = vld [vmem:[#allocation10 + $0xdc] sm:$0xf]
    %v482 = vld [vmem:[#allocation10 + $0xe0] sm:$0xf]
    %v483 = vld [vmem:[#allocation10 + $0xe4] sm:$0xf]
    %v484 = vld [vmem:[#allocation10 + $0xe8] sm:$0xf]
    %v485 = vld [vmem:[#allocation10 + $0xec] sm:$0xf]
    %v486 = vld [vmem:[#allocation10 + $0xf0] sm:$0xf]
    %v487 = vld [vmem:[#allocation10 + $0xf4] sm:$0xf]
    %v488 = vld [vmem:[#allocation10 + $0xf8] sm:$0xf]
    %v489 = vld [vmem:[#allocation10 + $0xfc] sm:$0xf]
    %v490 = vld [vmem:[#allocation11] sm:$0x77]
    %v491 = vld [vmem:[#allocation11 + $0x8] sm:$0x77]
    %v492 = vld [vmem:[%s8] sm:$0x1]
    %v493 = vld [vmem:[#allocation13] sm:$0x77]
    %v494 = vld [vmem:[#allocation13 + $0x8] sm:$0x77]
    %v497 = vcombine.high %v493, %v493
    %v498 = vcombine.high %v494, %v494
    %v501 = vpack.c.bf16 %v493, %v493
    %v502 = vpack.c.bf16 %v497, %v497
    %v503 = vpack.c.bf16 %v494, %v494
    %v504 = vpack.c.bf16 %v498, %v498
    %v505 = vld [vmem:[#allocation14] sm:$0x77]
    %v506 = vld [vmem:[#allocation14 + $0x8] sm:$0x77]
    %v509 = vcombine.high %v505, %v505
    %v510 = vcombine.high %v506, %v506
    %v513 = vpack.c.bf16 %v505, %v505
    %v514 = vpack.c.bf16 %v509, %v509
    %v515 = vpack.c.bf16 %v506, %v506
    %v516 = vpack.c.bf16 %v510, %v510
    %v517 = vld [vmem:[#allocation2] sm:$0xf]
    %v518 = vld [vmem:[#allocation2 + $0x4] sm:$0xf]
    %v521 = vlaneseq
    %v522 = vshrl.u32 %v521, 7
    %v523 = vsub.s32 0, %v522
    %v524 = vrot.slane %v490, %v523
    %v525 = vlaneseq
    %v526 = vshrl.u32 %v525, 7
    %v527 = vsub.s32 4, %v526
    %v528 = vrot.slane %v490, %v527
    %v529 = vlaneseq
    %v530 = vshrl.u32 %v529, 7
    %v531 = vsub.s32 0, %v530
    %v532 = vrot.slane %v491, %v531
    %v533 = vlaneseq
    %v534 = vshrl.u32 %v533, 7
    %v535 = vsub.s32 4, %v534
    %v536 = vrot.slane %v491, %v535
    %v541 = vlaneseq
    %v542 = vshrl.u32 %v541, 7
    %v543 = vsub.s32 0, %v542
    %v544 = vrot.slane %v524, %v543
    %v545 = vlaneseq
    %v546 = vshrl.u32 %v545, 7
    %v547 = vsub.s32 0, %v546
    %v548 = vrot.slane %v528, %v547
    %v549 = vlaneseq
    %v550 = vshrl.u32 %v549, 7
    %v551 = vsub.s32 0, %v550
    %v552 = vrot.slane %v532, %v551
    %v553 = vlaneseq
    %v554 = vshrl.u32 %v553, 7
    %v555 = vsub.s32 0, %v554
    %v556 = vrot.slane %v536, %v555
    %v589 = vunpack.c.l.b16 %v138
    %v590 = vunpack.c.h.b16 %v138
    %v591 = vunpack.c.l.b16 %v139
    %v592 = vunpack.c.h.b16 %v139
    %v593 = vunpack.c.l.b16 %v140
    %v594 = vunpack.c.h.b16 %v140
    %v595 = vunpack.c.l.b16 %v141
    %v596 = vunpack.c.h.b16 %v141
    %v597 = vunpack.c.l.b16 %v142
    %v598 = vunpack.c.h.b16 %v142
    %v599 = vunpack.c.l.b16 %v143
    %v600 = vunpack.c.h.b16 %v143
    %v601 = vunpack.c.l.b16 %v144
    %v602 = vunpack.c.h.b16 %v144
    %v603 = vunpack.c.l.b16 %v145
    %v604 = vunpack.c.h.b16 %v145
    %v605 = vunpack.c.l.b16 %v146
    %v606 = vunpack.c.h.b16 %v146
    %v607 = vunpack.c.l.b16 %v147
    %v608 = vunpack.c.h.b16 %v147
    %v609 = vunpack.c.l.b16 %v148
    %v610 = vunpack.c.h.b16 %v148
    %v611 = vunpack.c.l.b16 %v149
    %v612 = vunpack.c.h.b16 %v149
    %v613 = vunpack.c.l.b16 %v150
    %v614 = vunpack.c.h.b16 %v150
    %v615 = vunpack.c.l.b16 %v151
    %v616 = vunpack.c.h.b16 %v151
    %v617 = vunpack.c.l.b16 %v152
    %v618 = vunpack.c.h.b16 %v152
    %v619 = vunpack.c.l.b16 %v153
    %v620 = vunpack.c.h.b16 %v153
    %v621 = vunpack.c.l.b16 %v154
    %v622 = vunpack.c.h.b16 %v154
    %v623 = vunpack.c.l.b16 %v155
    %v624 = vunpack.c.h.b16 %v155
    %v625 = vunpack.c.l.b16 %v156
    %v626 = vunpack.c.h.b16 %v156
    %v627 = vunpack.c.l.b16 %v157
    %v628 = vunpack.c.h.b16 %v157
    %v629 = vunpack.c.l.b16 %v158
    %v630 = vunpack.c.h.b16 %v158
    %v631 = vunpack.c.l.b16 %v159
    %v632 = vunpack.c.h.b16 %v159
    %v633 = vunpack.c.l.b16 %v160
    %v634 = vunpack.c.h.b16 %v160
    %v635 = vunpack.c.l.b16 %v161
    %v636 = vunpack.c.h.b16 %v161
    %v637 = vunpack.c.l.b16 %v162
    %v638 = vunpack.c.h.b16 %v162
    %v639 = vunpack.c.l.b16 %v163
    %v640 = vunpack.c.h.b16 %v163
    %v641 = vunpack.c.l.b16 %v164
    %v642 = vunpack.c.h.b16 %v164
    %v643 = vunpack.c.l.b16 %v165
    %v644 = vunpack.c.h.b16 %v165
    %v645 = vunpack.c.l.b16 %v166
    %v646 = vunpack.c.h.b16 %v166
    %v647 = vunpack.c.l.b16 %v167
    %v648 = vunpack.c.h.b16 %v167
    %v649 = vunpack.c.l.b16 %v168
    %v650 = vunpack.c.h.b16 %v168
    %v651 = vunpack.c.l.b16 %v169
    %v652 = vunpack.c.h.b16 %v169
    %v653 = vpack.c.b16 %v593, %v589
    %v654 = vpack.c.b16 %v594, %v590
    %v655 = vpack.c.b16 %v595, %v591
    %v656 = vpack.c.b16 %v596, %v592
    %v657 = vpack.c.b16 %v601, %v597
    %v658 = vpack.c.b16 %v602, %v598
    %v659 = vpack.c.b16 %v603, %v599
    %v660 = vpack.c.b16 %v604, %v600
    %v661 = vpack.c.b16 %v609, %v605
    %v662 = vpack.c.b16 %v610, %v606
    %v663 = vpack.c.b16 %v611, %v607
    %v664 = vpack.c.b16 %v612, %v608
    %v665 = vpack.c.b16 %v617, %v613
    %v666 = vpack.c.b16 %v618, %v614
    %v667 = vpack.c.b16 %v619, %v615
    %v668 = vpack.c.b16 %v620, %v616
    %v669 = vpack.c.b16 %v625, %v621
    %v670 = vpack.c.b16 %v626, %v622
    %v671 = vpack.c.b16 %v627, %v623
    %v672 = vpack.c.b16 %v628, %v624
    %v673 = vpack.c.b16 %v633, %v629
    %v674 = vpack.c.b16 %v634, %v630
    %v675 = vpack.c.b16 %v635, %v631
    %v676 = vpack.c.b16 %v636, %v632
    %v677 = vpack.c.b16 %v641, %v637
    %v678 = vpack.c.b16 %v642, %v638
    %v679 = vpack.c.b16 %v643, %v639
    %v680 = vpack.c.b16 %v644, %v640
    %v681 = vpack.c.b16 %v649, %v645
    %v682 = vpack.c.b16 %v650, %v646
    %v683 = vpack.c.b16 %v651, %v647
    %v684 = vpack.c.b16 %v652, %v648
    %717 = vmatprep.subr.bf16.mxu0 %v682
    %718 = vmatpush1.bf16.msra.mxu0 %v681
    %719 = vmatprep.subr.bf16.mxu0 %v678
    %720 = vmatpush1.bf16.msra.mxu0 %v677
    %721 = vmatprep.subr.bf16.mxu0 %v674
    %722 = vmatpush1.bf16.msra.mxu0 %v673
    %723 = vmatprep.subr.bf16.mxu0 %v670
    %724 = vmatpush1.bf16.msra.mxu0 %v669
    %725 = vmatprep.subr.bf16.mxu0 %v666
    %726 = vmatpush1.bf16.msra.mxu0 %v665
    %727 = vmatprep.subr.bf16.mxu0 %v662
    %728 = vmatpush1.bf16.msra.mxu0 %v661
    %729 = vmatprep.subr.bf16.mxu0 %v658
    %730 = vmatpush1.bf16.msra.mxu0 %v657
    %731 = vmatprep.subr.bf16.mxu0 %v654
    %732 = vmatpush1.bf16.msra.mxu0 %v653
    %733 = vmatprep.subr.bf16.mxu0 0
    %734 = vmatpush2.bf16.msra.mxu0 0
    %735 = vmatprep.subr.bf16.mxu0 0
    %736 = vmatpush2.bf16.msra.mxu0 0
    %737 = vmatprep.subr.bf16.mxu0 0
    %738 = vmatpush2.bf16.msra.mxu0 0
    %739 = vmatprep.subr.bf16.mxu0 0
    %740 = vmatpush2.bf16.msra.mxu0 0
    %741 = vmatprep.subr.bf16.mxu0 0
    %742 = vmatpush2.bf16.msra.mxu0 0
    %743 = vmatprep.subr.bf16.mxu0 0
    %744 = vmatpush2.bf16.msra.mxu0 0
    %745 = vmatprep.subr.bf16.mxu0 0
    %746 = vmatpush2.bf16.msra.mxu0 0
    %747 = vmatprep.subr.bf16.mxu0 0
    %748 = vmatpush2.bf16.msra.mxu0 0
    %749 = vmatprep.mubr.bf16.mxu0 0
    %750 = vmatmul.mubr.bf16.gmra.mxu0 %v517
    %v751 = vpop.f32.mrf.mxu0
    %v752 = vadd.f32 %v544, %v751
    %v753 = vpop.f32.mrf.mxu0
    %v754 = vadd.f32 %v548, %v753
    %v755 = vpop.f32.mrf.mxu0
    %v756 = vpop.f32.mrf.mxu0
    %757 = vdwg.mxu0
    %758 = vmatprep.subr.bf16.mxu0 %v684
    %759 = vmatpush1.bf16.msra.mxu0 %v683
    %760 = vmatprep.subr.bf16.mxu0 %v680
    %761 = vmatpush1.bf16.msra.mxu0 %v679
    %762 = vmatprep.subr.bf16.mxu0 %v676
    %763 = vmatpush1.bf16.msra.mxu0 %v675
    %764 = vmatprep.subr.bf16.mxu0 %v672
    %765 = vmatpush1.bf16.msra.mxu0 %v671
    %766 = vmatprep.subr.bf16.mxu0 %v668
    %767 = vmatpush1.bf16.msra.mxu0 %v667
    %768 = vmatprep.subr.bf16.mxu0 %v664
    %769 = vmatpush1.bf16.msra.mxu0 %v663
    %770 = vmatprep.subr.bf16.mxu0 %v660
    %771 = vmatpush1.bf16.msra.mxu0 %v659
    %772 = vmatprep.subr.bf16.mxu0 %v656
    %773 = vmatpush1.bf16.msra.mxu0 %v655
    %774 = vmatprep.subr.bf16.mxu0 0
    %775 = vmatpush2.bf16.msra.mxu0 0
    %776 = vmatprep.subr.bf16.mxu0 0
    %777 = vmatpush2.bf16.msra.mxu0 0
    %778 = vmatprep.subr.bf16.mxu0 0
    %779 = vmatpush2.bf16.msra.mxu0 0
    %780 = vmatprep.subr.bf16.mxu0 0
    %781 = vmatpush2.bf16.msra.mxu0 0
    %782 = vmatprep.subr.bf16.mxu0 0
    %783 = vmatpush2.bf16.msra.mxu0 0
    %784 = vmatprep.subr.bf16.mxu0 0
    %785 = vmatpush2.bf16.msra.mxu0 0
    %786 = vmatprep.subr.bf16.mxu0 0
    %787 = vmatpush2.bf16.msra.mxu0 0
    %788 = vmatprep.subr.bf16.mxu0 0
    %789 = vmatpush2.bf16.msra.mxu0 0
    %790 = vmatprep.mubr.bf16.mxu0 0
    %791 = vmatmul.mubr.bf16.gmra.mxu0 %v517
    %v792 = vpop.f32.mrf.mxu0
    %v793 = vadd.f32 %v552, %v792
    %v794 = vpop.f32.mrf.mxu0
    %v795 = vadd.f32 %v556, %v794
    %v796 = vpop.f32.mrf.mxu0
    %v797 = vpop.f32.mrf.mxu0
    %798 = vdwg.mxu0
    %v799 = vadd.f32 %v752, %v754
    %v800 = vadd.f32 %v799, %v793
    %v801 = vadd.f32 %v800, %v795
    %802 = vadd.xlane.f32.xlu0 %v801
    %v803 = vpop.xlane.xlu0 %802
    %v804 = vmul.f32 %v803, 0.001953125
    %v805 = vmul.f32 %v752, %v752
    %v806 = vmul.f32 %v754, %v754
    %v807 = vmul.f32 %v793, %v793
    %v808 = vmul.f32 %v795, %v795
    %v809 = vadd.f32 %v805, %v806
    %v810 = vadd.f32 %v809, %v807
    %v811 = vadd.f32 %v810, %v808
    %812 = vadd.xlane.f32.xlu0 %v811
    %v813 = vpop.xlane.xlu0 %812
    %v814 = vmul.f32 %v813, 0.001953125
    %v815 = vmul.f32 %v804, %v804
    %v816 = vsub.f32 %v814, %v815
    %v817 = vmax.f32 %v816, 0.0
    %v818 = vadd.f32 %v817, 1e-05
    %v819 = vrsqrt.pop %v818
    %v820 = vsub.f32 %v752, %v804
    %v821 = vsub.f32 %v754, %v804
    %v822 = vsub.f32 %v793, %v804
    %v823 = vsub.f32 %v795, %v804
    %v824 = vmul.f32 %v820, %v819
    %v825 = vmul.f32 %v821, %v819
    %v826 = vmul.f32 %v822, %v819
    %v827 = vmul.f32 %v823, %v819
    %v828 = vpack.c.bf16 %v824, %v824
    %v829 = vpack.c.bf16 %v825, %v825
    %v830 = vpack.c.bf16 %v826, %v826
    %v831 = vpack.c.bf16 %v827, %v827
    %v833 = vpack.i.b16 %v501, %v501
    %v835 = vlaneseq
    %v836 = vshrl.u32 %v835, 7
    %v837 = vsub.s32 0, %v836
    %v838 = vrot.slane %v833, %v837
    %v840 = vpack.i.b16 %v502, %v502
    %v842 = vlaneseq
    %v843 = vshrl.u32 %v842, 7
    %v844 = vsub.s32 0, %v843
    %v845 = vrot.slane %v840, %v844
    %v847 = vpack.i.b16 %v503, %v503
    %v849 = vlaneseq
    %v850 = vshrl.u32 %v849, 7
    %v851 = vsub.s32 0, %v850
    %v852 = vrot.slane %v847, %v851
    %v854 = vpack.i.b16 %v504, %v504
    %v856 = vlaneseq
    %v857 = vshrl.u32 %v856, 7
    %v858 = vsub.s32 0, %v857
    %v859 = vrot.slane %v854, %v858
    %v860 = vmul.bf16 %v828, %v838
    %v861 = vmul.bf16 %v829, %v845
    %v862 = vmul.bf16 %v830, %v852
    %v863 = vmul.bf16 %v831, %v859
    %v865 = vpack.i.b16 %v513, %v513
    %v867 = vlaneseq
    %v868 = vshrl.u32 %v867, 7
    %v869 = vsub.s32 0, %v868
    %v870 = vrot.slane %v865, %v869
    %v872 = vpack.i.b16 %v514, %v514
    %v874 = vlaneseq
    %v875 = vshrl.u32 %v874, 7
    %v876 = vsub.s32 0, %v875
    %v877 = vrot.slane %v872, %v876
    %v879 = vpack.i.b16 %v515, %v515
    %v881 = vlaneseq
    %v882 = vshrl.u32 %v881, 7
    %v883 = vsub.s32 0, %v882
    %v884 = vrot.slane %v879, %v883
    %v886 = vpack.i.b16 %v516, %v516
    %v888 = vlaneseq
    %v889 = vshrl.u32 %v888, 7
    %v890 = vsub.s32 0, %v889
    %v891 = vrot.slane %v886, %v890
    %v892 = vadd.bf16 %v860, %v870
    %v893 = vadd.bf16 %v861, %v877
    %v894 = vadd.bf16 %v862, %v884
    %v895 = vadd.bf16 %v863, %v891
    %v896 = vmul.bf16 %v892, 1036860877
    %v897 = vmul.bf16 %v893, 1036860877
    %v898 = vmul.bf16 %v894, 1036860877
    %v899 = vmul.bf16 %v895, 1036860877
    %v900 = vmax.bf16 %v892, %v896
    %v901 = vmax.bf16 %v893, %v897
    %v902 = vmax.bf16 %v894, %v898
    %v903 = vmax.bf16 %v895, %v899
    %904 = vmatprep.subr.bf16.mxu0 %v682
    %905 = vmatpush1.bf16.msra.mxu0 %v681
    %906 = vmatprep.subr.bf16.mxu0 %v678
    %907 = vmatpush1.bf16.msra.mxu0 %v677
    %908 = vmatprep.subr.bf16.mxu0 %v674
    %909 = vmatpush1.bf16.msra.mxu0 %v673
    %910 = vmatprep.subr.bf16.mxu0 %v670
    %911 = vmatpush1.bf16.msra.mxu0 %v669
    %912 = vmatprep.subr.bf16.mxu0 %v666
    %913 = vmatpush1.bf16.msra.mxu0 %v665
    %914 = vmatprep.subr.bf16.mxu0 %v662
    %915 = vmatpush1.bf16.msra.mxu0 %v661
    %916 = vmatprep.subr.bf16.mxu0 %v658
    %917 = vmatpush1.bf16.msra.mxu0 %v657
    %918 = vmatprep.subr.bf16.mxu0 %v654
    %919 = vmatpush1.bf16.msra.mxu0 %v653
    %920 = vmatprep.subr.bf16.mxu0 0
    %921 = vmatpush2.bf16.msra.mxu0 0
    %922 = vmatprep.subr.bf16.mxu0 0
    %923 = vmatpush2.bf16.msra.mxu0 0
    %924 = vmatprep.subr.bf16.mxu0 0
    %925 = vmatpush2.bf16.msra.mxu0 0
    %926 = vmatprep.subr.bf16.mxu0 0
    %927 = vmatpush2.bf16.msra.mxu0 0
    %928 = vmatprep.subr.bf16.mxu0 0
    %929 = vmatpush2.bf16.msra.mxu0 0
    %930 = vmatprep.subr.bf16.mxu0 0
    %931 = vmatpush2.bf16.msra.mxu0 0
    %932 = vmatprep.subr.bf16.mxu0 0
    %933 = vmatpush2.bf16.msra.mxu0 0
    %934 = vmatprep.subr.bf16.mxu0 0
    %935 = vmatpush2.bf16.msra.mxu0 0
    %936 = vmatprep.mubr.bf16.mxu0 0
    %937 = vmatmul.mubr.bf16.gmra.mxu0 %v518
    %v938 = vpop.f32.mrf.mxu0
    %v939 = vadd.f32 %v544, %v938
    %v940 = vpop.f32.mrf.mxu0
    %v941 = vadd.f32 %v548, %v940
    %v942 = vpop.f32.mrf.mxu0
    %v943 = vpop.f32.mrf.mxu0
    %944 = vdwg.mxu0
    %945 = vmatprep.subr.bf16.mxu0 %v684
    %946 = vmatpush1.bf16.msra.mxu0 %v683
    %947 = vmatprep.subr.bf16.mxu0 %v680
    %948 = vmatpush1.bf16.msra.mxu0 %v679
    %949 = vmatprep.subr.bf16.mxu0 %v676
    %950 = vmatpush1.bf16.msra.mxu0 %v675
    %951 = vmatprep.subr.bf16.mxu0 %v672
    %952 = vmatpush1.bf16.msra.mxu0 %v671
    %953 = vmatprep.subr.bf16.mxu0 %v668
    %954 = vmatpush1.bf16.msra.mxu0 %v667
    %955 = vmatprep.subr.bf16.mxu0 %v664
    %956 = vmatpush1.bf16.msra.mxu0 %v663
    %957 = vmatprep.subr.bf16.mxu0 %v660
    %958 = vmatpush1.bf16.msra.mxu0 %v659
    %959 = vmatprep.subr.bf16.mxu0 %v656
    %960 = vmatpush1.bf16.msra.mxu0 %v655
    %961 = vmatprep.subr.bf16.mxu0 0
    %962 = vmatpush2.bf16.msra.mxu0 0
    %963 = vmatprep.subr.bf16.mxu0 0
    %964 = vmatpush2.bf16.msra.mxu0 0
    %965 = vmatprep.subr.bf16.mxu0 0
    %966 = vmatpush2.bf16.msra.mxu0 0
    %967 = vmatprep.subr.bf16.mxu0 0
    %968 = vmatpush2.bf16.msra.mxu0 0
    %969 = vmatprep.subr.bf16.mxu0 0
    %970 = vmatpush2.bf16.msra.mxu0 0
    %971 = vmatprep.subr.bf16.mxu0 0
    %972 = vmatpush2.bf16.msra.mxu0 0
    %973 = vmatprep.subr.bf16.mxu0 0
    %974 = vmatpush2.bf16.msra.mxu0 0
    %975 = vmatprep.subr.bf16.mxu0 0
    %976 = vmatpush2.bf16.msra.mxu0 0
    %977 = vmatprep.mubr.bf16.mxu0 0
    %978 = vmatmul.mubr.bf16.gmra.mxu0 %v518
    %v979 = vpop.f32.mrf.mxu0
    %v980 = vadd.f32 %v552, %v979
    %v981 = vpop.f32.mrf.mxu0
    %v982 = vadd.f32 %v556, %v981
    %v983 = vpop.f32.mrf.mxu0
    %v984 = vpop.f32.mrf.mxu0
    %985 = vdwg.mxu0
    %v986 = vadd.f32 %v939, %v941
    %v987 = vadd.f32 %v986, %v980
    %v988 = vadd.f32 %v987, %v982
    %989 = vadd.xlane.f32.xlu0 %v988
    %v990 = vpop.xlane.xlu0 %989
    %v991 = vmul.f32 %v990, 0.001953125
    %v992 = vmul.f32 %v939, %v939
    %v993 = vmul.f32 %v941, %v941
    %v994 = vmul.f32 %v980, %v980
    %v995 = vmul.f32 %v982, %v982
    %v996 = vadd.f32 %v992, %v993
    %v997 = vadd.f32 %v996, %v994
    %v998 = vadd.f32 %v997, %v995
    %999 = vadd.xlane.f32.xlu0 %v998
    %v1000 = vpop.xlane.xlu0 %999
    %v1001 = vmul.f32 %v1000, 0.001953125
    %v1002 = vmul.f32 %v991, %v991
    %v1003 = vsub.f32 %v1001, %v1002
    %v1004 = vmax.f32 %v1003, 0.0
    %v1005 = vadd.f32 %v1004, 1e-05
    %v1006 = vrsqrt.pop %v1005
    %v1007 = vsub.f32 %v939, %v991
    %v1008 = vsub.f32 %v941, %v991
    %v1009 = vsub.f32 %v980, %v991
    %v1010 = vsub.f32 %v982, %v991
    %v1011 = vmul.f32 %v1007, %v1006
    %v1012 = vmul.f32 %v1008, %v1006
    %v1013 = vmul.f32 %v1009, %v1006
    %v1014 = vmul.f32 %v1010, %v1006
    %v1015 = vpack.c.bf16 %v1011, %v1011
    %v1016 = vpack.c.bf16 %v1012, %v1012
    %v1017 = vpack.c.bf16 %v1013, %v1013
    %v1018 = vpack.c.bf16 %v1014, %v1014
    %v1019 = vmul.bf16 %v1015, %v838
    %v1020 = vmul.bf16 %v1016, %v845
    %v1021 = vmul.bf16 %v1017, %v852
    %v1022 = vmul.bf16 %v1018, %v859
    %v1023 = vadd.bf16 %v1019, %v870
    %v1024 = vadd.bf16 %v1020, %v877
    %v1025 = vadd.bf16 %v1021, %v884
    %v1026 = vadd.bf16 %v1022, %v891
    %v1027 = vmul.bf16 %v1023, 1036860877
    %v1028 = vmul.bf16 %v1024, 1036860877
    %v1029 = vmul.bf16 %v1025, 1036860877
    %v1030 = vmul.bf16 %v1026, 1036860877
    %v1031 = vmax.bf16 %v1023, %v1027
    %v1032 = vmax.bf16 %v1024, %v1028
    %v1033 = vmax.bf16 %v1025, %v1029
    %v1034 = vmax.bf16 %v1026, %v1030
    %v1035 = vlaneseq
    %v1036 = vshrl.u32 %v1035, 7
    %v1037 = vsub.s32 1, %v1036
    %v1038 = vrot.slane %v490, %v1037
    %v1039 = vlaneseq
    %v1040 = vshrl.u32 %v1039, 7
    %v1041 = vsub.s32 5, %v1040
    %v1042 = vrot.slane %v490, %v1041
    %v1043 = vlaneseq
    %v1044 = vshrl.u32 %v1043, 7
    %v1045 = vsub.s32 1, %v1044
    %v1046 = vrot.slane %v491, %v1045
    %v1047 = vlaneseq
    %v1048 = vshrl.u32 %v1047, 7
    %v1049 = vsub.s32 5, %v1048
    %v1050 = vrot.slane %v491, %v1049
    %v1055 = vlaneseq
    %v1056 = vshrl.u32 %v1055, 7
    %v1057 = vsub.s32 1, %v1056
    %v1058 = vrot.slane %v1038, %v1057
    %v1059 = vlaneseq
    %v1060 = vshrl.u32 %v1059, 7
    %v1061 = vsub.s32 1, %v1060
    %v1062 = vrot.slane %v1042, %v1061
    %v1063 = vlaneseq
    %v1064 = vshrl.u32 %v1063, 7
    %v1065 = vsub.s32 1, %v1064
    %v1066 = vrot.slane %v1046, %v1065
    %v1067 = vlaneseq
    %v1068 = vshrl.u32 %v1067, 7
    %v1069 = vsub.s32 1, %v1068
    %v1070 = vrot.slane %v1050, %v1069
    %v1199 = vunpack.c.l.b16 %v170
    %v1200 = vunpack.c.h.b16 %v170
    %v1201 = vunpack.c.l.b16 %v171
    %v1202 = vunpack.c.h.b16 %v171
    %v1203 = vunpack.c.l.b16 %v172
    %v1204 = vunpack.c.h.b16 %v172
    %v1205 = vunpack.c.l.b16 %v173
    %v1206 = vunpack.c.h.b16 %v173
    %v1207 = vunpack.c.l.b16 %v174
    %v1208 = vunpack.c.h.b16 %v174
    %v1209 = vunpack.c.l.b16 %v175
    %v1210 = vunpack.c.h.b16 %v175
    %v1211 = vunpack.c.l.b16 %v176
    %v1212 = vunpack.c.h.b16 %v176
    %v1213 = vunpack.c.l.b16 %v177
    %v1214 = vunpack.c.h.b16 %v177
    %v1215 = vunpack.c.l.b16 %v178
    %v1216 = vunpack.c.h.b16 %v178
    %v1217 = vunpack.c.l.b16 %v179
    %v1218 = vunpack.c.h.b16 %v179
    %v1219 = vunpack.c.l.b16 %v180
    %v1220 = vunpack.c.h.b16 %v180
    %v1221 = vunpack.c.l.b16 %v181
    %v1222 = vunpack.c.h.b16 %v181
    %v1223 = vunpack.c.l.b16 %v182
    %v1224 = vunpack.c.h.b16 %v182
    %v1225 = vunpack.c.l.b16 %v183
    %v1226 = vunpack.c.h.b16 %v183
    %v1227 = vunpack.c.l.b16 %v184
    %v1228 = vunpack.c.h.b16 %v184
    %v1229 = vunpack.c.l.b16 %v185
    %v1230 = vunpack.c.h.b16 %v185
    %v1231 = vunpack.c.l.b16 %v186
    %v1232 = vunpack.c.h.b16 %v186
    %v1233 = vunpack.c.l.b16 %v187
    %v1234 = vunpack.c.h.b16 %v187
    %v1235 = vunpack.c.l.b16 %v188
    %v1236 = vunpack.c.h.b16 %v188
    %v1237 = vunpack.c.l.b16 %v189
    %v1238 = vunpack.c.h.b16 %v189
    %v1239 = vunpack.c.l.b16 %v190
    %v1240 = vunpack.c.h.b16 %v190
    %v1241 = vunpack.c.l.b16 %v191
    %v1242 = vunpack.c.h.b16 %v191
    %v1243 = vunpack.c.l.b16 %v192
    %v1244 = vunpack.c.h.b16 %v192
    %v1245 = vunpack.c.l.b16 %v193
    %v1246 = vunpack.c.h.b16 %v193
    %v1247 = vunpack.c.l.b16 %v194
    %v1248 = vunpack.c.h.b16 %v194
    %v1249 = vunpack.c.l.b16 %v195
    %v1250 = vunpack.c.h.b16 %v195
    %v1251 = vunpack.c.l.b16 %v196
    %v1252 = vunpack.c.h.b16 %v196
    %v1253 = vunpack.c.l.b16 %v197
    %v1254 = vunpack.c.h.b16 %v197
    %v1255 = vunpack.c.l.b16 %v198
    %v1256 = vunpack.c.h.b16 %v198
    %v1257 = vunpack.c.l.b16 %v199
    %v1258 = vunpack.c.h.b16 %v199
    %v1259 = vunpack.c.l.b16 %v200
    %v1260 = vunpack.c.h.b16 %v200
    %v1261 = vunpack.c.l.b16 %v201
    %v1262 = vunpack.c.h.b16 %v201
    %v1263 = vunpack.c.l.b16 %v202
    %v1264 = vunpack.c.h.b16 %v202
    %v1265 = vunpack.c.l.b16 %v203
    %v1266 = vunpack.c.h.b16 %v203
    %v1267 = vunpack.c.l.b16 %v204
    %v1268 = vunpack.c.h.b16 %v204
    %v1269 = vunpack.c.l.b16 %v205
    %v1270 = vunpack.c.h.b16 %v205
    %v1271 = vunpack.c.l.b16 %v206
    %v1272 = vunpack.c.h.b16 %v206
    %v1273 = vunpack.c.l.b16 %v207
    %v1274 = vunpack.c.h.b16 %v207
    %v1275 = vunpack.c.l.b16 %v208
    %v1276 = vunpack.c.h.b16 %v208
    %v1277 = vunpack.c.l.b16 %v209
    %v1278 = vunpack.c.h.b16 %v209
    %v1279 = vunpack.c.l.b16 %v210
    %v1280 = vunpack.c.h.b16 %v210
    %v1281 = vunpack.c.l.b16 %v211
    %v1282 = vunpack.c.h.b16 %v211
    %v1283 = vunpack.c.l.b16 %v212
    %v1284 = vunpack.c.h.b16 %v212
    %v1285 = vunpack.c.l.b16 %v213
    %v1286 = vunpack.c.h.b16 %v213
    %v1287 = vunpack.c.l.b16 %v214
    %v1288 = vunpack.c.h.b16 %v214
    %v1289 = vunpack.c.l.b16 %v215
    %v1290 = vunpack.c.h.b16 %v215
    %v1291 = vunpack.c.l.b16 %v216
    %v1292 = vunpack.c.h.b16 %v216
    %v1293 = vunpack.c.l.b16 %v217
    %v1294 = vunpack.c.h.b16 %v217
    %v1295 = vunpack.c.l.b16 %v218
    %v1296 = vunpack.c.h.b16 %v218
    %v1297 = vunpack.c.l.b16 %v219
    %v1298 = vunpack.c.h.b16 %v219
    %v1299 = vunpack.c.l.b16 %v220
    %v1300 = vunpack.c.h.b16 %v220
    %v1301 = vunpack.c.l.b16 %v221
    %v1302 = vunpack.c.h.b16 %v221
    %v1303 = vunpack.c.l.b16 %v222
    %v1304 = vunpack.c.h.b16 %v222
    %v1305 = vunpack.c.l.b16 %v223
    %v1306 = vunpack.c.h.b16 %v223
    %v1307 = vunpack.c.l.b16 %v224
    %v1308 = vunpack.c.h.b16 %v224
    %v1309 = vunpack.c.l.b16 %v225
    %v1310 = vunpack.c.h.b16 %v225
    %v1311 = vunpack.c.l.b16 %v226
    %v1312 = vunpack.c.h.b16 %v226
    %v1313 = vunpack.c.l.b16 %v227
    %v1314 = vunpack.c.h.b16 %v227
    %v1315 = vunpack.c.l.b16 %v228
    %v1316 = vunpack.c.h.b16 %v228
    %v1317 = vunpack.c.l.b16 %v229
    %v1318 = vunpack.c.h.b16 %v229
    %v1319 = vunpack.c.l.b16 %v230
    %v1320 = vunpack.c.h.b16 %v230
    %v1321 = vunpack.c.l.b16 %v231
    %v1322 = vunpack.c.h.b16 %v231
    %v1323 = vunpack.c.l.b16 %v232
    %v1324 = vunpack.c.h.b16 %v232
    %v1325 = vunpack.c.l.b16 %v233
    %v1326 = vunpack.c.h.b16 %v233
    %v1327 = vunpack.c.l.b16 %v234
    %v1328 = vunpack.c.h.b16 %v234
    %v1329 = vunpack.c.l.b16 %v235
    %v1330 = vunpack.c.h.b16 %v235
    %v1331 = vunpack.c.l.b16 %v236
    %v1332 = vunpack.c.h.b16 %v236
    %v1333 = vunpack.c.l.b16 %v237
    %v1334 = vunpack.c.h.b16 %v237
    %v1335 = vunpack.c.l.b16 %v238
    %v1336 = vunpack.c.h.b16 %v238
    %v1337 = vunpack.c.l.b16 %v239
    %v1338 = vunpack.c.h.b16 %v239
    %v1339 = vunpack.c.l.b16 %v240
    %v1340 = vunpack.c.h.b16 %v240
    %v1341 = vunpack.c.l.b16 %v241
    %v1342 = vunpack.c.h.b16 %v241
    %v1343 = vunpack.c.l.b16 %v242
    %v1344 = vunpack.c.h.b16 %v242
    %v1345 = vunpack.c.l.b16 %v243
    %v1346 = vunpack.c.h.b16 %v243
    %v1347 = vunpack.c.l.b16 %v244
    %v1348 = vunpack.c.h.b16 %v244
    %v1349 = vunpack.c.l.b16 %v245
    %v1350 = vunpack.c.h.b16 %v245
    %v1351 = vunpack.c.l.b16 %v246
    %v1352 = vunpack.c.h.b16 %v246
    %v1353 = vunpack.c.l.b16 %v247
    %v1354 = vunpack.c.h.b16 %v247
    %v1355 = vunpack.c.l.b16 %v248
    %v1356 = vunpack.c.h.b16 %v248
    %v1357 = vunpack.c.l.b16 %v249
    %v1358 = vunpack.c.h.b16 %v249
    %v1359 = vunpack.c.l.b16 %v250
    %v1360 = vunpack.c.h.b16 %v250
    %v1361 = vunpack.c.l.b16 %v251
    %v1362 = vunpack.c.h.b16 %v251
    %v1363 = vunpack.c.l.b16 %v252
    %v1364 = vunpack.c.h.b16 %v252
    %v1365 = vunpack.c.l.b16 %v253
    %v1366 = vunpack.c.h.b16 %v253
    %v1367 = vunpack.c.l.b16 %v254
    %v1368 = vunpack.c.h.b16 %v254
    %v1369 = vunpack.c.l.b16 %v255
    %v1370 = vunpack.c.h.b16 %v255
    %v1371 = vunpack.c.l.b16 %v256
    %v1372 = vunpack.c.h.b16 %v256
    %v1373 = vunpack.c.l.b16 %v257
    %v1374 = vunpack.c.h.b16 %v257
    %v1375 = vunpack.c.l.b16 %v258
    %v1376 = vunpack.c.h.b16 %v258
    %v1377 = vunpack.c.l.b16 %v259
    %v1378 = vunpack.c.h.b16 %v259
    %v1379 = vunpack.c.l.b16 %v260
    %v1380 = vunpack.c.h.b16 %v260
    %v1381 = vunpack.c.l.b16 %v261
    %v1382 = vunpack.c.h.b16 %v261
    %v1383 = vunpack.c.l.b16 %v262
    %v1384 = vunpack.c.h.b16 %v262
    %v1385 = vunpack.c.l.b16 %v263
    %v1386 = vunpack.c.h.b16 %v263
    %v1387 = vunpack.c.l.b16 %v264
    %v1388 = vunpack.c.h.b16 %v264
    %v1389 = vunpack.c.l.b16 %v265
    %v1390 = vunpack.c.h.b16 %v265
    %v1391 = vunpack.c.l.b16 %v266
    %v1392 = vunpack.c.h.b16 %v266
    %v1393 = vunpack.c.l.b16 %v267
    %v1394 = vunpack.c.h.b16 %v267
    %v1395 = vunpack.c.l.b16 %v268
    %v1396 = vunpack.c.h.b16 %v268
    %v1397 = vunpack.c.l.b16 %v269
    %v1398 = vunpack.c.h.b16 %v269
    %v1399 = vunpack.c.l.b16 %v270
    %v1400 = vunpack.c.h.b16 %v270
    %v1401 = vunpack.c.l.b16 %v271
    %v1402 = vunpack.c.h.b16 %v271
    %v1403 = vunpack.c.l.b16 %v272
    %v1404 = vunpack.c.h.b16 %v272
    %v1405 = vunpack.c.l.b16 %v273
    %v1406 = vunpack.c.h.b16 %v273
    %v1407 = vunpack.c.l.b16 %v274
    %v1408 = vunpack.c.h.b16 %v274
    %v1409 = vunpack.c.l.b16 %v275
    %v1410 = vunpack.c.h.b16 %v275
    %v1411 = vunpack.c.l.b16 %v276
    %v1412 = vunpack.c.h.b16 %v276
    %v1413 = vunpack.c.l.b16 %v277
    %v1414 = vunpack.c.h.b16 %v277
    %v1415 = vunpack.c.l.b16 %v278
    %v1416 = vunpack.c.h.b16 %v278
    %v1417 = vunpack.c.l.b16 %v279
    %v1418 = vunpack.c.h.b16 %v279
    %v1419 = vunpack.c.l.b16 %v280
    %v1420 = vunpack.c.h.b16 %v280
    %v1421 = vunpack.c.l.b16 %v281
    %v1422 = vunpack.c.h.b16 %v281
    %v1423 = vunpack.c.l.b16 %v282
    %v1424 = vunpack.c.h.b16 %v282
    %v1425 = vunpack.c.l.b16 %v283
    %v1426 = vunpack.c.h.b16 %v283
    %v1427 = vunpack.c.l.b16 %v284
    %v1428 = vunpack.c.h.b16 %v284
    %v1429 = vunpack.c.l.b16 %v285
    %v1430 = vunpack.c.h.b16 %v285
    %v1431 = vunpack.c.l.b16 %v286
    %v1432 = vunpack.c.h.b16 %v286
    %v1433 = vunpack.c.l.b16 %v287
    %v1434 = vunpack.c.h.b16 %v287
    %v1435 = vunpack.c.l.b16 %v288
    %v1436 = vunpack.c.h.b16 %v288
    %v1437 = vunpack.c.l.b16 %v289
    %v1438 = vunpack.c.h.b16 %v289
    %v1439 = vunpack.c.l.b16 %v290
    %v1440 = vunpack.c.h.b16 %v290
    %v1441 = vunpack.c.l.b16 %v291
    %v1442 = vunpack.c.h.b16 %v291
    %v1443 = vunpack.c.l.b16 %v292
    %v1444 = vunpack.c.h.b16 %v292
    %v1445 = vunpack.c.l.b16 %v293
    %v1446 = vunpack.c.h.b16 %v293
    %v1447 = vunpack.c.l.b16 %v294
    %v1448 = vunpack.c.h.b16 %v294
    %v1449 = vunpack.c.l.b16 %v295
    %v1450 = vunpack.c.h.b16 %v295
    %v1451 = vunpack.c.l.b16 %v296
    %v1452 = vunpack.c.h.b16 %v296
    %v1453 = vunpack.c.l.b16 %v297
    %v1454 = vunpack.c.h.b16 %v297
    %v1455 = vpack.c.b16 %v1203, %v1199
    %v1456 = vpack.c.b16 %v1204, %v1200
    %v1457 = vpack.c.b16 %v1205, %v1201
    %v1458 = vpack.c.b16 %v1206, %v1202
    %v1459 = vpack.c.b16 %v1211, %v1207
    %v1460 = vpack.c.b16 %v1212, %v1208
    %v1461 = vpack.c.b16 %v1213, %v1209
    %v1462 = vpack.c.b16 %v1214, %v1210
    %v1463 = vpack.c.b16 %v1219, %v1215
    %v1464 = vpack.c.b16 %v1220, %v1216
    %v1465 = vpack.c.b16 %v1221, %v1217
    %v1466 = vpack.c.b16 %v1222, %v1218
    %v1467 = vpack.c.b16 %v1227, %v1223
    %v1468 = vpack.c.b16 %v1228, %v1224
    %v1469 = vpack.c.b16 %v1229, %v1225
    %v1470 = vpack.c.b16 %v1230, %v1226
    %v1471 = vpack.c.b16 %v1235, %v1231
    %v1472 = vpack.c.b16 %v1236, %v1232
    %v1473 = vpack.c.b16 %v1237, %v1233
    %v1474 = vpack.c.b16 %v1238, %v1234
    %v1475 = vpack.c.b16 %v1243, %v1239
    %v1476 = vpack.c.b16 %v1244, %v1240
    %v1477 = vpack.c.b16 %v1245, %v1241
    %v1478 = vpack.c.b16 %v1246, %v1242
    %v1479 = vpack.c.b16 %v1251, %v1247
    %v1480 = vpack.c.b16 %v1252, %v1248
    %v1481 = vpack.c.b16 %v1253, %v1249
    %v1482 = vpack.c.b16 %v1254, %v1250
    %v1483 = vpack.c.b16 %v1259, %v1255
    %v1484 = vpack.c.b16 %v1260, %v1256
    %v1485 = vpack.c.b16 %v1261, %v1257
    %v1486 = vpack.c.b16 %v1262, %v1258
    %v1487 = vpack.c.b16 %v1267, %v1263
    %v1488 = vpack.c.b16 %v1268, %v1264
    %v1489 = vpack.c.b16 %v1269, %v1265
    %v1490 = vpack.c.b16 %v1270, %v1266
    %v1491 = vpack.c.b16 %v1275, %v1271
    %v1492 = vpack.c.b16 %v1276, %v1272
    %v1493 = vpack.c.b16 %v1277, %v1273
    %v1494 = vpack.c.b16 %v1278, %v1274
    %v1495 = vpack.c.b16 %v1283, %v1279
    %v1496 = vpack.c.b16 %v1284, %v1280
    %v1497 = vpack.c.b16 %v1285, %v1281
    %v1498 = vpack.c.b16 %v1286, %v1282
    %v1499 = vpack.c.b16 %v1291, %v1287
    %v1500 = vpack.c.b16 %v1292, %v1288
    %v1501 = vpack.c.b16 %v1293, %v1289
    %v1502 = vpack.c.b16 %v1294, %v1290
    %v1503 = vpack.c.b16 %v1299, %v1295
    %v1504 = vpack.c.b16 %v1300, %v1296
    %v1505 = vpack.c.b16 %v1301, %v1297
    %v1506 = vpack.c.b16 %v1302, %v1298
    %v1507 = vpack.c.b16 %v1307, %v1303
    %v1508 = vpack.c.b16 %v1308, %v1304
    %v1509 = vpack.c.b16 %v1309, %v1305
    %v1510 = vpack.c.b16 %v1310, %v1306
    %v1511 = vpack.c.b16 %v1315, %v1311
    %v1512 = vpack.c.b16 %v1316, %v1312
    %v1513 = vpack.c.b16 %v1317, %v1313
    %v1514 = vpack.c.b16 %v1318, %v1314
    %v1515 = vpack.c.b16 %v1323, %v1319
    %v1516 = vpack.c.b16 %v1324, %v1320
    %v1517 = vpack.c.b16 %v1325, %v1321
    %v1518 = vpack.c.b16 %v1326, %v1322
    %v1519 = vpack.c.b16 %v1331, %v1327
    %v1520 = vpack.c.b16 %v1332, %v1328
    %v1521 = vpack.c.b16 %v1333, %v1329
    %v1522 = vpack.c.b16 %v1334, %v1330
    %v1523 = vpack.c.b16 %v1339, %v1335
    %v1524 = vpack.c.b16 %v1340, %v1336
    %v1525 = vpack.c.b16 %v1341, %v1337
    %v1526 = vpack.c.b16 %v1342, %v1338
    %v1527 = vpack.c.b16 %v1347, %v1343
    %v1528 = vpack.c.b16 %v1348, %v1344
    %v1529 = vpack.c.b16 %v1349, %v1345
    %v1530 = vpack.c.b16 %v1350, %v1346
    %v1531 = vpack.c.b16 %v1355, %v1351
    %v1532 = vpack.c.b16 %v1356, %v1352
    %v1533 = vpack.c.b16 %v1357, %v1353
    %v1534 = vpack.c.b16 %v1358, %v1354
    %v1535 = vpack.c.b16 %v1363, %v1359
    %v1536 = vpack.c.b16 %v1364, %v1360
    %v1537 = vpack.c.b16 %v1365, %v1361
    %v1538 = vpack.c.b16 %v1366, %v1362
    %v1539 = vpack.c.b16 %v1371, %v1367
    %v1540 = vpack.c.b16 %v1372, %v1368
    %v1541 = vpack.c.b16 %v1373, %v1369
    %v1542 = vpack.c.b16 %v1374, %v1370
    %v1543 = vpack.c.b16 %v1379, %v1375
    %v1544 = vpack.c.b16 %v1380, %v1376
    %v1545 = vpack.c.b16 %v1381, %v1377
    %v1546 = vpack.c.b16 %v1382, %v1378
    %v1547 = vpack.c.b16 %v1387, %v1383
    %v1548 = vpack.c.b16 %v1388, %v1384
    %v1549 = vpack.c.b16 %v1389, %v1385
    %v1550 = vpack.c.b16 %v1390, %v1386
    %v1551 = vpack.c.b16 %v1395, %v1391
    %v1552 = vpack.c.b16 %v1396, %v1392
    %v1553 = vpack.c.b16 %v1397, %v1393
    %v1554 = vpack.c.b16 %v1398, %v1394
    %v1555 = vpack.c.b16 %v1403, %v1399
    %v1556 = vpack.c.b16 %v1404, %v1400
    %v1557 = vpack.c.b16 %v1405, %v1401
    %v1558 = vpack.c.b16 %v1406, %v1402
    %v1559 = vpack.c.b16 %v1411, %v1407
    %v1560 = vpack.c.b16 %v1412, %v1408
    %v1561 = vpack.c.b16 %v1413, %v1409
    %v1562 = vpack.c.b16 %v1414, %v1410
    %v1563 = vpack.c.b16 %v1419, %v1415
    %v1564 = vpack.c.b16 %v1420, %v1416
    %v1565 = vpack.c.b16 %v1421, %v1417
    %v1566 = vpack.c.b16 %v1422, %v1418
    %v1567 = vpack.c.b16 %v1427, %v1423
    %v1568 = vpack.c.b16 %v1428, %v1424
    %v1569 = vpack.c.b16 %v1429, %v1425
    %v1570 = vpack.c.b16 %v1430, %v1426
    %v1571 = vpack.c.b16 %v1435, %v1431
    %v1572 = vpack.c.b16 %v1436, %v1432
    %v1573 = vpack.c.b16 %v1437, %v1433
    %v1574 = vpack.c.b16 %v1438, %v1434
    %v1575 = vpack.c.b16 %v1443, %v1439
    %v1576 = vpack.c.b16 %v1444, %v1440
    %v1577 = vpack.c.b16 %v1445, %v1441
    %v1578 = vpack.c.b16 %v1446, %v1442
    %v1579 = vpack.c.b16 %v1451, %v1447
    %v1580 = vpack.c.b16 %v1452, %v1448
    %v1581 = vpack.c.b16 %v1453, %v1449
    %v1582 = vpack.c.b16 %v1454, %v1450
    %1711 = vmatprep.subr.bf16.mxu0 %v1484
    %1712 = vmatpush1.bf16.msra.mxu0 %v1483
    %1713 = vmatprep.subr.bf16.mxu0 %v1480
    %1714 = vmatpush1.bf16.msra.mxu0 %v1479
    %1715 = vmatprep.subr.bf16.mxu0 %v1476
    %1716 = vmatpush1.bf16.msra.mxu0 %v1475
    %1717 = vmatprep.subr.bf16.mxu0 %v1472
    %1718 = vmatpush1.bf16.msra.mxu0 %v1471
    %1719 = vmatprep.subr.bf16.mxu0 %v1468
    %1720 = vmatpush1.bf16.msra.mxu0 %v1467
    %1721 = vmatprep.subr.bf16.mxu0 %v1464
    %1722 = vmatpush1.bf16.msra.mxu0 %v1463
    %1723 = vmatprep.subr.bf16.mxu0 %v1460
    %1724 = vmatpush1.bf16.msra.mxu0 %v1459
    %1725 = vmatprep.subr.bf16.mxu0 %v1456
    %1726 = vmatpush1.bf16.msra.mxu0 %v1455
    %1727 = vmatprep.subr.bf16.mxu0 %v1516
    %1728 = vmatpush2.bf16.msra.mxu0 %v1515
    %1729 = vmatprep.subr.bf16.mxu0 %v1512
    %1730 = vmatpush2.bf16.msra.mxu0 %v1511
    %1731 = vmatprep.subr.bf16.mxu0 %v1508
    %1732 = vmatpush2.bf16.msra.mxu0 %v1507
    %1733 = vmatprep.subr.bf16.mxu0 %v1504
    %1734 = vmatpush2.bf16.msra.mxu0 %v1503
    %1735 = vmatprep.subr.bf16.mxu0 %v1500
    %1736 = vmatpush2.bf16.msra.mxu0 %v1499
    %1737 = vmatprep.subr.bf16.mxu0 %v1496
    %1738 = vmatpush2.bf16.msra.mxu0 %v1495
    %1739 = vmatprep.subr.bf16.mxu0 %v1492
    %1740 = vmatpush2.bf16.msra.mxu0 %v1491
    %1741 = vmatprep.subr.bf16.mxu0 %v1488
    %1742 = vmatpush2.bf16.msra.mxu0 %v1487
    %1743 = vmatprep.mubr.bf16.mxu0 %v901
    %1744 = vmatmul.mubr.bf16.gmra.mxu0 %v900
    %v1745 = vpop.f32.mrf.mxu0
    %v1746 = vadd.f32 %v1058, %v1745
    %v1747 = vpop.f32.mrf.mxu0
    %v1748 = vadd.f32 %v1062, %v1747
    %v1749 = vpop.f32.mrf.mxu0
    %v1750 = vpop.f32.mrf.mxu0
    %1751 = vdwg.mxu0
    %1752 = vmatprep.subr.bf16.mxu0 %v1548
    %1753 = vmatpush1.bf16.msra.mxu0 %v1547
    %1754 = vmatprep.subr.bf16.mxu0 %v1544
    %1755 = vmatpush1.bf16.msra.mxu0 %v1543
    %1756 = vmatprep.subr.bf16.mxu0 %v1540
    %1757 = vmatpush1.bf16.msra.mxu0 %v1539
    %1758 = vmatprep.subr.bf16.mxu0 %v1536
    %1759 = vmatpush1.bf16.msra.mxu0 %v1535
    %1760 = vmatprep.subr.bf16.mxu0 %v1532
    %1761 = vmatpush1.bf16.msra.mxu0 %v1531
    %1762 = vmatprep.subr.bf16.mxu0 %v1528
    %1763 = vmatpush1.bf16.msra.mxu0 %v1527
    %1764 = vmatprep.subr.bf16.mxu0 %v1524
    %1765 = vmatpush1.bf16.msra.mxu0 %v1523
    %1766 = vmatprep.subr.bf16.mxu0 %v1520
    %1767 = vmatpush1.bf16.msra.mxu0 %v1519
    %1768 = vmatprep.subr.bf16.mxu0 %v1580
    %1769 = vmatpush2.bf16.msra.mxu0 %v1579
    %1770 = vmatprep.subr.bf16.mxu0 %v1576
    %1771 = vmatpush2.bf16.msra.mxu0 %v1575
    %1772 = vmatprep.subr.bf16.mxu0 %v1572
    %1773 = vmatpush2.bf16.msra.mxu0 %v1571
    %1774 = vmatprep.subr.bf16.mxu0 %v1568
    %1775 = vmatpush2.bf16.msra.mxu0 %v1567
    %1776 = vmatprep.subr.bf16.mxu0 %v1564
    %1777 = vmatpush2.bf16.msra.mxu0 %v1563
    %1778 = vmatprep.subr.bf16.mxu0 %v1560
    %1779 = vmatpush2.bf16.msra.mxu0 %v1559
    %1780 = vmatprep.subr.bf16.mxu0 %v1556
    %1781 = vmatpush2.bf16.msra.mxu0 %v1555
    %1782 = vmatprep.subr.bf16.mxu0 %v1552
    %1783 = vmatpush2.bf16.msra.mxu0 %v1551
    %1784 = vmatprep.mubr.bf16.mxu0 %v903
    %1785 = vmatmul.mubr.bf16.gmra.mxu0 %v902
    %v1786 = vpop.f32.mrf.mxu0
    %v1787 = vadd.f32 %v1746, %v1786
    %v1788 = vpop.f32.mrf.mxu0
    %v1789 = vadd.f32 %v1748, %v1788
    %v1790 = vpop.f32.mrf.mxu0
    %v1791 = vpop.f32.mrf.mxu0
    %1792 = vdwg.mxu0
    %1793 = vmatprep.subr.bf16.mxu0 %v1486
    %1794 = vmatpush1.bf16.msra.mxu0 %v1485
    %1795 = vmatprep.subr.bf16.mxu0 %v1482
    %1796 = vmatpush1.bf16.msra.mxu0 %v1481
    %1797 = vmatprep.subr.bf16.mxu0 %v1478
    %1798 = vmatpush1.bf16.msra.mxu0 %v1477
    %1799 = vmatprep.subr.bf16.mxu0 %v1474
    %1800 = vmatpush1.bf16.msra.mxu0 %v1473
    %1801 = vmatprep.subr.bf16.mxu0 %v1470
    %1802 = vmatpush1.bf16.msra.mxu0 %v1469
    %1803 = vmatprep.subr.bf16.mxu0 %v1466
    %1804 = vmatpush1.bf16.msra.mxu0 %v1465
    %1805 = vmatprep.subr.bf16.mxu0 %v1462
    %1806 = vmatpush1.bf16.msra.mxu0 %v1461
    %1807 = vmatprep.subr.bf16.mxu0 %v1458
    %1808 = vmatpush1.bf16.msra.mxu0 %v1457
    %1809 = vmatprep.subr.bf16.mxu0 %v1518
    %1810 = vmatpush2.bf16.msra.mxu0 %v1517
    %1811 = vmatprep.subr.bf16.mxu0 %v1514
    %1812 = vmatpush2.bf16.msra.mxu0 %v1513
    %1813 = vmatprep.subr.bf16.mxu0 %v1510
    %1814 = vmatpush2.bf16.msra.mxu0 %v1509
    %1815 = vmatprep.subr.bf16.mxu0 %v1506
    %1816 = vmatpush2.bf16.msra.mxu0 %v1505
    %1817 = vmatprep.subr.bf16.mxu0 %v1502
    %1818 = vmatpush2.bf16.msra.mxu0 %v1501
    %1819 = vmatprep.subr.bf16.mxu0 %v1498
    %1820 = vmatpush2.bf16.msra.mxu0 %v1497
    %1821 = vmatprep.subr.bf16.mxu0 %v1494
    %1822 = vmatpush2.bf16.msra.mxu0 %v1493
    %1823 = vmatprep.subr.bf16.mxu0 %v1490
    %1824 = vmatpush2.bf16.msra.mxu0 %v1489
    %1825 = vmatprep.mubr.bf16.mxu0 %v901
    %1826 = vmatmul.mubr.bf16.gmra.mxu0 %v900
    %v1827 = vpop.f32.mrf.mxu0
    %v1828 = vadd.f32 %v1066, %v1827
    %v1829 = vpop.f32.mrf.mxu0
    %v1830 = vadd.f32 %v1070, %v1829
    %v1831 = vpop.f32.mrf.mxu0
    %v1832 = vpop.f32.mrf.mxu0
    %1833 = vdwg.mxu0
    %1834 = vmatprep.subr.bf16.mxu0 %v1550
    %1835 = vmatpush1.bf16.msra.mxu0 %v1549
    %1836 = vmatprep.subr.bf16.mxu0 %v1546
    %1837 = vmatpush1.bf16.msra.mxu0 %v1545
    %1838 = vmatprep.subr.bf16.mxu0 %v1542
    %1839 = vmatpush1.bf16.msra.mxu0 %v1541
    %1840 = vmatprep.subr.bf16.mxu0 %v1538
    %1841 = vmatpush1.bf16.msra.mxu0 %v1537
    %1842 = vmatprep.subr.bf16.mxu0 %v1534
    %1843 = vmatpush1.bf16.msra.mxu0 %v1533
    %1844 = vmatprep.subr.bf16.mxu0 %v1530
    %1845 = vmatpush1.bf16.msra.mxu0 %v1529
    %1846 = vmatprep.subr.bf16.mxu0 %v1526
    %1847 = vmatpush1.bf16.msra.mxu0 %v1525
    %1848 = vmatprep.subr.bf16.mxu0 %v1522
    %1849 = vmatpush1.bf16.msra.mxu0 %v1521
    %1850 = vmatprep.subr.bf16.mxu0 %v1582
    %1851 = vmatpush2.bf16.msra.mxu0 %v1581
    %1852 = vmatprep.subr.bf16.mxu0 %v1578
    %1853 = vmatpush2.bf16.msra.mxu0 %v1577
    %1854 = vmatprep.subr.bf16.mxu0 %v1574
    %1855 = vmatpush2.bf16.msra.mxu0 %v1573
    %1856 = vmatprep.subr.bf16.mxu0 %v1570
    %1857 = vmatpush2.bf16.msra.mxu0 %v1569
    %1858 = vmatprep.subr.bf16.mxu0 %v1566
    %1859 = vmatpush2.bf16.msra.mxu0 %v1565
    %1860 = vmatprep.subr.bf16.mxu0 %v1562
    %1861 = vmatpush2.bf16.msra.mxu0 %v1561
    %1862 = vmatprep.subr.bf16.mxu0 %v1558
    %1863 = vmatpush2.bf16.msra.mxu0 %v1557
    %1864 = vmatprep.subr.bf16.mxu0 %v1554
    %1865 = vmatpush2.bf16.msra.mxu0 %v1553
    %1866 = vmatprep.mubr.bf16.mxu0 %v903
    %1867 = vmatmul.mubr.bf16.gmra.mxu0 %v902
    %v1868 = vpop.f32.mrf.mxu0
    %v1869 = vadd.f32 %v1828, %v1868
    %v1870 = vpop.f32.mrf.mxu0
    %v1871 = vadd.f32 %v1830, %v1870
    %v1872 = vpop.f32.mrf.mxu0
    %v1873 = vpop.f32.mrf.mxu0
    %1874 = vdwg.mxu0
    %v1875 = vadd.f32 %v1787, %v1789
    %v1876 = vadd.f32 %v1875, %v1869
    %v1877 = vadd.f32 %v1876, %v1871
    %1878 = vadd.xlane.f32.xlu0 %v1877
    %v1879 = vpop.xlane.xlu0 %1878
    %v1880 = vmul.f32 %v1879, 0.001953125
    %v1881 = vmul.f32 %v1787, %v1787
    %v1882 = vmul.f32 %v1789, %v1789
    %v1883 = vmul.f32 %v1869, %v1869
    %v1884 = vmul.f32 %v1871, %v1871
    %v1885 = vadd.f32 %v1881, %v1882
    %v1886 = vadd.f32 %v1885, %v1883
    %v1887 = vadd.f32 %v1886, %v1884
    %1888 = vadd.xlane.f32.xlu0 %v1887
    %v1889 = vpop.xlane.xlu0 %1888
    %v1890 = vmul.f32 %v1889, 0.001953125
    %v1891 = vmul.f32 %v1880, %v1880
    %v1892 = vsub.f32 %v1890, %v1891
    %v1893 = vmax.f32 %v1892, 0.0
    %v1894 = vadd.f32 %v1893, 1e-05
    %v1895 = vrsqrt.pop %v1894
    %v1896 = vsub.f32 %v1787, %v1880
    %v1897 = vsub.f32 %v1789, %v1880
    %v1898 = vsub.f32 %v1869, %v1880
    %v1899 = vsub.f32 %v1871, %v1880
    %v1900 = vmul.f32 %v1896, %v1895
    %v1901 = vmul.f32 %v1897, %v1895
    %v1902 = vmul.f32 %v1898, %v1895
    %v1903 = vmul.f32 %v1899, %v1895
    %v1904 = vpack.c.bf16 %v1900, %v1900
    %v1905 = vpack.c.bf16 %v1901, %v1901
    %v1906 = vpack.c.bf16 %v1902, %v1902
    %v1907 = vpack.c.bf16 %v1903, %v1903
    %v1908 = vshrl.u32 %v501, 16
    %v1909 = vpack.i.b16 %v1908, %v1908
    %v1911 = vlaneseq
    %v1912 = vshrl.u32 %v1911, 7
    %v1913 = vsub.s32 0, %v1912
    %v1914 = vrot.slane %v1909, %v1913
    %v1915 = vshrl.u32 %v502, 16
    %v1916 = vpack.i.b16 %v1915, %v1915
    %v1918 = vlaneseq
    %v1919 = vshrl.u32 %v1918, 7
    %v1920 = vsub.s32 0, %v1919
    %v1921 = vrot.slane %v1916, %v1920
    %v1922 = vshrl.u32 %v503, 16
    %v1923 = vpack.i.b16 %v1922, %v1922
    %v1925 = vlaneseq
    %v1926 = vshrl.u32 %v1925, 7
    %v1927 = vsub.s32 0, %v1926
    %v1928 = vrot.slane %v1923, %v1927
    %v1929 = vshrl.u32 %v504, 16
    %v1930 = vpack.i.b16 %v1929, %v1929
    %v1932 = vlaneseq
    %v1933 = vshrl.u32 %v1932, 7
    %v1934 = vsub.s32 0, %v1933
    %v1935 = vrot.slane %v1930, %v1934
    %v1936 = vmul.bf16 %v1904, %v1914
    %v1937 = vmul.bf16 %v1905, %v1921
    %v1938 = vmul.bf16 %v1906, %v1928
    %v1939 = vmul.bf16 %v1907, %v1935
    %v1940 = vshrl.u32 %v513, 16
    %v1941 = vpack.i.b16 %v1940, %v1940
    %v1943 = vlaneseq
    %v1944 = vshrl.u32 %v1943, 7
    %v1945 = vsub.s32 0, %v1944
    %v1946 = vrot.slane %v1941, %v1945
    %v1947 = vshrl.u32 %v514, 16
    %v1948 = vpack.i.b16 %v1947, %v1947
    %v1950 = vlaneseq
    %v1951 = vshrl.u32 %v1950, 7
    %v1952 = vsub.s32 0, %v1951
    %v1953 = vrot.slane %v1948, %v1952
    %v1954 = vshrl.u32 %v515, 16
    %v1955 = vpack.i.b16 %v1954, %v1954
    %v1957 = vlaneseq
    %v1958 = vshrl.u32 %v1957, 7
    %v1959 = vsub.s32 0, %v1958
    %v1960 = vrot.slane %v1955, %v1959
    %v1961 = vshrl.u32 %v516, 16
    %v1962 = vpack.i.b16 %v1961, %v1961
    %v1964 = vlaneseq
    %v1965 = vshrl.u32 %v1964, 7
    %v1966 = vsub.s32 0, %v1965
    %v1967 = vrot.slane %v1962, %v1966
    %v1968 = vadd.bf16 %v1936, %v1946
    %v1969 = vadd.bf16 %v1937, %v1953
    %v1970 = vadd.bf16 %v1938, %v1960
    %v1971 = vadd.bf16 %v1939, %v1967
    %v1972 = vmul.bf16 %v1968, 1036860877
    %v1973 = vmul.bf16 %v1969, 1036860877
    %v1974 = vmul.bf16 %v1970, 1036860877
    %v1975 = vmul.bf16 %v1971, 1036860877
    %v1976 = vmax.bf16 %v1968, %v1972
    %v1977 = vmax.bf16 %v1969, %v1973
    %v1978 = vmax.bf16 %v1970, %v1974
    %v1979 = vmax.bf16 %v1971, %v1975
    %1980 = vmatprep.subr.bf16.mxu0 %v1484
    %1981 = vmatpush1.bf16.msra.mxu0 %v1483
    %1982 = vmatprep.subr.bf16.mxu0 %v1480
    %1983 = vmatpush1.bf16.msra.mxu0 %v1479
    %1984 = vmatprep.subr.bf16.mxu0 %v1476
    %1985 = vmatpush1.bf16.msra.mxu0 %v1475
    %1986 = vmatprep.subr.bf16.mxu0 %v1472
    %1987 = vmatpush1.bf16.msra.mxu0 %v1471
    %1988 = vmatprep.subr.bf16.mxu0 %v1468
    %1989 = vmatpush1.bf16.msra.mxu0 %v1467
    %1990 = vmatprep.subr.bf16.mxu0 %v1464
    %1991 = vmatpush1.bf16.msra.mxu0 %v1463
    %1992 = vmatprep.subr.bf16.mxu0 %v1460
    %1993 = vmatpush1.bf16.msra.mxu0 %v1459
    %1994 = vmatprep.subr.bf16.mxu0 %v1456
    %1995 = vmatpush1.bf16.msra.mxu0 %v1455
    %1996 = vmatprep.subr.bf16.mxu0 %v1516
    %1997 = vmatpush2.bf16.msra.mxu0 %v1515
    %1998 = vmatprep.subr.bf16.mxu0 %v1512
    %1999 = vmatpush2.bf16.msra.mxu0 %v1511
    %2000 = vmatprep.subr.bf16.mxu0 %v1508
    %2001 = vmatpush2.bf16.msra.mxu0 %v1507
    %2002 = vmatprep.subr.bf16.mxu0 %v1504
    %2003 = vmatpush2.bf16.msra.mxu0 %v1503
    %2004 = vmatprep.subr.bf16.mxu0 %v1500
    %2005 = vmatpush2.bf16.msra.mxu0 %v1499
    %2006 = vmatprep.subr.bf16.mxu0 %v1496
    %2007 = vmatpush2.bf16.msra.mxu0 %v1495
    %2008 = vmatprep.subr.bf16.mxu0 %v1492
    %2009 = vmatpush2.bf16.msra.mxu0 %v1491
    %2010 = vmatprep.subr.bf16.mxu0 %v1488
    %2011 = vmatpush2.bf16.msra.mxu0 %v1487
    %2012 = vmatprep.mubr.bf16.mxu0 %v1032
    %2013 = vmatmul.mubr.bf16.gmra.mxu0 %v1031
    %v2014 = vpop.f32.mrf.mxu0
    %v2015 = vadd.f32 %v1058, %v2014
    %v2016 = vpop.f32.mrf.mxu0
    %v2017 = vadd.f32 %v1062, %v2016
    %v2018 = vpop.f32.mrf.mxu0
    %v2019 = vpop.f32.mrf.mxu0
    %2020 = vdwg.mxu0
    %2021 = vmatprep.subr.bf16.mxu0 %v1548
    %2022 = vmatpush1.bf16.msra.mxu0 %v1547
    %2023 = vmatprep.subr.bf16.mxu0 %v1544
    %2024 = vmatpush1.bf16.msra.mxu0 %v1543
    %2025 = vmatprep.subr.bf16.mxu0 %v1540
    %2026 = vmatpush1.bf16.msra.mxu0 %v1539
    %2027 = vmatprep.subr.bf16.mxu0 %v1536
    %2028 = vmatpush1.bf16.msra.mxu0 %v1535
    %2029 = vmatprep.subr.bf16.mxu0 %v1532
    %2030 = vmatpush1.bf16.msra.mxu0 %v1531
    %2031 = vmatprep.subr.bf16.mxu0 %v1528
    %2032 = vmatpush1.bf16.msra.mxu0 %v1527
    %2033 = vmatprep.subr.bf16.mxu0 %v1524
    %2034 = vmatpush1.bf16.msra.mxu0 %v1523
    %2035 = vmatprep.subr.bf16.mxu0 %v1520
    %2036 = vmatpush1.bf16.msra.mxu0 %v1519
    %2037 = vmatprep.subr.bf16.mxu0 %v1580
    %2038 = vmatpush2.bf16.msra.mxu0 %v1579
    %2039 = vmatprep.subr.bf16.mxu0 %v1576
    %2040 = vmatpush2.bf16.msra.mxu0 %v1575
    %2041 = vmatprep.subr.bf16.mxu0 %v1572
    %2042 = vmatpush2.bf16.msra.mxu0 %v1571
    %2043 = vmatprep.subr.bf16.mxu0 %v1568
    %2044 = vmatpush2.bf16.msra.mxu0 %v1567
    %2045 = vmatprep.subr.bf16.mxu0 %v1564
    %2046 = vmatpush2.bf16.msra.mxu0 %v1563
    %2047 = vmatprep.subr.bf16.mxu0 %v1560
    %2048 = vmatpush2.bf16.msra.mxu0 %v1559
    %2049 = vmatprep.subr.bf16.mxu0 %v1556
    %2050 = vmatpush2.bf16.msra.mxu0 %v1555
    %2051 = vmatprep.subr.bf16.mxu0 %v1552
    %2052 = vmatpush2.bf16.msra.mxu0 %v1551
    %2053 = vmatprep.mubr.bf16.mxu0 %v1034
    %2054 = vmatmul.mubr.bf16.gmra.mxu0 %v1033
    %v2055 = vpop.f32.mrf.mxu0
    %v2056 = vadd.f32 %v2015, %v2055
    %v2057 = vpop.f32.mrf.mxu0
    %v2058 = vadd.f32 %v2017, %v2057
    %v2059 = vpop.f32.mrf.mxu0
    %v2060 = vpop.f32.mrf.mxu0
    %2061 = vdwg.mxu0
    %2062 = vmatprep.subr.bf16.mxu0 %v1486
    %2063 = vmatpush1.bf16.msra.mxu0 %v1485
    %2064 = vmatprep.subr.bf16.mxu0 %v1482
    %2065 = vmatpush1.bf16.msra.mxu0 %v1481
    %2066 = vmatprep.subr.bf16.mxu0 %v1478
    %2067 = vmatpush1.bf16.msra.mxu0 %v1477
    %2068 = vmatprep.subr.bf16.mxu0 %v1474
    %2069 = vmatpush1.bf16.msra.mxu0 %v1473
    %2070 = vmatprep.subr.bf16.mxu0 %v1470
    %2071 = vmatpush1.bf16.msra.mxu0 %v1469
    %2072 = vmatprep.subr.bf16.mxu0 %v1466
    %2073 = vmatpush1.bf16.msra.mxu0 %v1465
    %2074 = vmatprep.subr.bf16.mxu0 %v1462
    %2075 = vmatpush1.bf16.msra.mxu0 %v1461
    %2076 = vmatprep.subr.bf16.mxu0 %v1458
    %2077 = vmatpush1.bf16.msra.mxu0 %v1457
    %2078 = vmatprep.subr.bf16.mxu0 %v1518
    %2079 = vmatpush2.bf16.msra.mxu0 %v1517
    %2080 = vmatprep.subr.bf16.mxu0 %v1514
    %2081 = vmatpush2.bf16.msra.mxu0 %v1513
    %2082 = vmatprep.subr.bf16.mxu0 %v1510
    %2083 = vmatpush2.bf16.msra.mxu0 %v1509
    %2084 = vmatprep.subr.bf16.mxu0 %v1506
    %2085 = vmatpush2.bf16.msra.mxu0 %v1505
    %2086 = vmatprep.subr.bf16.mxu0 %v1502
    %2087 = vmatpush2.bf16.msra.mxu0 %v1501
    %2088 = vmatprep.subr.bf16.mxu0 %v1498
    %2089 = vmatpush2.bf16.msra.mxu0 %v1497
    %2090 = vmatprep.subr.bf16.mxu0 %v1494
    %2091 = vmatpush2.bf16.msra.mxu0 %v1493
    %2092 = vmatprep.subr.bf16.mxu0 %v1490
    %2093 = vmatpush2.bf16.msra.mxu0 %v1489
    %2094 = vmatprep.mubr.bf16.mxu0 %v1032
    %2095 = vmatmul.mubr.bf16.gmra.mxu0 %v1031
    %v2096 = vpop.f32.mrf.mxu0
    %v2097 = vadd.f32 %v1066, %v2096
    %v2098 = vpop.f32.mrf.mxu0
    %v2099 = vadd.f32 %v1070, %v2098
    %v2100 = vpop.f32.mrf.mxu0
    %v2101 = vpop.f32.mrf.mxu0
    %2102 = vdwg.mxu0
    %2103 = vmatprep.subr.bf16.mxu0 %v1550
    %2104 = vmatpush1.bf16.msra.mxu0 %v1549
    %2105 = vmatprep.subr.bf16.mxu0 %v1546
    %2106 = vmatpush1.bf16.msra.mxu0 %v1545
    %2107 = vmatprep.subr.bf16.mxu0 %v1542
    %2108 = vmatpush1.bf16.msra.mxu0 %v1541
    %2109 = vmatprep.subr.bf16.mxu0 %v1538
    %2110 = vmatpush1.bf16.msra.mxu0 %v1537
    %2111 = vmatprep.subr.bf16.mxu0 %v1534
    %2112 = vmatpush1.bf16.msra.mxu0 %v1533
    %2113 = vmatprep.subr.bf16.mxu0 %v1530
    %2114 = vmatpush1.bf16.msra.mxu0 %v1529
    %2115 = vmatprep.subr.bf16.mxu0 %v1526
    %2116 = vmatpush1.bf16.msra.mxu0 %v1525
    %2117 = vmatprep.subr.bf16.mxu0 %v1522
    %2118 = vmatpush1.bf16.msra.mxu0 %v1521
    %2119 = vmatprep.subr.bf16.mxu0 %v1582
    %2120 = vmatpush2.bf16.msra.mxu0 %v1581
    %2121 = vmatprep.subr.bf16.mxu0 %v1578
    %2122 = vmatpush2.bf16.msra.mxu0 %v1577
    %2123 = vmatprep.subr.bf16.mxu0 %v1574
    %2124 = vmatpush2.bf16.msra.mxu0 %v1573
    %2125 = vmatprep.subr.bf16.mxu0 %v1570
    %2126 = vmatpush2.bf16.msra.mxu0 %v1569
    %2127 = vmatprep.subr.bf16.mxu0 %v1566
    %2128 = vmatpush2.bf16.msra.mxu0 %v1565
    %2129 = vmatprep.subr.bf16.mxu0 %v1562
    %2130 = vmatpush2.bf16.msra.mxu0 %v1561
    %2131 = vmatprep.subr.bf16.mxu0 %v1558
    %2132 = vmatpush2.bf16.msra.mxu0 %v1557
    %2133 = vmatprep.subr.bf16.mxu0 %v1554
    %2134 = vmatpush2.bf16.msra.mxu0 %v1553
    %2135 = vmatprep.mubr.bf16.mxu0 %v1034
    %2136 = vmatmul.mubr.bf16.gmra.mxu0 %v1033
    %v2137 = vpop.f32.mrf.mxu0
    %v2138 = vadd.f32 %v2097, %v2137
    %v2139 = vpop.f32.mrf.mxu0
    %v2140 = vadd.f32 %v2099, %v2139
    %v2141 = vpop.f32.mrf.mxu0
    %v2142 = vpop.f32.mrf.mxu0
    %2143 = vdwg.mxu0
    %v2144 = vadd.f32 %v2056, %v2058
    %v2145 = vadd.f32 %v2144, %v2138
    %v2146 = vadd.f32 %v2145, %v2140
    %2147 = vadd.xlane.f32.xlu0 %v2146
    %v2148 = vpop.xlane.xlu0 %2147
    %v2149 = vmul.f32 %v2148, 0.001953125
    %v2150 = vmul.f32 %v2056, %v2056
    %v2151 = vmul.f32 %v2058, %v2058
    %v2152 = vmul.f32 %v2138, %v2138
    %v2153 = vmul.f32 %v2140, %v2140
    %v2154 = vadd.f32 %v2150, %v2151
    %v2155 = vadd.f32 %v2154, %v2152
    %v2156 = vadd.f32 %v2155, %v2153
    %2157 = vadd.xlane.f32.xlu0 %v2156
    %v2158 = vpop.xlane.xlu0 %2157
    %v2159 = vmul.f32 %v2158, 0.001953125
    %v2160 = vmul.f32 %v2149, %v2149
    %v2161 = vsub.f32 %v2159, %v2160
    %v2162 = vmax.f32 %v2161, 0.0
    %v2163 = vadd.f32 %v2162, 1e-05
    %v2164 = vrsqrt.pop %v2163
    %v2165 = vsub.f32 %v2056, %v2149
    %v2166 = vsub.f32 %v2058, %v2149
    %v2167 = vsub.f32 %v2138, %v2149
    %v2168 = vsub.f32 %v2140, %v2149
    %v2169 = vmul.f32 %v2165, %v2164
    %v2170 = vmul.f32 %v2166, %v2164
    %v2171 = vmul.f32 %v2167, %v2164
    %v2172 = vmul.f32 %v2168, %v2164
    %v2173 = vpack.c.bf16 %v2169, %v2169
    %v2174 = vpack.c.bf16 %v2170, %v2170
    %v2175 = vpack.c.bf16 %v2171, %v2171
    %v2176 = vpack.c.bf16 %v2172, %v2172
    %v2177 = vmul.bf16 %v2173, %v1914
    %v2178 = vmul.bf16 %v2174, %v1921
    %v2179 = vmul.bf16 %v2175, %v1928
    %v2180 = vmul.bf16 %v2176, %v1935
    %v2181 = vadd.bf16 %v2177, %v1946
    %v2182 = vadd.bf16 %v2178, %v1953
    %v2183 = vadd.bf16 %v2179, %v1960
    %v2184 = vadd.bf16 %v2180, %v1967
    %v2185 = vmul.bf16 %v2181, 1036860877
    %v2186 = vmul.bf16 %v2182, 1036860877
    %v2187 = vmul.bf16 %v2183, 1036860877
    %v2188 = vmul.bf16 %v2184, 1036860877
    %v2189 = vmax.bf16 %v2181, %v2185
    %v2190 = vmax.bf16 %v2182, %v2186
    %v2191 = vmax.bf16 %v2183, %v2187
    %v2192 = vmax.bf16 %v2184, %v2188
    %v2193 = vlaneseq
    %v2194 = vshrl.u32 %v2193, 7
    %v2195 = vsub.s32 2, %v2194
    %v2196 = vrot.slane %v490, %v2195
    %v2197 = vlaneseq
    %v2198 = vshrl.u32 %v2197, 7
    %v2199 = vsub.s32 6, %v2198
    %v2200 = vrot.slane %v490, %v2199
    %v2201 = vlaneseq
    %v2202 = vshrl.u32 %v2201, 7
    %v2203 = vsub.s32 2, %v2202
    %v2204 = vrot.slane %v491, %v2203
    %v2205 = vlaneseq
    %v2206 = vshrl.u32 %v2205, 7
    %v2207 = vsub.s32 6, %v2206
    %v2208 = vrot.slane %v491, %v2207
    %v2213 = vlaneseq
    %v2214 = vshrl.u32 %v2213, 7
    %v2215 = vsub.s32 2, %v2214
    %v2216 = vrot.slane %v2196, %v2215
    %v2217 = vlaneseq
    %v2218 = vshrl.u32 %v2217, 7
    %v2219 = vsub.s32 2, %v2218
    %v2220 = vrot.slane %v2200, %v2219
    %v2221 = vlaneseq
    %v2222 = vshrl.u32 %v2221, 7
    %v2223 = vsub.s32 2, %v2222
    %v2224 = vrot.slane %v2204, %v2223
    %v2225 = vlaneseq
    %v2226 = vshrl.u32 %v2225, 7
    %v2227 = vsub.s32 2, %v2226
    %v2228 = vrot.slane %v2208, %v2227
    %v2357 = vunpack.c.l.b16 %v298
    %v2358 = vunpack.c.h.b16 %v298
    %v2359 = vunpack.c.l.b16 %v299
    %v2360 = vunpack.c.h.b16 %v299
    %v2361 = vunpack.c.l.b16 %v300
    %v2362 = vunpack.c.h.b16 %v300
    %v2363 = vunpack.c.l.b16 %v301
    %v2364 = vunpack.c.h.b16 %v301
    %v2365 = vunpack.c.l.b16 %v302
    %v2366 = vunpack.c.h.b16 %v302
    %v2367 = vunpack.c.l.b16 %v303
    %v2368 = vunpack.c.h.b16 %v303
    %v2369 = vunpack.c.l.b16 %v304
    %v2370 = vunpack.c.h.b16 %v304
    %v2371 = vunpack.c.l.b16 %v305
    %v2372 = vunpack.c.h.b16 %v305
    %v2373 = vunpack.c.l.b16 %v306
    %v2374 = vunpack.c.h.b16 %v306
    %v2375 = vunpack.c.l.b16 %v307
    %v2376 = vunpack.c.h.b16 %v307
    %v2377 = vunpack.c.l.b16 %v308
    %v2378 = vunpack.c.h.b16 %v308
    %v2379 = vunpack.c.l.b16 %v309
    %v2380 = vunpack.c.h.b16 %v309
    %v2381 = vunpack.c.l.b16 %v310
    %v2382 = vunpack.c.h.b16 %v310
    %v2383 = vunpack.c.l.b16 %v311
    %v2384 = vunpack.c.h.b16 %v311
    %v2385 = vunpack.c.l.b16 %v312
    %v2386 = vunpack.c.h.b16 %v312
    %v2387 = vunpack.c.l.b16 %v313
    %v2388 = vunpack.c.h.b16 %v313
    %v2389 = vunpack.c.l.b16 %v314
    %v2390 = vunpack.c.h.b16 %v314
    %v2391 = vunpack.c.l.b16 %v315
    %v2392 = vunpack.c.h.b16 %v315
    %v2393 = vunpack.c.l.b16 %v316
    %v2394 = vunpack.c.h.b16 %v316
    %v2395 = vunpack.c.l.b16 %v317
    %v2396 = vunpack.c.h.b16 %v317
    %v2397 = vunpack.c.l.b16 %v318
    %v2398 = vunpack.c.h.b16 %v318
    %v2399 = vunpack.c.l.b16 %v319
    %v2400 = vunpack.c.h.b16 %v319
    %v2401 = vunpack.c.l.b16 %v320
    %v2402 = vunpack.c.h.b16 %v320
    %v2403 = vunpack.c.l.b16 %v321
    %v2404 = vunpack.c.h.b16 %v321
    %v2405 = vunpack.c.l.b16 %v322
    %v2406 = vunpack.c.h.b16 %v322
    %v2407 = vunpack.c.l.b16 %v323
    %v2408 = vunpack.c.h.b16 %v323
    %v2409 = vunpack.c.l.b16 %v324
    %v2410 = vunpack.c.h.b16 %v324
    %v2411 = vunpack.c.l.b16 %v325
    %v2412 = vunpack.c.h.b16 %v325
    %v2413 = vunpack.c.l.b16 %v326
    %v2414 = vunpack.c.h.b16 %v326
    %v2415 = vunpack.c.l.b16 %v327
    %v2416 = vunpack.c.h.b16 %v327
    %v2417 = vunpack.c.l.b16 %v328
    %v2418 = vunpack.c.h.b16 %v328
    %v2419 = vunpack.c.l.b16 %v329
    %v2420 = vunpack.c.h.b16 %v329
    %v2421 = vunpack.c.l.b16 %v330
    %v2422 = vunpack.c.h.b16 %v330
    %v2423 = vunpack.c.l.b16 %v331
    %v2424 = vunpack.c.h.b16 %v331
    %v2425 = vunpack.c.l.b16 %v332
    %v2426 = vunpack.c.h.b16 %v332
    %v2427 = vunpack.c.l.b16 %v333
    %v2428 = vunpack.c.h.b16 %v333
    %v2429 = vunpack.c.l.b16 %v334
    %v2430 = vunpack.c.h.b16 %v334
    %v2431 = vunpack.c.l.b16 %v335
    %v2432 = vunpack.c.h.b16 %v335
    %v2433 = vunpack.c.l.b16 %v336
    %v2434 = vunpack.c.h.b16 %v336
    %v2435 = vunpack.c.l.b16 %v337
    %v2436 = vunpack.c.h.b16 %v337
    %v2437 = vunpack.c.l.b16 %v338
    %v2438 = vunpack.c.h.b16 %v338
    %v2439 = vunpack.c.l.b16 %v339
    %v2440 = vunpack.c.h.b16 %v339
    %v2441 = vunpack.c.l.b16 %v340
    %v2442 = vunpack.c.h.b16 %v340
    %v2443 = vunpack.c.l.b16 %v341
    %v2444 = vunpack.c.h.b16 %v341
    %v2445 = vunpack.c.l.b16 %v342
    %v2446 = vunpack.c.h.b16 %v342
    %v2447 = vunpack.c.l.b16 %v343
    %v2448 = vunpack.c.h.b16 %v343
    %v2449 = vunpack.c.l.b16 %v344
    %v2450 = vunpack.c.h.b16 %v344
    %v2451 = vunpack.c.l.b16 %v345
    %v2452 = vunpack.c.h.b16 %v345
    %v2453 = vunpack.c.l.b16 %v346
    %v2454 = vunpack.c.h.b16 %v346
    %v2455 = vunpack.c.l.b16 %v347
    %v2456 = vunpack.c.h.b16 %v347
    %v2457 = vunpack.c.l.b16 %v348
    %v2458 = vunpack.c.h.b16 %v348
    %v2459 = vunpack.c.l.b16 %v349
    %v2460 = vunpack.c.h.b16 %v349
    %v2461 = vunpack.c.l.b16 %v350
    %v2462 = vunpack.c.h.b16 %v350
    %v2463 = vunpack.c.l.b16 %v351
    %v2464 = vunpack.c.h.b16 %v351
    %v2465 = vunpack.c.l.b16 %v352
    %v2466 = vunpack.c.h.b16 %v352
    %v2467 = vunpack.c.l.b16 %v353
    %v2468 = vunpack.c.h.b16 %v353
    %v2469 = vunpack.c.l.b16 %v354
    %v2470 = vunpack.c.h.b16 %v354
    %v2471 = vunpack.c.l.b16 %v355
    %v2472 = vunpack.c.h.b16 %v355
    %v2473 = vunpack.c.l.b16 %v356
    %v2474 = vunpack.c.h.b16 %v356
    %v2475 = vunpack.c.l.b16 %v357
    %v2476 = vunpack.c.h.b16 %v357
    %v2477 = vunpack.c.l.b16 %v358
    %v2478 = vunpack.c.h.b16 %v358
    %v2479 = vunpack.c.l.b16 %v359
    %v2480 = vunpack.c.h.b16 %v359
    %v2481 = vunpack.c.l.b16 %v360
    %v2482 = vunpack.c.h.b16 %v360
    %v2483 = vunpack.c.l.b16 %v361
    %v2484 = vunpack.c.h.b16 %v361
    %v2485 = vunpack.c.l.b16 %v362
    %v2486 = vunpack.c.h.b16 %v362
    %v2487 = vunpack.c.l.b16 %v363
    %v2488 = vunpack.c.h.b16 %v363
    %v2489 = vunpack.c.l.b16 %v364
    %v2490 = vunpack.c.h.b16 %v364
    %v2491 = vunpack.c.l.b16 %v365
    %v2492 = vunpack.c.h.b16 %v365
    %v2493 = vunpack.c.l.b16 %v366
    %v2494 = vunpack.c.h.b16 %v366
    %v2495 = vunpack.c.l.b16 %v367
    %v2496 = vunpack.c.h.b16 %v367
    %v2497 = vunpack.c.l.b16 %v368
    %v2498 = vunpack.c.h.b16 %v368
    %v2499 = vunpack.c.l.b16 %v369
    %v2500 = vunpack.c.h.b16 %v369
    %v2501 = vunpack.c.l.b16 %v370
    %v2502 = vunpack.c.h.b16 %v370
    %v2503 = vunpack.c.l.b16 %v371
    %v2504 = vunpack.c.h.b16 %v371
    %v2505 = vunpack.c.l.b16 %v372
    %v2506 = vunpack.c.h.b16 %v372
    %v2507 = vunpack.c.l.b16 %v373
    %v2508 = vunpack.c.h.b16 %v373
    %v2509 = vunpack.c.l.b16 %v374
    %v2510 = vunpack.c.h.b16 %v374
    %v2511 = vunpack.c.l.b16 %v375
    %v2512 = vunpack.c.h.b16 %v375
    %v2513 = vunpack.c.l.b16 %v376
    %v2514 = vunpack.c.h.b16 %v376
    %v2515 = vunpack.c.l.b16 %v377
    %v2516 = vunpack.c.h.b16 %v377
    %v2517 = vunpack.c.l.b16 %v378
    %v2518 = vunpack.c.h.b16 %v378
    %v2519 = vunpack.c.l.b16 %v379
    %v2520 = vunpack.c.h.b16 %v379
    %v2521 = vunpack.c.l.b16 %v380
    %v2522 = vunpack.c.h.b16 %v380
    %v2523 = vunpack.c.l.b16 %v381
    %v2524 = vunpack.c.h.b16 %v381
    %v2525 = vunpack.c.l.b16 %v382
    %v2526 = vunpack.c.h.b16 %v382
    %v2527 = vunpack.c.l.b16 %v383
    %v2528 = vunpack.c.h.b16 %v383
    %v2529 = vunpack.c.l.b16 %v384
    %v2530 = vunpack.c.h.b16 %v384
    %v2531 = vunpack.c.l.b16 %v385
    %v2532 = vunpack.c.h.b16 %v385
    %v2533 = vunpack.c.l.b16 %v386
    %v2534 = vunpack.c.h.b16 %v386
    %v2535 = vunpack.c.l.b16 %v387
    %v2536 = vunpack.c.h.b16 %v387
    %v2537 = vunpack.c.l.b16 %v388
    %v2538 = vunpack.c.h.b16 %v388
    %v2539 = vunpack.c.l.b16 %v389
    %v2540 = vunpack.c.h.b16 %v389
    %v2541 = vunpack.c.l.b16 %v390
    %v2542 = vunpack.c.h.b16 %v390
    %v2543 = vunpack.c.l.b16 %v391
    %v2544 = vunpack.c.h.b16 %v391
    %v2545 = vunpack.c.l.b16 %v392
    %v2546 = vunpack.c.h.b16 %v392
    %v2547 = vunpack.c.l.b16 %v393
    %v2548 = vunpack.c.h.b16 %v393
    %v2549 = vunpack.c.l.b16 %v394
    %v2550 = vunpack.c.h.b16 %v394
    %v2551 = vunpack.c.l.b16 %v395
    %v2552 = vunpack.c.h.b16 %v395
    %v2553 = vunpack.c.l.b16 %v396
    %v2554 = vunpack.c.h.b16 %v396
    %v2555 = vunpack.c.l.b16 %v397
    %v2556 = vunpack.c.h.b16 %v397
    %v2557 = vunpack.c.l.b16 %v398
    %v2558 = vunpack.c.h.b16 %v398
    %v2559 = vunpack.c.l.b16 %v399
    %v2560 = vunpack.c.h.b16 %v399
    %v2561 = vunpack.c.l.b16 %v400
    %v2562 = vunpack.c.h.b16 %v400
    %v2563 = vunpack.c.l.b16 %v401
    %v2564 = vunpack.c.h.b16 %v401
    %v2565 = vunpack.c.l.b16 %v402
    %v2566 = vunpack.c.h.b16 %v402
    %v2567 = vunpack.c.l.b16 %v403
    %v2568 = vunpack.c.h.b16 %v403
    %v2569 = vunpack.c.l.b16 %v404
    %v2570 = vunpack.c.h.b16 %v404
    %v2571 = vunpack.c.l.b16 %v405
    %v2572 = vunpack.c.h.b16 %v405
    %v2573 = vunpack.c.l.b16 %v406
    %v2574 = vunpack.c.h.b16 %v406
    %v2575 = vunpack.c.l.b16 %v407
    %v2576 = vunpack.c.h.b16 %v407
    %v2577 = vunpack.c.l.b16 %v408
    %v2578 = vunpack.c.h.b16 %v408
    %v2579 = vunpack.c.l.b16 %v409
    %v2580 = vunpack.c.h.b16 %v409
    %v2581 = vunpack.c.l.b16 %v410
    %v2582 = vunpack.c.h.b16 %v410
    %v2583 = vunpack.c.l.b16 %v411
    %v2584 = vunpack.c.h.b16 %v411
    %v2585 = vunpack.c.l.b16 %v412
    %v2586 = vunpack.c.h.b16 %v412
    %v2587 = vunpack.c.l.b16 %v413
    %v2588 = vunpack.c.h.b16 %v413
    %v2589 = vunpack.c.l.b16 %v414
    %v2590 = vunpack.c.h.b16 %v414
    %v2591 = vunpack.c.l.b16 %v415
    %v2592 = vunpack.c.h.b16 %v415
    %v2593 = vunpack.c.l.b16 %v416
    %v2594 = vunpack.c.h.b16 %v416
    %v2595 = vunpack.c.l.b16 %v417
    %v2596 = vunpack.c.h.b16 %v417
    %v2597 = vunpack.c.l.b16 %v418
    %v2598 = vunpack.c.h.b16 %v418
    %v2599 = vunpack.c.l.b16 %v419
    %v2600 = vunpack.c.h.b16 %v419
    %v2601 = vunpack.c.l.b16 %v420
    %v2602 = vunpack.c.h.b16 %v420
    %v2603 = vunpack.c.l.b16 %v421
    %v2604 = vunpack.c.h.b16 %v421
    %v2605 = vunpack.c.l.b16 %v422
    %v2606 = vunpack.c.h.b16 %v422
    %v2607 = vunpack.c.l.b16 %v423
    %v2608 = vunpack.c.h.b16 %v423
    %v2609 = vunpack.c.l.b16 %v424
    %v2610 = vunpack.c.h.b16 %v424
    %v2611 = vunpack.c.l.b16 %v425
    %v2612 = vunpack.c.h.b16 %v425
    %v2613 = vpack.c.b16 %v2361, %v2357
    %v2614 = vpack.c.b16 %v2362, %v2358
    %v2615 = vpack.c.b16 %v2363, %v2359
    %v2616 = vpack.c.b16 %v2364, %v2360
    %v2617 = vpack.c.b16 %v2369, %v2365
    %v2618 = vpack.c.b16 %v2370, %v2366
    %v2619 = vpack.c.b16 %v2371, %v2367
    %v2620 = vpack.c.b16 %v2372, %v2368
    %v2621 = vpack.c.b16 %v2377, %v2373
    %v2622 = vpack.c.b16 %v2378, %v2374
    %v2623 = vpack.c.b16 %v2379, %v2375
    %v2624 = vpack.c.b16 %v2380, %v2376
    %v2625 = vpack.c.b16 %v2385, %v2381
    %v2626 = vpack.c.b16 %v2386, %v2382
    %v2627 = vpack.c.b16 %v2387, %v2383
    %v2628 = vpack.c.b16 %v2388, %v2384
    %v2629 = vpack.c.b16 %v2393, %v2389
    %v2630 = vpack.c.b16 %v2394, %v2390
    %v2631 = vpack.c.b16 %v2395, %v2391
    %v2632 = vpack.c.b16 %v2396, %v2392
    %v2633 = vpack.c.b16 %v2401, %v2397
    %v2634 = vpack.c.b16 %v2402, %v2398
    %v2635 = vpack.c.b16 %v2403, %v2399
    %v2636 = vpack.c.b16 %v2404, %v2400
    %v2637 = vpack.c.b16 %v2409, %v2405
    %v2638 = vpack.c.b16 %v2410, %v2406
    %v2639 = vpack.c.b16 %v2411, %v2407
    %v2640 = vpack.c.b16 %v2412, %v2408
    %v2641 = vpack.c.b16 %v2417, %v2413
    %v2642 = vpack.c.b16 %v2418, %v2414
    %v2643 = vpack.c.b16 %v2419, %v2415
    %v2644 = vpack.c.b16 %v2420, %v2416
    %v2645 = vpack.c.b16 %v2425, %v2421
    %v2646 = vpack.c.b16 %v2426, %v2422
    %v2647 = vpack.c.b16 %v2427, %v2423
    %v2648 = vpack.c.b16 %v2428, %v2424
    %v2649 = vpack.c.b16 %v2433, %v2429
    %v2650 = vpack.c.b16 %v2434, %v2430
    %v2651 = vpack.c.b16 %v2435, %v2431
    %v2652 = vpack.c.b16 %v2436, %v2432
    %v2653 = vpack.c.b16 %v2441, %v2437
    %v2654 = vpack.c.b16 %v2442, %v2438
    %v2655 = vpack.c.b16 %v2443, %v2439
    %v2656 = vpack.c.b16 %v2444, %v2440
    %v2657 = vpack.c.b16 %v2449, %v2445
    %v2658 = vpack.c.b16 %v2450, %v2446
    %v2659 = vpack.c.b16 %v2451, %v2447
    %v2660 = vpack.c.b16 %v2452, %v2448
    %v2661 = vpack.c.b16 %v2457, %v2453
    %v2662 = vpack.c.b16 %v2458, %v2454
    %v2663 = vpack.c.b16 %v2459, %v2455
    %v2664 = vpack.c.b16 %v2460, %v2456
    %v2665 = vpack.c.b16 %v2465, %v2461
    %v2666 = vpack.c.b16 %v2466, %v2462
    %v2667 = vpack.c.b16 %v2467, %v2463
    %v2668 = vpack.c.b16 %v2468, %v2464
    %v2669 = vpack.c.b16 %v2473, %v2469
    %v2670 = vpack.c.b16 %v2474, %v2470
    %v2671 = vpack.c.b16 %v2475, %v2471
    %v2672 = vpack.c.b16 %v2476, %v2472
    %v2673 = vpack.c.b16 %v2481, %v2477
    %v2674 = vpack.c.b16 %v2482, %v2478
    %v2675 = vpack.c.b16 %v2483, %v2479
    %v2676 = vpack.c.b16 %v2484, %v2480
    %v2677 = vpack.c.b16 %v2489, %v2485
    %v2678 = vpack.c.b16 %v2490, %v2486
    %v2679 = vpack.c.b16 %v2491, %v2487
    %v2680 = vpack.c.b16 %v2492, %v2488
    %v2681 = vpack.c.b16 %v2497, %v2493
    %v2682 = vpack.c.b16 %v2498, %v2494
    %v2683 = vpack.c.b16 %v2499, %v2495
    %v2684 = vpack.c.b16 %v2500, %v2496
    %v2685 = vpack.c.b16 %v2505, %v2501
    %v2686 = vpack.c.b16 %v2506, %v2502
    %v2687 = vpack.c.b16 %v2507, %v2503
    %v2688 = vpack.c.b16 %v2508, %v2504
    %v2689 = vpack.c.b16 %v2513, %v2509
    %v2690 = vpack.c.b16 %v2514, %v2510
    %v2691 = vpack.c.b16 %v2515, %v2511
    %v2692 = vpack.c.b16 %v2516, %v2512
    %v2693 = vpack.c.b16 %v2521, %v2517
    %v2694 = vpack.c.b16 %v2522, %v2518
    %v2695 = vpack.c.b16 %v2523, %v2519
    %v2696 = vpack.c.b16 %v2524, %v2520
    %v2697 = vpack.c.b16 %v2529, %v2525
    %v2698 = vpack.c.b16 %v2530, %v2526
    %v2699 = vpack.c.b16 %v2531, %v2527
    %v2700 = vpack.c.b16 %v2532, %v2528
    %v2701 = vpack.c.b16 %v2537, %v2533
    %v2702 = vpack.c.b16 %v2538, %v2534
    %v2703 = vpack.c.b16 %v2539, %v2535
    %v2704 = vpack.c.b16 %v2540, %v2536
    %v2705 = vpack.c.b16 %v2545, %v2541
    %v2706 = vpack.c.b16 %v2546, %v2542
    %v2707 = vpack.c.b16 %v2547, %v2543
    %v2708 = vpack.c.b16 %v2548, %v2544
    %v2709 = vpack.c.b16 %v2553, %v2549
    %v2710 = vpack.c.b16 %v2554, %v2550
    %v2711 = vpack.c.b16 %v2555, %v2551
    %v2712 = vpack.c.b16 %v2556, %v2552
    %v2713 = vpack.c.b16 %v2561, %v2557
    %v2714 = vpack.c.b16 %v2562, %v2558
    %v2715 = vpack.c.b16 %v2563, %v2559
    %v2716 = vpack.c.b16 %v2564, %v2560
    %v2717 = vpack.c.b16 %v2569, %v2565
    %v2718 = vpack.c.b16 %v2570, %v2566
    %v2719 = vpack.c.b16 %v2571, %v2567
    %v2720 = vpack.c.b16 %v2572, %v2568
    %v2721 = vpack.c.b16 %v2577, %v2573
    %v2722 = vpack.c.b16 %v2578, %v2574
    %v2723 = vpack.c.b16 %v2579, %v2575
    %v2724 = vpack.c.b16 %v2580, %v2576
    %v2725 = vpack.c.b16 %v2585, %v2581
    %v2726 = vpack.c.b16 %v2586, %v2582
    %v2727 = vpack.c.b16 %v2587, %v2583
    %v2728 = vpack.c.b16 %v2588, %v2584
    %v2729 = vpack.c.b16 %v2593, %v2589
    %v2730 = vpack.c.b16 %v2594, %v2590
    %v2731 = vpack.c.b16 %v2595, %v2591
    %v2732 = vpack.c.b16 %v2596, %v2592
    %v2733 = vpack.c.b16 %v2601, %v2597
    %v2734 = vpack.c.b16 %v2602, %v2598
    %v2735 = vpack.c.b16 %v2603, %v2599
    %v2736 = vpack.c.b16 %v2604, %v2600
    %v2737 = vpack.c.b16 %v2609, %v2605
    %v2738 = vpack.c.b16 %v2610, %v2606
    %v2739 = vpack.c.b16 %v2611, %v2607
    %v2740 = vpack.c.b16 %v2612, %v2608
    %2869 = vmatprep.subr.bf16.mxu0 %v2642
    %2870 = vmatpush1.bf16.msra.mxu0 %v2641
    %2871 = vmatprep.subr.bf16.mxu0 %v2638
    %2872 = vmatpush1.bf16.msra.mxu0 %v2637
    %2873 = vmatprep.subr.bf16.mxu0 %v2634
    %2874 = vmatpush1.bf16.msra.mxu0 %v2633
    %2875 = vmatprep.subr.bf16.mxu0 %v2630
    %2876 = vmatpush1.bf16.msra.mxu0 %v2629
    %2877 = vmatprep.subr.bf16.mxu0 %v2626
    %2878 = vmatpush1.bf16.msra.mxu0 %v2625
    %2879 = vmatprep.subr.bf16.mxu0 %v2622
    %2880 = vmatpush1.bf16.msra.mxu0 %v2621
    %2881 = vmatprep.subr.bf16.mxu0 %v2618
    %2882 = vmatpush1.bf16.msra.mxu0 %v2617
    %2883 = vmatprep.subr.bf16.mxu0 %v2614
    %2884 = vmatpush1.bf16.msra.mxu0 %v2613
    %2885 = vmatprep.subr.bf16.mxu0 %v2674
    %2886 = vmatpush2.bf16.msra.mxu0 %v2673
    %2887 = vmatprep.subr.bf16.mxu0 %v2670
    %2888 = vmatpush2.bf16.msra.mxu0 %v2669
    %2889 = vmatprep.subr.bf16.mxu0 %v2666
    %2890 = vmatpush2.bf16.msra.mxu0 %v2665
    %2891 = vmatprep.subr.bf16.mxu0 %v2662
    %2892 = vmatpush2.bf16.msra.mxu0 %v2661
    %2893 = vmatprep.subr.bf16.mxu0 %v2658
    %2894 = vmatpush2.bf16.msra.mxu0 %v2657
    %2895 = vmatprep.subr.bf16.mxu0 %v2654
    %2896 = vmatpush2.bf16.msra.mxu0 %v2653
    %2897 = vmatprep.subr.bf16.mxu0 %v2650
    %2898 = vmatpush2.bf16.msra.mxu0 %v2649
    %2899 = vmatprep.subr.bf16.mxu0 %v2646
    %2900 = vmatpush2.bf16.msra.mxu0 %v2645
    %2901 = vmatprep.mubr.bf16.mxu0 %v1977
    %2902 = vmatmul.mubr.bf16.gmra.mxu0 %v1976
    %v2903 = vpop.f32.mrf.mxu0
    %v2904 = vadd.f32 %v2216, %v2903
    %v2905 = vpop.f32.mrf.mxu0
    %v2906 = vadd.f32 %v2220, %v2905
    %v2907 = vpop.f32.mrf.mxu0
    %v2908 = vpop.f32.mrf.mxu0
    %2909 = vdwg.mxu0
    %2910 = vmatprep.subr.bf16.mxu0 %v2706
    %2911 = vmatpush1.bf16.msra.mxu0 %v2705
    %2912 = vmatprep.subr.bf16.mxu0 %v2702
    %2913 = vmatpush1.bf16.msra.mxu0 %v2701
    %2914 = vmatprep.subr.bf16.mxu0 %v2698
    %2915 = vmatpush1.bf16.msra.mxu0 %v2697
    %2916 = vmatprep.subr.bf16.mxu0 %v2694
    %2917 = vmatpush1.bf16.msra.mxu0 %v2693
    %2918 = vmatprep.subr.bf16.mxu0 %v2690
    %2919 = vmatpush1.bf16.msra.mxu0 %v2689
    %2920 = vmatprep.subr.bf16.mxu0 %v2686
    %2921 = vmatpush1.bf16.msra.mxu0 %v2685
    %2922 = vmatprep.subr.bf16.mxu0 %v2682
    %2923 = vmatpush1.bf16.msra.mxu0 %v2681
    %2924 = vmatprep.subr.bf16.mxu0 %v2678
    %2925 = vmatpush1.bf16.msra.mxu0 %v2677
    %2926 = vmatprep.subr.bf16.mxu0 %v2738
    %2927 = vmatpush2.bf16.msra.mxu0 %v2737
    %2928 = vmatprep.subr.bf16.mxu0 %v2734
    %2929 = vmatpush2.bf16.msra.mxu0 %v2733
    %2930 = vmatprep.subr.bf16.mxu0 %v2730
    %2931 = vmatpush2.bf16.msra.mxu0 %v2729
    %2932 = vmatprep.subr.bf16.mxu0 %v2726
    %2933 = vmatpush2.bf16.msra.mxu0 %v2725
    %2934 = vmatprep.subr.bf16.mxu0 %v2722
    %2935 = vmatpush2.bf16.msra.mxu0 %v2721
    %2936 = vmatprep.subr.bf16.mxu0 %v2718
    %2937 = vmatpush2.bf16.msra.mxu0 %v2717
    %2938 = vmatprep.subr.bf16.mxu0 %v2714
    %2939 = vmatpush2.bf16.msra.mxu0 %v2713
    %2940 = vmatprep.subr.bf16.mxu0 %v2710
    %2941 = vmatpush2.bf16.msra.mxu0 %v2709
    %2942 = vmatprep.mubr.bf16.mxu0 %v1979
    %2943 = vmatmul.mubr.bf16.gmra.mxu0 %v1978
    %v2944 = vpop.f32.mrf.mxu0
    %v2945 = vadd.f32 %v2904, %v2944
    %v2946 = vpop.f32.mrf.mxu0
    %v2947 = vadd.f32 %v2906, %v2946
    %v2948 = vpop.f32.mrf.mxu0
    %v2949 = vpop.f32.mrf.mxu0
    %2950 = vdwg.mxu0
    %2951 = vmatprep.subr.bf16.mxu0 %v2644
    %2952 = vmatpush1.bf16.msra.mxu0 %v2643
    %2953 = vmatprep.subr.bf16.mxu0 %v2640
    %2954 = vmatpush1.bf16.msra.mxu0 %v2639
    %2955 = vmatprep.subr.bf16.mxu0 %v2636
    %2956 = vmatpush1.bf16.msra.mxu0 %v2635
    %2957 = vmatprep.subr.bf16.mxu0 %v2632
    %2958 = vmatpush1.bf16.msra.mxu0 %v2631
    %2959 = vmatprep.subr.bf16.mxu0 %v2628
    %2960 = vmatpush1.bf16.msra.mxu0 %v2627
    %2961 = vmatprep.subr.bf16.mxu0 %v2624
    %2962 = vmatpush1.bf16.msra.mxu0 %v2623
    %2963 = vmatprep.subr.bf16.mxu0 %v2620
    %2964 = vmatpush1.bf16.msra.mxu0 %v2619
    %2965 = vmatprep.subr.bf16.mxu0 %v2616
    %2966 = vmatpush1.bf16.msra.mxu0 %v2615
    %2967 = vmatprep.subr.bf16.mxu0 %v2676
    %2968 = vmatpush2.bf16.msra.mxu0 %v2675
    %2969 = vmatprep.subr.bf16.mxu0 %v2672
    %2970 = vmatpush2.bf16.msra.mxu0 %v2671
    %2971 = vmatprep.subr.bf16.mxu0 %v2668
    %2972 = vmatpush2.bf16.msra.mxu0 %v2667
    %2973 = vmatprep.subr.bf16.mxu0 %v2664
    %2974 = vmatpush2.bf16.msra.mxu0 %v2663
    %2975 = vmatprep.subr.bf16.mxu0 %v2660
    %2976 = vmatpush2.bf16.msra.mxu0 %v2659
    %2977 = vmatprep.subr.bf16.mxu0 %v2656
    %2978 = vmatpush2.bf16.msra.mxu0 %v2655
    %2979 = vmatprep.subr.bf16.mxu0 %v2652
    %2980 = vmatpush2.bf16.msra.mxu0 %v2651
    %2981 = vmatprep.subr.bf16.mxu0 %v2648
    %2982 = vmatpush2.bf16.msra.mxu0 %v2647
    %2983 = vmatprep.mubr.bf16.mxu0 %v1977
    %2984 = vmatmul.mubr.bf16.gmra.mxu0 %v1976
    %v2985 = vpop.f32.mrf.mxu0
    %v2986 = vadd.f32 %v2224, %v2985
    %v2987 = vpop.f32.mrf.mxu0
    %v2988 = vadd.f32 %v2228, %v2987
    %v2989 = vpop.f32.mrf.mxu0
    %v2990 = vpop.f32.mrf.mxu0
    %2991 = vdwg.mxu0
    %2992 = vmatprep.subr.bf16.mxu0 %v2708
    %2993 = vmatpush1.bf16.msra.mxu0 %v2707
    %2994 = vmatprep.subr.bf16.mxu0 %v2704
    %2995 = vmatpush1.bf16.msra.mxu0 %v2703
    %2996 = vmatprep.subr.bf16.mxu0 %v2700
    %2997 = vmatpush1.bf16.msra.mxu0 %v2699
    %2998 = vmatprep.subr.bf16.mxu0 %v2696
    %2999 = vmatpush1.bf16.msra.mxu0 %v2695
    %3000 = vmatprep.subr.bf16.mxu0 %v2692
    %3001 = vmatpush1.bf16.msra.mxu0 %v2691
    %3002 = vmatprep.subr.bf16.mxu0 %v2688
    %3003 = vmatpush1.bf16.msra.mxu0 %v2687
    %3004 = vmatprep.subr.bf16.mxu0 %v2684
    %3005 = vmatpush1.bf16.msra.mxu0 %v2683
    %3006 = vmatprep.subr.bf16.mxu0 %v2680
    %3007 = vmatpush1.bf16.msra.mxu0 %v2679
    %3008 = vmatprep.subr.bf16.mxu0 %v2740
    %3009 = vmatpush2.bf16.msra.mxu0 %v2739
    %3010 = vmatprep.subr.bf16.mxu0 %v2736
    %3011 = vmatpush2.bf16.msra.mxu0 %v2735
    %3012 = vmatprep.subr.bf16.mxu0 %v2732
    %3013 = vmatpush2.bf16.msra.mxu0 %v2731
    %3014 = vmatprep.subr.bf16.mxu0 %v2728
    %3015 = vmatpush2.bf16.msra.mxu0 %v2727
    %3016 = vmatprep.subr.bf16.mxu0 %v2724
    %3017 = vmatpush2.bf16.msra.mxu0 %v2723
    %3018 = vmatprep.subr.bf16.mxu0 %v2720
    %3019 = vmatpush2.bf16.msra.mxu0 %v2719
    %3020 = vmatprep.subr.bf16.mxu0 %v2716
    %3021 = vmatpush2.bf16.msra.mxu0 %v2715
    %3022 = vmatprep.subr.bf16.mxu0 %v2712
    %3023 = vmatpush2.bf16.msra.mxu0 %v2711
    %3024 = vmatprep.mubr.bf16.mxu0 %v1979
    %3025 = vmatmul.mubr.bf16.gmra.mxu0 %v1978
    %v3026 = vpop.f32.mrf.mxu0
    %v3027 = vadd.f32 %v2986, %v3026
    %v3028 = vpop.f32.mrf.mxu0
    %v3029 = vadd.f32 %v2988, %v3028
    %v3030 = vpop.f32.mrf.mxu0
    %v3031 = vpop.f32.mrf.mxu0
    %3032 = vdwg.mxu0
    %v3033 = vadd.f32 %v2945, %v2947
    %v3034 = vadd.f32 %v3033, %v3027
    %v3035 = vadd.f32 %v3034, %v3029
    %3036 = vadd.xlane.f32.xlu0 %v3035
    %v3037 = vpop.xlane.xlu0 %3036
    %v3038 = vmul.f32 %v3037, 0.001953125
    %v3039 = vmul.f32 %v2945, %v2945
    %v3040 = vmul.f32 %v2947, %v2947
    %v3041 = vmul.f32 %v3027, %v3027
    %v3042 = vmul.f32 %v3029, %v3029
    %v3043 = vadd.f32 %v3039, %v3040
    %v3044 = vadd.f32 %v3043, %v3041
    %v3045 = vadd.f32 %v3044, %v3042
    %3046 = vadd.xlane.f32.xlu0 %v3045
    %v3047 = vpop.xlane.xlu0 %3046
    %v3048 = vmul.f32 %v3047, 0.001953125
    %v3049 = vmul.f32 %v3038, %v3038
    %v3050 = vsub.f32 %v3048, %v3049
    %v3051 = vmax.f32 %v3050, 0.0
    %v3052 = vadd.f32 %v3051, 1e-05
    %v3053 = vrsqrt.pop %v3052
    %v3054 = vsub.f32 %v2945, %v3038
    %v3055 = vsub.f32 %v2947, %v3038
    %v3056 = vsub.f32 %v3027, %v3038
    %v3057 = vsub.f32 %v3029, %v3038
    %v3058 = vmul.f32 %v3054, %v3053
    %v3059 = vmul.f32 %v3055, %v3053
    %v3060 = vmul.f32 %v3056, %v3053
    %v3061 = vmul.f32 %v3057, %v3053
    %v3062 = vpack.c.bf16 %v3058, %v3058
    %v3063 = vpack.c.bf16 %v3059, %v3059
    %v3064 = vpack.c.bf16 %v3060, %v3060
    %v3065 = vpack.c.bf16 %v3061, %v3061
    %v3066 = vlaneseq
    %v3067 = vshrl.u32 %v3066, 7
    %v3068 = vsub.s32 1, %v3067
    %v3069 = vrot.slane %v833, %v3068
    %v3070 = vlaneseq
    %v3071 = vshrl.u32 %v3070, 7
    %v3072 = vsub.s32 1, %v3071
    %v3073 = vrot.slane %v840, %v3072
    %v3074 = vlaneseq
    %v3075 = vshrl.u32 %v3074, 7
    %v3076 = vsub.s32 1, %v3075
    %v3077 = vrot.slane %v847, %v3076
    %v3078 = vlaneseq
    %v3079 = vshrl.u32 %v3078, 7
    %v3080 = vsub.s32 1, %v3079
    %v3081 = vrot.slane %v854, %v3080
    %v3082 = vmul.bf16 %v3062, %v3069
    %v3083 = vmul.bf16 %v3063, %v3073
    %v3084 = vmul.bf16 %v3064, %v3077
    %v3085 = vmul.bf16 %v3065, %v3081
    %v3086 = vlaneseq
    %v3087 = vshrl.u32 %v3086, 7
    %v3088 = vsub.s32 1, %v3087
    %v3089 = vrot.slane %v865, %v3088
    %v3090 = vlaneseq
    %v3091 = vshrl.u32 %v3090, 7
    %v3092 = vsub.s32 1, %v3091
    %v3093 = vrot.slane %v872, %v3092
    %v3094 = vlaneseq
    %v3095 = vshrl.u32 %v3094, 7
    %v3096 = vsub.s32 1, %v3095
    %v3097 = vrot.slane %v879, %v3096
    %v3098 = vlaneseq
    %v3099 = vshrl.u32 %v3098, 7
    %v3100 = vsub.s32 1, %v3099
    %v3101 = vrot.slane %v886, %v3100
    %v3102 = vadd.bf16 %v3082, %v3089
    %v3103 = vadd.bf16 %v3083, %v3093
    %v3104 = vadd.bf16 %v3084, %v3097
    %v3105 = vadd.bf16 %v3085, %v3101
    %v3106 = vmul.bf16 %v3102, 1036860877
    %v3107 = vmul.bf16 %v3103, 1036860877
    %v3108 = vmul.bf16 %v3104, 1036860877
    %v3109 = vmul.bf16 %v3105, 1036860877
    %v3110 = vmax.bf16 %v3102, %v3106
    %v3111 = vmax.bf16 %v3103, %v3107
    %v3112 = vmax.bf16 %v3104, %v3108
    %v3113 = vmax.bf16 %v3105, %v3109
    %3114 = vmatprep.subr.bf16.mxu0 %v2642
    %3115 = vmatpush1.bf16.msra.mxu0 %v2641
    %3116 = vmatprep.subr.bf16.mxu0 %v2638
    %3117 = vmatpush1.bf16.msra.mxu0 %v2637
    %3118 = vmatprep.subr.bf16.mxu0 %v2634
    %3119 = vmatpush1.bf16.msra.mxu0 %v2633
    %3120 = vmatprep.subr.bf16.mxu0 %v2630
    %3121 = vmatpush1.bf16.msra.mxu0 %v2629
    %3122 = vmatprep.subr.bf16.mxu0 %v2626
    %3123 = vmatpush1.bf16.msra.mxu0 %v2625
    %3124 = vmatprep.subr.bf16.mxu0 %v2622
    %3125 = vmatpush1.bf16.msra.mxu0 %v2621
    %3126 = vmatprep.subr.bf16.mxu0 %v2618
    %3127 = vmatpush1.bf16.msra.mxu0 %v2617
    %3128 = vmatprep.subr.bf16.mxu0 %v2614
    %3129 = vmatpush1.bf16.msra.mxu0 %v2613
    %3130 = vmatprep.subr.bf16.mxu0 %v2674
    %3131 = vmatpush2.bf16.msra.mxu0 %v2673
    %3132 = vmatprep.subr.bf16.mxu0 %v2670
    %3133 = vmatpush2.bf16.msra.mxu0 %v2669
    %3134 = vmatprep.subr.bf16.mxu0 %v2666
    %3135 = vmatpush2.bf16.msra.mxu0 %v2665
    %3136 = vmatprep.subr.bf16.mxu0 %v2662
    %3137 = vmatpush2.bf16.msra.mxu0 %v2661
    %3138 = vmatprep.subr.bf16.mxu0 %v2658
    %3139 = vmatpush2.bf16.msra.mxu0 %v2657
    %3140 = vmatprep.subr.bf16.mxu0 %v2654
    %3141 = vmatpush2.bf16.msra.mxu0 %v2653
    %3142 = vmatprep.subr.bf16.mxu0 %v2650
    %3143 = vmatpush2.bf16.msra.mxu0 %v2649
    %3144 = vmatprep.subr.bf16.mxu0 %v2646
    %3145 = vmatpush2.bf16.msra.mxu0 %v2645
    %3146 = vmatprep.mubr.bf16.mxu0 %v2190
    %3147 = vmatmul.mubr.bf16.gmra.mxu0 %v2189
    %v3148 = vpop.f32.mrf.mxu0
    %v3149 = vadd.f32 %v2216, %v3148
    %v3150 = vpop.f32.mrf.mxu0
    %v3151 = vadd.f32 %v2220, %v3150
    %v3152 = vpop.f32.mrf.mxu0
    %v3153 = vpop.f32.mrf.mxu0
    %3154 = vdwg.mxu0
    %3155 = vmatprep.subr.bf16.mxu0 %v2706
    %3156 = vmatpush1.bf16.msra.mxu0 %v2705
    %3157 = vmatprep.subr.bf16.mxu0 %v2702
    %3158 = vmatpush1.bf16.msra.mxu0 %v2701
    %3159 = vmatprep.subr.bf16.mxu0 %v2698
    %3160 = vmatpush1.bf16.msra.mxu0 %v2697
    %3161 = vmatprep.subr.bf16.mxu0 %v2694
    %3162 = vmatpush1.bf16.msra.mxu0 %v2693
    %3163 = vmatprep.subr.bf16.mxu0 %v2690
    %3164 = vmatpush1.bf16.msra.mxu0 %v2689
    %3165 = vmatprep.subr.bf16.mxu0 %v2686
    %3166 = vmatpush1.bf16.msra.mxu0 %v2685
    %3167 = vmatprep.subr.bf16.mxu0 %v2682
    %3168 = vmatpush1.bf16.msra.mxu0 %v2681
    %3169 = vmatprep.subr.bf16.mxu0 %v2678
    %3170 = vmatpush1.bf16.msra.mxu0 %v2677
    %3171 = vmatprep.subr.bf16.mxu0 %v2738
    %3172 = vmatpush2.bf16.msra.mxu0 %v2737
    %3173 = vmatprep.subr.bf16.mxu0 %v2734
    %3174 = vmatpush2.bf16.msra.mxu0 %v2733
    %3175 = vmatprep.subr.bf16.mxu0 %v2730
    %3176 = vmatpush2.bf16.msra.mxu0 %v2729
    %3177 = vmatprep.subr.bf16.mxu0 %v2726
    %3178 = vmatpush2.bf16.msra.mxu0 %v2725
    %3179 = vmatprep.subr.bf16.mxu0 %v2722
    %3180 = vmatpush2.bf16.msra.mxu0 %v2721
    %3181 = vmatprep.subr.bf16.mxu0 %v2718
    %3182 = vmatpush2.bf16.msra.mxu0 %v2717
    %3183 = vmatprep.subr.bf16.mxu0 %v2714
    %3184 = vmatpush2.bf16.msra.mxu0 %v2713
    %3185 = vmatprep.subr.bf16.mxu0 %v2710
    %3186 = vmatpush2.bf16.msra.mxu0 %v2709
    %3187 = vmatprep.mubr.bf16.mxu0 %v2192
    %3188 = vmatmul.mubr.bf16.gmra.mxu0 %v2191
    %v3189 = vpop.f32.mrf.mxu0
    %v3190 = vadd.f32 %v3149, %v3189
    %v3191 = vpop.f32.mrf.mxu0
    %v3192 = vadd.f32 %v3151, %v3191
    %v3193 = vpop.f32.mrf.mxu0
    %v3194 = vpop.f32.mrf.mxu0
    %3195 = vdwg.mxu0
    %3196 = vmatprep.subr.bf16.mxu0 %v2644
    %3197 = vmatpush1.bf16.msra.mxu0 %v2643
    %3198 = vmatprep.subr.bf16.mxu0 %v2640
    %3199 = vmatpush1.bf16.msra.mxu0 %v2639
    %3200 = vmatprep.subr.bf16.mxu0 %v2636
    %3201 = vmatpush1.bf16.msra.mxu0 %v2635
    %3202 = vmatprep.subr.bf16.mxu0 %v2632
    %3203 = vmatpush1.bf16.msra.mxu0 %v2631
    %3204 = vmatprep.subr.bf16.mxu0 %v2628
    %3205 = vmatpush1.bf16.msra.mxu0 %v2627
    %3206 = vmatprep.subr.bf16.mxu0 %v2624
    %3207 = vmatpush1.bf16.msra.mxu0 %v2623
    %3208 = vmatprep.subr.bf16.mxu0 %v2620
    %3209 = vmatpush1.bf16.msra.mxu0 %v2619
    %3210 = vmatprep.subr.bf16.mxu0 %v2616
    %3211 = vmatpush1.bf16.msra.mxu0 %v2615
    %3212 = vmatprep.subr.bf16.mxu0 %v2676
    %3213 = vmatpush2.bf16.msra.mxu0 %v2675
    %3214 = vmatprep.subr.bf16.mxu0 %v2672
    %3215 = vmatpush2.bf16.msra.mxu0 %v2671
    %3216 = vmatprep.subr.bf16.mxu0 %v2668
    %3217 = vmatpush2.bf16.msra.mxu0 %v2667
    %3218 = vmatprep.subr.bf16.mxu0 %v2664
    %3219 = vmatpush2.bf16.msra.mxu0 %v2663
    %3220 = vmatprep.subr.bf16.mxu0 %v2660
    %3221 = vmatpush2.bf16.msra.mxu0 %v2659
    %3222 = vmatprep.subr.bf16.mxu0 %v2656
    %3223 = vmatpush2.bf16.msra.mxu0 %v2655
    %3224 = vmatprep.subr.bf16.mxu0 %v2652
    %3225 = vmatpush2.bf16.msra.mxu0 %v2651
    %3226 = vmatprep.subr.bf16.mxu0 %v2648
    %3227 = vmatpush2.bf16.msra.mxu0 %v2647
    %3228 = vmatprep.mubr.bf16.mxu0 %v2190
    %3229 = vmatmul.mubr.bf16.gmra.mxu0 %v2189
    %v3230 = vpop.f32.mrf.mxu0
    %v3231 = vadd.f32 %v2224, %v3230
    %v3232 = vpop.f32.mrf.mxu0
    %v3233 = vadd.f32 %v2228, %v3232
    %v3234 = vpop.f32.mrf.mxu0
    %v3235 = vpop.f32.mrf.mxu0
    %3236 = vdwg.mxu0
    %3237 = vmatprep.subr.bf16.mxu0 %v2708
    %3238 = vmatpush1.bf16.msra.mxu0 %v2707
    %3239 = vmatprep.subr.bf16.mxu0 %v2704
    %3240 = vmatpush1.bf16.msra.mxu0 %v2703
    %3241 = vmatprep.subr.bf16.mxu0 %v2700
    %3242 = vmatpush1.bf16.msra.mxu0 %v2699
    %3243 = vmatprep.subr.bf16.mxu0 %v2696
    %3244 = vmatpush1.bf16.msra.mxu0 %v2695
    %3245 = vmatprep.subr.bf16.mxu0 %v2692
    %3246 = vmatpush1.bf16.msra.mxu0 %v2691
    %3247 = vmatprep.subr.bf16.mxu0 %v2688
    %3248 = vmatpush1.bf16.msra.mxu0 %v2687
    %3249 = vmatprep.subr.bf16.mxu0 %v2684
    %3250 = vmatpush1.bf16.msra.mxu0 %v2683
    %3251 = vmatprep.subr.bf16.mxu0 %v2680
    %3252 = vmatpush1.bf16.msra.mxu0 %v2679
    %3253 = vmatprep.subr.bf16.mxu0 %v2740
    %3254 = vmatpush2.bf16.msra.mxu0 %v2739
    %3255 = vmatprep.subr.bf16.mxu0 %v2736
    %3256 = vmatpush2.bf16.msra.mxu0 %v2735
    %3257 = vmatprep.subr.bf16.mxu0 %v2732
    %3258 = vmatpush2.bf16.msra.mxu0 %v2731
    %3259 = vmatprep.subr.bf16.mxu0 %v2728
    %3260 = vmatpush2.bf16.msra.mxu0 %v2727
    %3261 = vmatprep.subr.bf16.mxu0 %v2724
    %3262 = vmatpush2.bf16.msra.mxu0 %v2723
    %3263 = vmatprep.subr.bf16.mxu0 %v2720
    %3264 = vmatpush2.bf16.msra.mxu0 %v2719
    %3265 = vmatprep.subr.bf16.mxu0 %v2716
    %3266 = vmatpush2.bf16.msra.mxu0 %v2715
    %3267 = vmatprep.subr.bf16.mxu0 %v2712
    %3268 = vmatpush2.bf16.msra.mxu0 %v2711
    %3269 = vmatprep.mubr.bf16.mxu0 %v2192
    %3270 = vmatmul.mubr.bf16.gmra.mxu0 %v2191
    %v3271 = vpop.f32.mrf.mxu0
    %v3272 = vadd.f32 %v3231, %v3271
    %v3273 = vpop.f32.mrf.mxu0
    %v3274 = vadd.f32 %v3233, %v3273
    %v3275 = vpop.f32.mrf.mxu0
    %v3276 = vpop.f32.mrf.mxu0
    %3277 = vdwg.mxu0
    %v3278 = vadd.f32 %v3190, %v3192
    %v3279 = vadd.f32 %v3278, %v3272
    %v3280 = vadd.f32 %v3279, %v3274
    %3281 = vadd.xlane.f32.xlu0 %v3280
    %v3282 = vpop.xlane.xlu0 %3281
    %v3283 = vmul.f32 %v3282, 0.001953125
    %v3284 = vmul.f32 %v3190, %v3190
    %v3285 = vmul.f32 %v3192, %v3192
    %v3286 = vmul.f32 %v3272, %v3272
    %v3287 = vmul.f32 %v3274, %v3274
    %v3288 = vadd.f32 %v3284, %v3285
    %v3289 = vadd.f32 %v3288, %v3286
    %v3290 = vadd.f32 %v3289, %v3287
    %3291 = vadd.xlane.f32.xlu0 %v3290
    %v3292 = vpop.xlane.xlu0 %3291
    %v3293 = vmul.f32 %v3292, 0.001953125
    %v3294 = vmul.f32 %v3283, %v3283
    %v3295 = vsub.f32 %v3293, %v3294
    %v3296 = vmax.f32 %v3295, 0.0
    %v3297 = vadd.f32 %v3296, 1e-05
    %v3298 = vrsqrt.pop %v3297
    %v3299 = vsub.f32 %v3190, %v3283
    %v3300 = vsub.f32 %v3192, %v3283
    %v3301 = vsub.f32 %v3272, %v3283
    %v3302 = vsub.f32 %v3274, %v3283
    %v3303 = vmul.f32 %v3299, %v3298
    %v3304 = vmul.f32 %v3300, %v3298
    %v3305 = vmul.f32 %v3301, %v3298
    %v3306 = vmul.f32 %v3302, %v3298
    %v3307 = vpack.c.bf16 %v3303, %v3303
    %v3308 = vpack.c.bf16 %v3304, %v3304
    %v3309 = vpack.c.bf16 %v3305, %v3305
    %v3310 = vpack.c.bf16 %v3306, %v3306
    %v3311 = vmul.bf16 %v3307, %v3069
    %v3312 = vmul.bf16 %v3308, %v3073
    %v3313 = vmul.bf16 %v3309, %v3077
    %v3314 = vmul.bf16 %v3310, %v3081
    %v3315 = vadd.bf16 %v3311, %v3089
    %v3316 = vadd.bf16 %v3312, %v3093
    %v3317 = vadd.bf16 %v3313, %v3097
    %v3318 = vadd.bf16 %v3314, %v3101
    %v3319 = vmul.bf16 %v3315, 1036860877
    %v3320 = vmul.bf16 %v3316, 1036860877
    %v3321 = vmul.bf16 %v3317, 1036860877
    %v3322 = vmul.bf16 %v3318, 1036860877
    %v3323 = vmax.bf16 %v3315, %v3319
    %v3324 = vmax.bf16 %v3316, %v3320
    %v3325 = vmax.bf16 %v3317, %v3321
    %v3326 = vmax.bf16 %v3318, %v3322
    %v3328 = vlaneseq
    %v3329 = vshrl.u32 %v3328, 7
    %v3330 = vsub.s32 0, %v3329
    %v3331 = vrot.slane %v492, %v3330
    %v3397 = vunpack.c.l.b16 %v426
    %v3398 = vunpack.c.l.b16 %v427
    %v3399 = vunpack.c.l.b16 %v428
    %v3400 = vunpack.c.l.b16 %v429
    %v3401 = vunpack.c.l.b16 %v430
    %v3402 = vunpack.c.l.b16 %v431
    %v3403 = vunpack.c.l.b16 %v432
    %v3404 = vunpack.c.l.b16 %v433
    %v3405 = vunpack.c.l.b16 %v434
    %v3406 = vunpack.c.l.b16 %v435
    %v3407 = vunpack.c.l.b16 %v436
    %v3408 = vunpack.c.l.b16 %v437
    %v3409 = vunpack.c.l.b16 %v438
    %v3410 = vunpack.c.l.b16 %v439
    %v3411 = vunpack.c.l.b16 %v440
    %v3412 = vunpack.c.l.b16 %v441
    %v3413 = vunpack.c.l.b16 %v442
    %v3414 = vunpack.c.l.b16 %v443
    %v3415 = vunpack.c.l.b16 %v444
    %v3416 = vunpack.c.l.b16 %v445
    %v3417 = vunpack.c.l.b16 %v446
    %v3418 = vunpack.c.l.b16 %v447
    %v3419 = vunpack.c.l.b16 %v448
    %v3420 = vunpack.c.l.b16 %v449
    %v3421 = vunpack.c.l.b16 %v450
    %v3422 = vunpack.c.l.b16 %v451
    %v3423 = vunpack.c.l.b16 %v452
    %v3424 = vunpack.c.l.b16 %v453
    %v3425 = vunpack.c.l.b16 %v454
    %v3426 = vunpack.c.l.b16 %v455
    %v3427 = vunpack.c.l.b16 %v456
    %v3428 = vunpack.c.l.b16 %v457
    %v3429 = vunpack.c.l.b16 %v458
    %v3430 = vunpack.c.l.b16 %v459
    %v3431 = vunpack.c.l.b16 %v460
    %v3432 = vunpack.c.l.b16 %v461
    %v3433 = vunpack.c.l.b16 %v462
    %v3434 = vunpack.c.l.b16 %v463
    %v3435 = vunpack.c.l.b16 %v464
    %v3436 = vunpack.c.l.b16 %v465
    %v3437 = vunpack.c.l.b16 %v466
    %v3438 = vunpack.c.l.b16 %v467
    %v3439 = vunpack.c.l.b16 %v468
    %v3440 = vunpack.c.l.b16 %v469
    %v3441 = vunpack.c.l.b16 %v470
    %v3442 = vunpack.c.l.b16 %v471
    %v3443 = vunpack.c.l.b16 %v472
    %v3444 = vunpack.c.l.b16 %v473
    %v3445 = vunpack.c.l.b16 %v474
    %v3446 = vunpack.c.l.b16 %v475
    %v3447 = vunpack.c.l.b16 %v476
    %v3448 = vunpack.c.l.b16 %v477
    %v3449 = vunpack.c.l.b16 %v478
    %v3450 = vunpack.c.l.b16 %v479
    %v3451 = vunpack.c.l.b16 %v480
    %v3452 = vunpack.c.l.b16 %v481
    %v3453 = vunpack.c.l.b16 %v482
    %v3454 = vunpack.c.l.b16 %v483
    %v3455 = vunpack.c.l.b16 %v484
    %v3456 = vunpack.c.l.b16 %v485
    %v3457 = vunpack.c.l.b16 %v486
    %v3458 = vunpack.c.l.b16 %v487
    %v3459 = vunpack.c.l.b16 %v488
    %v3460 = vunpack.c.l.b16 %v489
    %v3461 = vpack.c.b16 %v3398, %v3397
    %v3462 = vpack.c.b16 %v3400, %v3399
    %v3463 = vpack.c.b16 %v3402, %v3401
    %v3464 = vpack.c.b16 %v3404, %v3403
    %v3465 = vpack.c.b16 %v3406, %v3405
    %v3466 = vpack.c.b16 %v3408, %v3407
    %v3467 = vpack.c.b16 %v3410, %v3409
    %v3468 = vpack.c.b16 %v3412, %v3411
    %v3469 = vpack.c.b16 %v3414, %v3413
    %v3470 = vpack.c.b16 %v3416, %v3415
    %v3471 = vpack.c.b16 %v3418, %v3417
    %v3472 = vpack.c.b16 %v3420, %v3419
    %v3473 = vpack.c.b16 %v3422, %v3421
    %v3474 = vpack.c.b16 %v3424, %v3423
    %v3475 = vpack.c.b16 %v3426, %v3425
    %v3476 = vpack.c.b16 %v3428, %v3427
    %v3477 = vpack.c.b16 %v3430, %v3429
    %v3478 = vpack.c.b16 %v3432, %v3431
    %v3479 = vpack.c.b16 %v3434, %v3433
    %v3480 = vpack.c.b16 %v3436, %v3435
    %v3481 = vpack.c.b16 %v3438, %v3437
    %v3482 = vpack.c.b16 %v3440, %v3439
    %v3483 = vpack.c.b16 %v3442, %v3441
    %v3484 = vpack.c.b16 %v3444, %v3443
    %v3485 = vpack.c.b16 %v3446, %v3445
    %v3486 = vpack.c.b16 %v3448, %v3447
    %v3487 = vpack.c.b16 %v3450, %v3449
    %v3488 = vpack.c.b16 %v3452, %v3451
    %v3489 = vpack.c.b16 %v3454, %v3453
    %v3490 = vpack.c.b16 %v3456, %v3455
    %v3491 = vpack.c.b16 %v3458, %v3457
    %v3492 = vpack.c.b16 %v3460, %v3459
    %3525 = vmatprep.subr.bf16.mxu0 0
    %3526 = vmatpush1.bf16.msra.mxu0 %v3468
    %3527 = vmatprep.subr.bf16.mxu0 0
    %3528 = vmatpush1.bf16.msra.mxu0 %v3467
    %3529 = vmatprep.subr.bf16.mxu0 0
    %3530 = vmatpush1.bf16.msra.mxu0 %v3466
    %3531 = vmatprep.subr.bf16.mxu0 0
    %3532 = vmatpush1.bf16.msra.mxu0 %v3465
    %3533 = vmatprep.subr.bf16.mxu0 0
    %3534 = vmatpush1.bf16.msra.mxu0 %v3464
    %3535 = vmatprep.subr.bf16.mxu0 0
    %3536 = vmatpush1.bf16.msra.mxu0 %v3463
    %3537 = vmatprep.subr.bf16.mxu0 0
    %3538 = vmatpush1.bf16.msra.mxu0 %v3462
    %3539 = vmatprep.subr.bf16.mxu0 0
    %3540 = vmatpush1.bf16.msra.mxu0 %v3461
    %3541 = vmatprep.subr.bf16.mxu0 0
    %3542 = vmatpush2.bf16.msra.mxu0 %v3476
    %3543 = vmatprep.subr.bf16.mxu0 0
    %3544 = vmatpush2.bf16.msra.mxu0 %v3475
    %3545 = vmatprep.subr.bf16.mxu0 0
    %3546 = vmatpush2.bf16.msra.mxu0 %v3474
    %3547 = vmatprep.subr.bf16.mxu0 0
    %3548 = vmatpush2.bf16.msra.mxu0 %v3473
    %3549 = vmatprep.subr.bf16.mxu0 0
    %3550 = vmatpush2.bf16.msra.mxu0 %v3472
    %3551 = vmatprep.subr.bf16.mxu0 0
    %3552 = vmatpush2.bf16.msra.mxu0 %v3471
    %3553 = vmatprep.subr.bf16.mxu0 0
    %3554 = vmatpush2.bf16.msra.mxu0 %v3470
    %3555 = vmatprep.subr.bf16.mxu0 0
    %3556 = vmatpush2.bf16.msra.mxu0 %v3469
    %3557 = vmatprep.mubr.bf16.mxu0 %v3111
    %3558 = vmatmul.mubr.bf16.gmra.mxu0 %v3110
    %v3559 = vpop.f32.mrf.mxu0
    %v3560 = vadd.f32 %v3331, %v3559
    %v3561 = vpop.f32.mrf.mxu0
    %v3562 = vpop.f32.mrf.mxu0
    %v3563 = vpop.f32.mrf.mxu0
    %3564 = vdwg.mxu0
    %3565 = vmatprep.subr.bf16.mxu0 0
    %3566 = vmatpush1.bf16.msra.mxu0 %v3484
    %3567 = vmatprep.subr.bf16.mxu0 0
    %3568 = vmatpush1.bf16.msra.mxu0 %v3483
    %3569 = vmatprep.subr.bf16.mxu0 0
    %3570 = vmatpush1.bf16.msra.mxu0 %v3482
    %3571 = vmatprep.subr.bf16.mxu0 0
    %3572 = vmatpush1.bf16.msra.mxu0 %v3481
    %3573 = vmatprep.subr.bf16.mxu0 0
    %3574 = vmatpush1.bf16.msra.mxu0 %v3480
    %3575 = vmatprep.subr.bf16.mxu0 0
    %3576 = vmatpush1.bf16.msra.mxu0 %v3479
    %3577 = vmatprep.subr.bf16.mxu0 0
    %3578 = vmatpush1.bf16.msra.mxu0 %v3478
    %3579 = vmatprep.subr.bf16.mxu0 0
    %3580 = vmatpush1.bf16.msra.mxu0 %v3477
    %3581 = vmatprep.subr.bf16.mxu0 0
    %3582 = vmatpush2.bf16.msra.mxu0 %v3492
    %3583 = vmatprep.subr.bf16.mxu0 0
    %3584 = vmatpush2.bf16.msra.mxu0 %v3491
    %3585 = vmatprep.subr.bf16.mxu0 0
    %3586 = vmatpush2.bf16.msra.mxu0 %v3490
    %3587 = vmatprep.subr.bf16.mxu0 0
    %3588 = vmatpush2.bf16.msra.mxu0 %v3489
    %3589 = vmatprep.subr.bf16.mxu0 0
    %3590 = vmatpush2.bf16.msra.mxu0 %v3488
    %3591 = vmatprep.subr.bf16.mxu0 0
    %3592 = vmatpush2.bf16.msra.mxu0 %v3487
    %3593 = vmatprep.subr.bf16.mxu0 0
    %3594 = vmatpush2.bf16.msra.mxu0 %v3486
    %3595 = vmatprep.subr.bf16.mxu0 0
    %3596 = vmatpush2.bf16.msra.mxu0 %v3485
    %3597 = vmatprep.mubr.bf16.mxu0 %v3113
    %3598 = vmatmul.mubr.bf16.gmra.mxu0 %v3112
    %v3599 = vpop.f32.mrf.mxu0
    %v3600 = vadd.f32 %v3560, %v3599
    %v3601 = vpop.f32.mrf.mxu0
    %v3602 = vpop.f32.mrf.mxu0
    %v3603 = vpop.f32.mrf.mxu0
    %3604 = vdwg.mxu0
    %3605 = vst [vmem:[#allocation16] sm:$0xff] %v3600
    %3606 = vmatprep.subr.bf16.mxu0 0
    %3607 = vmatpush1.bf16.msra.mxu0 %v3468
    %3608 = vmatprep.subr.bf16.mxu0 0
    %3609 = vmatpush1.bf16.msra.mxu0 %v3467
    %3610 = vmatprep.subr.bf16.mxu0 0
    %3611 = vmatpush1.bf16.msra.mxu0 %v3466
    %3612 = vmatprep.subr.bf16.mxu0 0
    %3613 = vmatpush1.bf16.msra.mxu0 %v3465
    %3614 = vmatprep.subr.bf16.mxu0 0
    %3615 = vmatpush1.bf16.msra.mxu0 %v3464
    %3616 = vmatprep.subr.bf16.mxu0 0
    %3617 = vmatpush1.bf16.msra.mxu0 %v3463
    %3618 = vmatprep.subr.bf16.mxu0 0
    %3619 = vmatpush1.bf16.msra.mxu0 %v3462
    %3620 = vmatprep.subr.bf16.mxu0 0
    %3621 = vmatpush1.bf16.msra.mxu0 %v3461
    %3622 = vmatprep.subr.bf16.mxu0 0
    %3623 = vmatpush2.bf16.msra.mxu0 %v3476
    %3624 = vmatprep.subr.bf16.mxu0 0
    %3625 = vmatpush2.bf16.msra.mxu0 %v3475
    %3626 = vmatprep.subr.bf16.mxu0 0
    %3627 = vmatpush2.bf16.msra.mxu0 %v3474
    %3628 = vmatprep.subr.bf16.mxu0 0
    %3629 = vmatpush2.bf16.msra.mxu0 %v3473
    %3630 = vmatprep.subr.bf16.mxu0 0
    %3631 = vmatpush2.bf16.msra.mxu0 %v3472
    %3632 = vmatprep.subr.bf16.mxu0 0
    %3633 = vmatpush2.bf16.msra.mxu0 %v3471
    %3634 = vmatprep.subr.bf16.mxu0 0
    %3635 = vmatpush2.bf16.msra.mxu0 %v3470
    %3636 = vmatprep.subr.bf16.mxu0 0
    %3637 = vmatpush2.bf16.msra.mxu0 %v3469
    %3638 = vmatprep.mubr.bf16.mxu0 %v3324
    %3639 = vmatmul.mubr.bf16.gmra.mxu0 %v3323
    %v3640 = vpop.f32.mrf.mxu0
    %v3641 = vadd.f32 %v3331, %v3640
    %v3642 = vpop.f32.mrf.mxu0
    %v3643 = vpop.f32.mrf.mxu0
    %v3644 = vpop.f32.mrf.mxu0
    %3645 = vdwg.mxu0
    %3646 = vmatprep.subr.bf16.mxu0 0
    %3647 = vmatpush1.bf16.msra.mxu0 %v3484
    %3648 = vmatprep.subr.bf16.mxu0 0
    %3649 = vmatpush1.bf16.msra.mxu0 %v3483
    %3650 = vmatprep.subr.bf16.mxu0 0
    %3651 = vmatpush1.bf16.msra.mxu0 %v3482
    %3652 = vmatprep.subr.bf16.mxu0 0
    %3653 = vmatpush1.bf16.msra.mxu0 %v3481
    %3654 = vmatprep.subr.bf16.mxu0 0
    %3655 = vmatpush1.bf16.msra.mxu0 %v3480
    %3656 = vmatprep.subr.bf16.mxu0 0
    %3657 = vmatpush1.bf16.msra.mxu0 %v3479
    %3658 = vmatprep.subr.bf16.mxu0 0
    %3659 = vmatpush1.bf16.msra.mxu0 %v3478
    %3660 = vmatprep.subr.bf16.mxu0 0
    %3661 = vmatpush1.bf16.msra.mxu0 %v3477
    %3662 = vmatprep.subr.bf16.mxu0 0
    %3663 = vmatpush2.bf16.msra.mxu0 %v3492
    %3664 = vmatprep.subr.bf16.mxu0 0
    %3665 = vmatpush2.bf16.msra.mxu0 %v3491
    %3666 = vmatprep.subr.bf16.mxu0 0
    %3667 = vmatpush2.bf16.msra.mxu0 %v3490
    %3668 = vmatprep.subr.bf16.mxu0 0
    %3669 = vmatpush2.bf16.msra.mxu0 %v3489
    %3670 = vmatprep.subr.bf16.mxu0 0
    %3671 = vmatpush2.bf16.msra.mxu0 %v3488
    %3672 = vmatprep.subr.bf16.mxu0 0
    %3673 = vmatpush2.bf16.msra.mxu0 %v3487
    %3674 = vmatprep.subr.bf16.mxu0 0
    %3675 = vmatpush2.bf16.msra.mxu0 %v3486
    %3676 = vmatprep.subr.bf16.mxu0 0
    %3677 = vmatpush2.bf16.msra.mxu0 %v3485
    %3678 = vmatprep.mubr.bf16.mxu0 %v3326
    %3679 = vmatmul.mubr.bf16.gmra.mxu0 %v3325
    %v3680 = vpop.f32.mrf.mxu0
    %v3681 = vadd.f32 %v3641, %v3680
    %v3682 = vpop.f32.mrf.mxu0
    %v3683 = vpop.f32.mrf.mxu0
    %v3684 = vpop.f32.mrf.mxu0
    %3685 = vdwg.mxu0
    %3686 = vst [vmem:[#allocation16 + $0x8] sm:$0xff] %v3681
    // Predicated region
    $region70: #{tpu_custom_call.1} parent=1 // pred_check
      _
    $region71: #{tpu_custom_call.1} parent=1 // pred_check_branch
      %3688 = sbr.rel (0) target = $region73
    $region72: #{tpu_custom_call.1} parent=1 // pred_region
      %s3690 = ssub.s32 256, 256
      %3691 = vsyncadd [#allocation4], %s3690
      %s3692 = sshll.u32 [#allocation16], 4
      %s3693 = int_to_ptr.vmem [resolvable:$true] %s3692
      %3698 = dma.vmem_to_hbm [thread:$0]  %s3693, 256, %s9, [#allocation4], 128, 128, 8
    $region73: #{tpu_custom_call.1} parent=1 // pred_fallthru
      _
    // Predicated region
    $region74: #{tpu_custom_call.1} parent=1 // pred_check
      _
    $region75: #{tpu_custom_call.1} parent=1 // pred_check_branch
      %3700 = sbr.rel (0) target = $region77
    $region76: #{tpu_custom_call.1} parent=1 // pred_region
      %3701 = dma.done [#allocation4], 256
    $region77: #{tpu_custom_call.1} parent=1 // pred_fallthru
      _
    %3702 = vsyncpa [#allocation3], 1
    %3703 = vsyncpa [#allocation6], 1
    %3704 = vsyncpa [#allocation9], 1
    %3705 = vsyncpa [#allocation12], 1
    %3706 = vsyncpa [#allocation15], 1
    %3707 = vsyncpa [#allocation4], 1

</llo_original>
